<compile_context>
chip_gen: v7x
topology: tpu7x:2x2x1
jax: 0.10.0
libtpu: 0.0.40
codegen_flags: <defaults>
</compile_context>

<pallas_src>
import functools

import jax
import jax.numpy as jnp
from jax.experimental import pallas as pl
from jax.experimental.pallas import tpu as pltpu

LAYERS = [3] + [50] * 20 + [1]   # 21 linear layers
N_LAYERS = len(LAYERS) - 1       # 21
N_HIDDEN = N_LAYERS - 1          # 20 Linear->tanh layers (layer indices 0..19)
FPAD = 128                       # padded feature width (lane dim)
IN_PAD = 8                       # input features shipped to the kernel (3 -> 8)


def _tpu_config(n):
    """Pick (batch_tile, grid_steps, bf16_epilogue) for the current TPU generation."""
    kind = jax.devices()[0].device_kind.lower()
    old_gen = any(t in kind for t in ("v2", "v3", "v4", "v5"))  # no bf16 VPU/EUP
    two_tc = "v7" in kind                                       # 2 TensorCores/chip
    bf16_epilogue = not old_gen
    cap = 256 if old_gen else 512   # f32 epilogue -> vreg-pressure cap at 256

    if two_tc:
        # want >= 2 steps and an even step count so both TCs get equal work.
        tm = cap
        while tm > 128 and n <= tm:
            tm //= 2
        steps = max(1, pl.cdiv(n, tm))
        if steps % 2:
            steps += 1
        steps = max(steps, 2)
    else:
        # single-TC: the grid is a serial loop -> one big tile when possible.
        tm = min(cap, max(128, ((n + 127) // 128) * 128))
        steps = pl.cdiv(n, tm)
    return tm, steps, bf16_epilogue


def _mlp_kernel(x_ref, w0_ref, w_ref, b_ref, o_ref, *, bf16_epilogue):
    """x_ref: (TM, IN_PAD) f32    w0_ref: (IN_PAD, FPAD) bf16 (layer 0 weight)
       w_ref: (N_HIDDEN, FPAD, FPAD) bf16 (layers 1..20)
       b_ref: (N_LAYERS, 1, FPAD) f32     o_ref: (TM, 1) f32."""

    def layer(a, w, b):
        z = jnp.dot(a, w, preferred_element_type=jnp.float32)
        if bf16_epilogue:
            # bf16 bias-add + tanh (v6e/v7x): halves EUP/VPU work per layer.
            return jnp.tanh(z.astype(jnp.bfloat16) + b.astype(jnp.bfloat16))
        # f32 epilogue (v5e and older), cast back to bf16 for the next MXU op.
        return jnp.tanh(z + b).astype(jnp.bfloat16)

    # layer 0: (TM, 8) x (8, 128) directly on the narrow input — no activation
    # padding and no scratch round-trip.
    a = layer(x_ref[...].astype(jnp.bfloat16), w0_ref[...], b_ref[0])

    # hidden layers 1..19 (statically unrolled -> static weight indices,
    # full LLO scheduling visibility across layers).
    for i in range(1, N_HIDDEN):
        a = layer(a, w_ref[i - 1], b_ref[i])

    # final Linear (layer 20), no activation; only output column 0 is real.
    z = jnp.dot(a, w_ref[N_HIDDEN - 1], preferred_element_type=jnp.float32)
    z = z + b_ref[N_LAYERS - 1]
    o_ref[...] = z[:, :1]


@jax.jit
def fcn_forward(x, w0, w_stack, b_stack):
    """x: (N, 3) float32 -> (N, 1) float32."""
    n, in_dim = x.shape
    tm, steps, bf16_epi = _tpu_config(n)
    n_pad = tm * steps

    # pad rows to the grid size; features only to IN_PAD=8 (cheap HBM traffic).
    x8 = jnp.zeros((n_pad, IN_PAD), jnp.float32).at[:n, :in_dim].set(x)

    kernel = functools.partial(_mlp_kernel, bf16_epilogue=bf16_epi)

    out = pl.pallas_call(
        kernel,
        out_shape=jax.ShapeDtypeStruct((n_pad, 1), jnp.float32),
        grid_spec=pltpu.PrefetchScalarGridSpec(
            num_scalar_prefetch=0,
            grid=(steps,),
            in_specs=[
                pl.BlockSpec((tm, IN_PAD), lambda i: (i, 0)),
                # constant index maps: weights/biases are DMA'd once into VMEM
                # and revisited on every grid step.
                pl.BlockSpec(w0.shape, lambda i: (0, 0)),
                pl.BlockSpec(w_stack.shape, lambda i: (0, 0, 0)),
                pl.BlockSpec(b_stack.shape, lambda i: (0, 0, 0)),
            ],
            out_specs=pl.BlockSpec((tm, 1), lambda i: (i, 0)),
        ),
        compiler_params=pltpu.CompilerParams(
            dimension_semantics=("parallel",)),
    )(x8, w0, w_stack, b_stack)

    return out[:n, :]


def init_params(key):
    """Xavier-normal weights (gain=1.0), zero biases, packed into padded slabs.

    Padding rows/cols are exactly zero, so padded lanes stay zero through every
    layer (zero weights, zero bias, tanh(0)=0) and never pollute column 0."""
    w0 = jnp.zeros((IN_PAD, FPAD), jnp.float32)
    w_stack = jnp.zeros((N_HIDDEN, FPAD, FPAD), jnp.float32)   # layers 1..20
    b_stack = jnp.zeros((N_LAYERS, 1, FPAD), jnp.float32)      # zeros (nn.init.zeros_)
    keys = jax.random.split(key, N_LAYERS)
    for i in range(N_LAYERS):
        fan_in, fan_out = LAYERS[i], LAYERS[i + 1]
        std = (2.0 / (fan_in + fan_out)) ** 0.5
        w = std * jax.random.normal(keys[i], (fan_in, fan_out), jnp.float32)
        if i == 0:
            w0 = w0.at[:fan_in, :fan_out].set(w)
        else:
            w_stack = w_stack.at[i - 1, :fan_in, :fan_out].set(w)
    return w0.astype(jnp.bfloat16), w_stack.astype(jnp.bfloat16), b_stack


def fcn_forward_ref(x, w0, w_stack, b_stack, bf16_epilogue):
    """Pure-JAX reference with the same dtype chain as the kernel."""
    n, in_dim = x.shape
    a = jnp.zeros((n, IN_PAD), jnp.float32).at[:, :in_dim].set(x)
    a = a.astype(jnp.bfloat16)

    def layer(a, w, b):
        z = jnp.dot(a, w, preferred_element_type=jnp.float32)
        if bf16_epilogue:
            return jnp.tanh(z.astype(jnp.bfloat16) + b.astype(jnp.bfloat16))
        return jnp.tanh(z + b).astype(jnp.bfloat16)

    a = layer(a, w0, b_stack[0])
    for i in range(1, N_HIDDEN):
        a = layer(a, w_stack[i - 1], b_stack[i])
    z = jnp.dot(a, w_stack[N_HIDDEN - 1], preferred_element_type=jnp.float32)
    return (z + b_stack[N_LAYERS - 1])[:, :1]


if __name__ == "__main__":
    key = jax.random.PRNGKey(0)
    k_param, k_x = jax.random.split(key)

    w0, w_stack, b_stack = init_params(k_param)

    # synthetic "bunny" point cloud: N points with (x, y, z) coordinates
    N = 256
    x = 10.0 * jax.random.uniform(k_x, (N, 3), jnp.float32)

    u_pred = jax.block_until_ready(fcn_forward(x, w0, w_stack, b_stack))
    assert u_pred.shape == (N, 1), u_pred.shape

    _, _, bf16_epi = _tpu_config(N)
    u_ref = fcn_forward_ref(x, w0, w_stack, b_stack, bf16_epi)
    max_err = float(jnp.max(jnp.abs(u_pred - u_ref)))
    # Tolerance allows for ulp-level differences between the hardware bf16 tanh
    # (EUP) and XLA's tanh approximation accumulated over 20 layers.
    assert max_err < 5e-2, max_err

    print("KERNEL_OK")
</pallas_src>

<mosaic_0001>
module attributes {stable_mosaic.version = 11 : i64} {
  func.func @_mlp_kernel(%arg0: i32, %arg1: memref<256x8xf32, #tpu.memory_space<vmem>>, %arg2: memref<8x128xbf16, #tpu.memory_space<vmem>>, %arg3: memref<20x128x128xbf16, #tpu.memory_space<vmem>>, %arg4: memref<21x1x128xf32, #tpu.memory_space<vmem>>, %arg5: memref<256x1xf32, #tpu.memory_space<vmem>>) attributes {dimension_semantics = [#tpu.dimension_semantics<parallel>], iteration_bounds = array<i64: 1>, scalar_prefetch = 0 : i64, scratch_operands = 0 : i64, tpu.core_type = #tpu.core_type<tc>, window_params = [{transform_indices = @transform_0, window_bounds = array<i64: 256, 8>}, {pipeline_mode = #tpu.pipeline_mode<synchronous>, transform_indices = @transform_1, window_bounds = array<i64: 8, 128>}, {pipeline_mode = #tpu.pipeline_mode<synchronous>, transform_indices = @transform_2, window_bounds = array<i64: 20, 128, 128>}, {pipeline_mode = #tpu.pipeline_mode<synchronous>, transform_indices = @transform_3, window_bounds = array<i64: 21, 1, 128>}, {transform_indices = @transform_4, window_bounds = array<i64: 256, 1>}]} {
    %c0 = arith.constant 0 : index
    %c0_0 = arith.constant 0 : index
    %0 = vector.load %arg1[%c0, %c0_0] : memref<256x8xf32, #tpu.memory_space<vmem>>, vector<256x8xf32>
    %1 = arith.truncf %0 : vector<256x8xf32> to vector<256x8xbf16>
    %c0_1 = arith.constant 0 : index
    %c0_2 = arith.constant 0 : index
    %2 = vector.load %arg2[%c0_1, %c0_2] : memref<8x128xbf16, #tpu.memory_space<vmem>>, vector<8x128xbf16>
    %c0_3 = arith.constant 0 : index
    %c0_4 = arith.constant 0 : index
    %c0_5 = arith.constant 0 : index
    %3 = vector.load %arg4[%c0_3, %c0_4, %c0_5] : memref<21x1x128xf32, #tpu.memory_space<vmem>>, vector<1x1x128xf32>
    %4 = vector.shape_cast %3 : vector<1x1x128xf32> to vector<1x128xf32>
    %cst = arith.constant dense<0.000000e+00> : vector<256x128xf32>
    %5 = tpu.matmul %1, %2, %cst {dimension_numbers = #tpu.dot_dimension_numbers<[1], [0], [0], [1], [0, 0, 1, 1], [], []>} : vector<256x8xbf16>, vector<8x128xbf16>, vector<256x128xf32> -> vector<256x128xf32>
    %6 = arith.truncf %5 : vector<256x128xf32> to vector<256x128xbf16>
    %7 = arith.truncf %4 : vector<1x128xf32> to vector<1x128xbf16>
    %8 = vector.broadcast %7 : vector<1x128xbf16> to vector<256x128xbf16>
    %9 = arith.addf %6, %8 : vector<256x128xbf16>
    %10 = math.tanh %9 : vector<256x128xbf16>
    %c0_6 = arith.constant 0 : index
    %c0_7 = arith.constant 0 : index
    %c0_8 = arith.constant 0 : index
    %11 = vector.load %arg3[%c0_6, %c0_7, %c0_8] : memref<20x128x128xbf16, #tpu.memory_space<vmem>>, vector<1x128x128xbf16>
    %12 = vector.shape_cast %11 : vector<1x128x128xbf16> to vector<128x128xbf16>
    %c1 = arith.constant 1 : index
    %c0_9 = arith.constant 0 : index
    %c0_10 = arith.constant 0 : index
    %13 = vector.load %arg4[%c1, %c0_9, %c0_10] : memref<21x1x128xf32, #tpu.memory_space<vmem>>, vector<1x1x128xf32>
    %14 = vector.shape_cast %13 : vector<1x1x128xf32> to vector<1x128xf32>
    %cst_11 = arith.constant dense<0.000000e+00> : vector<256x128xf32>
    %15 = tpu.matmul %10, %12, %cst_11 {dimension_numbers = #tpu.dot_dimension_numbers<[1], [0], [0], [1], [0, 0, 1, 1], [], []>} : vector<256x128xbf16>, vector<128x128xbf16>, vector<256x128xf32> -> vector<256x128xf32>
    %16 = arith.truncf %15 : vector<256x128xf32> to vector<256x128xbf16>
    %17 = arith.truncf %14 : vector<1x128xf32> to vector<1x128xbf16>
    %18 = vector.broadcast %17 : vector<1x128xbf16> to vector<256x128xbf16>
    %19 = arith.addf %16, %18 : vector<256x128xbf16>
    %20 = math.tanh %19 : vector<256x128xbf16>
    %c1_12 = arith.constant 1 : index
    %c0_13 = arith.constant 0 : index
    %c0_14 = arith.constant 0 : index
    %21 = vector.load %arg3[%c1_12, %c0_13, %c0_14] : memref<20x128x128xbf16, #tpu.memory_space<vmem>>, vector<1x128x128xbf16>
    %22 = vector.shape_cast %21 : vector<1x128x128xbf16> to vector<128x128xbf16>
    %c2 = arith.constant 2 : index
    %c0_15 = arith.constant 0 : index
    %c0_16 = arith.constant 0 : index
    %23 = vector.load %arg4[%c2, %c0_15, %c0_16] : memref<21x1x128xf32, #tpu.memory_space<vmem>>, vector<1x1x128xf32>
    %24 = vector.shape_cast %23 : vector<1x1x128xf32> to vector<1x128xf32>
    %cst_17 = arith.constant dense<0.000000e+00> : vector<256x128xf32>
    %25 = tpu.matmul %20, %22, %cst_17 {dimension_numbers = #tpu.dot_dimension_numbers<[1], [0], [0], [1], [0, 0, 1, 1], [], []>} : vector<256x128xbf16>, vector<128x128xbf16>, vector<256x128xf32> -> vector<256x128xf32>
    %26 = arith.truncf %25 : vector<256x128xf32> to vector<256x128xbf16>
    %27 = arith.truncf %24 : vector<1x128xf32> to vector<1x128xbf16>
    %28 = vector.broadcast %27 : vector<1x128xbf16> to vector<256x128xbf16>
    %29 = arith.addf %26, %28 : vector<256x128xbf16>
    %30 = math.tanh %29 : vector<256x128xbf16>
    %c2_18 = arith.constant 2 : index
    %c0_19 = arith.constant 0 : index
    %c0_20 = arith.constant 0 : index
    %31 = vector.load %arg3[%c2_18, %c0_19, %c0_20] : memref<20x128x128xbf16, #tpu.memory_space<vmem>>, vector<1x128x128xbf16>
    %32 = vector.shape_cast %31 : vector<1x128x128xbf16> to vector<128x128xbf16>
    %c3 = arith.constant 3 : index
    %c0_21 = arith.constant 0 : index
    %c0_22 = arith.constant 0 : index
    %33 = vector.load %arg4[%c3, %c0_21, %c0_22] : memref<21x1x128xf32, #tpu.memory_space<vmem>>, vector<1x1x128xf32>
    %34 = vector.shape_cast %33 : vector<1x1x128xf32> to vector<1x128xf32>
    %cst_23 = arith.constant dense<0.000000e+00> : vector<256x128xf32>
    %35 = tpu.matmul %30, %32, %cst_23 {dimension_numbers = #tpu.dot_dimension_numbers<[1], [0], [0], [1], [0, 0, 1, 1], [], []>} : vector<256x128xbf16>, vector<128x128xbf16>, vector<256x128xf32> -> vector<256x128xf32>
    %36 = arith.truncf %35 : vector<256x128xf32> to vector<256x128xbf16>
    %37 = arith.truncf %34 : vector<1x128xf32> to vector<1x128xbf16>
    %38 = vector.broadcast %37 : vector<1x128xbf16> to vector<256x128xbf16>
    %39 = arith.addf %36, %38 : vector<256x128xbf16>
    %40 = math.tanh %39 : vector<256x128xbf16>
    %c3_24 = arith.constant 3 : index
    %c0_25 = arith.constant 0 : index
    %c0_26 = arith.constant 0 : index
    %41 = vector.load %arg3[%c3_24, %c0_25, %c0_26] : memref<20x128x128xbf16, #tpu.memory_space<vmem>>, vector<1x128x128xbf16>
    %42 = vector.shape_cast %41 : vector<1x128x128xbf16> to vector<128x128xbf16>
    %c4 = arith.constant 4 : index
    %c0_27 = arith.constant 0 : index
    %c0_28 = arith.constant 0 : index
    %43 = vector.load %arg4[%c4, %c0_27, %c0_28] : memref<21x1x128xf32, #tpu.memory_space<vmem>>, vector<1x1x128xf32>
    %44 = vector.shape_cast %43 : vector<1x1x128xf32> to vector<1x128xf32>
    %cst_29 = arith.constant dense<0.000000e+00> : vector<256x128xf32>
    %45 = tpu.matmul %40, %42, %cst_29 {dimension_numbers = #tpu.dot_dimension_numbers<[1], [0], [0], [1], [0, 0, 1, 1], [], []>} : vector<256x128xbf16>, vector<128x128xbf16>, vector<256x128xf32> -> vector<256x128xf32>
    %46 = arith.truncf %45 : vector<256x128xf32> to vector<256x128xbf16>
    %47 = arith.truncf %44 : vector<1x128xf32> to vector<1x128xbf16>
    %48 = vector.broadcast %47 : vector<1x128xbf16> to vector<256x128xbf16>
    %49 = arith.addf %46, %48 : vector<256x128xbf16>
    %50 = math.tanh %49 : vector<256x128xbf16>
    %c4_30 = arith.constant 4 : index
    %c0_31 = arith.constant 0 : index
    %c0_32 = arith.constant 0 : index
    %51 = vector.load %arg3[%c4_30, %c0_31, %c0_32] : memref<20x128x128xbf16, #tpu.memory_space<vmem>>, vector<1x128x128xbf16>
    %52 = vector.shape_cast %51 : vector<1x128x128xbf16> to vector<128x128xbf16>
    %c5 = arith.constant 5 : index
    %c0_33 = arith.constant 0 : index
    %c0_34 = arith.constant 0 : index
    %53 = vector.load %arg4[%c5, %c0_33, %c0_34] : memref<21x1x128xf32, #tpu.memory_space<vmem>>, vector<1x1x128xf32>
    %54 = vector.shape_cast %53 : vector<1x1x128xf32> to vector<1x128xf32>
    %cst_35 = arith.constant dense<0.000000e+00> : vector<256x128xf32>
    %55 = tpu.matmul %50, %52, %cst_35 {dimension_numbers = #tpu.dot_dimension_numbers<[1], [0], [0], [1], [0, 0, 1, 1], [], []>} : vector<256x128xbf16>, vector<128x128xbf16>, vector<256x128xf32> -> vector<256x128xf32>
    %56 = arith.truncf %55 : vector<256x128xf32> to vector<256x128xbf16>
    %57 = arith.truncf %54 : vector<1x128xf32> to vector<1x128xbf16>
    %58 = vector.broadcast %57 : vector<1x128xbf16> to vector<256x128xbf16>
    %59 = arith.addf %56, %58 : vector<256x128xbf16>
    %60 = math.tanh %59 : vector<256x128xbf16>
    %c5_36 = arith.constant 5 : index
    %c0_37 = arith.constant 0 : index
    %c0_38 = arith.constant 0 : index
    %61 = vector.load %arg3[%c5_36, %c0_37, %c0_38] : memref<20x128x128xbf16, #tpu.memory_space<vmem>>, vector<1x128x128xbf16>
    %62 = vector.shape_cast %61 : vector<1x128x128xbf16> to vector<128x128xbf16>
    %c6 = arith.constant 6 : index
    %c0_39 = arith.constant 0 : index
    %c0_40 = arith.constant 0 : index
    %63 = vector.load %arg4[%c6, %c0_39, %c0_40] : memref<21x1x128xf32, #tpu.memory_space<vmem>>, vector<1x1x128xf32>
    %64 = vector.shape_cast %63 : vector<1x1x128xf32> to vector<1x128xf32>
    %cst_41 = arith.constant dense<0.000000e+00> : vector<256x128xf32>
    %65 = tpu.matmul %60, %62, %cst_41 {dimension_numbers = #tpu.dot_dimension_numbers<[1], [0], [0], [1], [0, 0, 1, 1], [], []>} : vector<256x128xbf16>, vector<128x128xbf16>, vector<256x128xf32> -> vector<256x128xf32>
    %66 = arith.truncf %65 : vector<256x128xf32> to vector<256x128xbf16>
    %67 = arith.truncf %64 : vector<1x128xf32> to vector<1x128xbf16>
    %68 = vector.broadcast %67 : vector<1x128xbf16> to vector<256x128xbf16>
    %69 = arith.addf %66, %68 : vector<256x128xbf16>
    %70 = math.tanh %69 : vector<256x128xbf16>
    %c6_42 = arith.constant 6 : index
    %c0_43 = arith.constant 0 : index
    %c0_44 = arith.constant 0 : index
    %71 = vector.load %arg3[%c6_42, %c0_43, %c0_44] : memref<20x128x128xbf16, #tpu.memory_space<vmem>>, vector<1x128x128xbf16>
    %72 = vector.shape_cast %71 : vector<1x128x128xbf16> to vector<128x128xbf16>
    %c7 = arith.constant 7 : index
    %c0_45 = arith.constant 0 : index
    %c0_46 = arith.constant 0 : index
    %73 = vector.load %arg4[%c7, %c0_45, %c0_46] : memref<21x1x128xf32, #tpu.memory_space<vmem>>, vector<1x1x128xf32>
    %74 = vector.shape_cast %73 : vector<1x1x128xf32> to vector<1x128xf32>
    %cst_47 = arith.constant dense<0.000000e+00> : vector<256x128xf32>
    %75 = tpu.matmul %70, %72, %cst_47 {dimension_numbers = #tpu.dot_dimension_numbers<[1], [0], [0], [1], [0, 0, 1, 1], [], []>} : vector<256x128xbf16>, vector<128x128xbf16>, vector<256x128xf32> -> vector<256x128xf32>
    %76 = arith.truncf %75 : vector<256x128xf32> to vector<256x128xbf16>
    %77 = arith.truncf %74 : vector<1x128xf32> to vector<1x128xbf16>
    %78 = vector.broadcast %77 : vector<1x128xbf16> to vector<256x128xbf16>
    %79 = arith.addf %76, %78 : vector<256x128xbf16>
    %80 = math.tanh %79 : vector<256x128xbf16>
    %c7_48 = arith.constant 7 : index
    %c0_49 = arith.constant 0 : index
    %c0_50 = arith.constant 0 : index
    %81 = vector.load %arg3[%c7_48, %c0_49, %c0_50] : memref<20x128x128xbf16, #tpu.memory_space<vmem>>, vector<1x128x128xbf16>
    %82 = vector.shape_cast %81 : vector<1x128x128xbf16> to vector<128x128xbf16>
    %c8 = arith.constant 8 : index
    %c0_51 = arith.constant 0 : index
    %c0_52 = arith.constant 0 : index
    %83 = vector.load %arg4[%c8, %c0_51, %c0_52] : memref<21x1x128xf32, #tpu.memory_space<vmem>>, vector<1x1x128xf32>
    %84 = vector.shape_cast %83 : vector<1x1x128xf32> to vector<1x128xf32>
    %cst_53 = arith.constant dense<0.000000e+00> : vector<256x128xf32>
    %85 = tpu.matmul %80, %82, %cst_53 {dimension_numbers = #tpu.dot_dimension_numbers<[1], [0], [0], [1], [0, 0, 1, 1], [], []>} : vector<256x128xbf16>, vector<128x128xbf16>, vector<256x128xf32> -> vector<256x128xf32>
    %86 = arith.truncf %85 : vector<256x128xf32> to vector<256x128xbf16>
    %87 = arith.truncf %84 : vector<1x128xf32> to vector<1x128xbf16>
    %88 = vector.broadcast %87 : vector<1x128xbf16> to vector<256x128xbf16>
    %89 = arith.addf %86, %88 : vector<256x128xbf16>
    %90 = math.tanh %89 : vector<256x128xbf16>
    %c8_54 = arith.constant 8 : index
    %c0_55 = arith.constant 0 : index
    %c0_56 = arith.constant 0 : index
    %91 = vector.load %arg3[%c8_54, %c0_55, %c0_56] : memref<20x128x128xbf16, #tpu.memory_space<vmem>>, vector<1x128x128xbf16>
    %92 = vector.shape_cast %91 : vector<1x128x128xbf16> to vector<128x128xbf16>
    %c9 = arith.constant 9 : index
    %c0_57 = arith.constant 0 : index
    %c0_58 = arith.constant 0 : index
    %93 = vector.load %arg4[%c9, %c0_57, %c0_58] : memref<21x1x128xf32, #tpu.memory_space<vmem>>, vector<1x1x128xf32>
    %94 = vector.shape_cast %93 : vector<1x1x128xf32> to vector<1x128xf32>
    %cst_59 = arith.constant dense<0.000000e+00> : vector<256x128xf32>
    %95 = tpu.matmul %90, %92, %cst_59 {dimension_numbers = #tpu.dot_dimension_numbers<[1], [0], [0], [1], [0, 0, 1, 1], [], []>} : vector<256x128xbf16>, vector<128x128xbf16>, vector<256x128xf32> -> vector<256x128xf32>
    %96 = arith.truncf %95 : vector<256x128xf32> to vector<256x128xbf16>
    %97 = arith.truncf %94 : vector<1x128xf32> to vector<1x128xbf16>
    %98 = vector.broadcast %97 : vector<1x128xbf16> to vector<256x128xbf16>
    %99 = arith.addf %96, %98 : vector<256x128xbf16>
    %100 = math.tanh %99 : vector<256x128xbf16>
    %c9_60 = arith.constant 9 : index
    %c0_61 = arith.constant 0 : index
    %c0_62 = arith.constant 0 : index
    %101 = vector.load %arg3[%c9_60, %c0_61, %c0_62] : memref<20x128x128xbf16, #tpu.memory_space<vmem>>, vector<1x128x128xbf16>
    %102 = vector.shape_cast %101 : vector<1x128x128xbf16> to vector<128x128xbf16>
    %c10 = arith.constant 10 : index
    %c0_63 = arith.constant 0 : index
    %c0_64 = arith.constant 0 : index
    %103 = vector.load %arg4[%c10, %c0_63, %c0_64] : memref<21x1x128xf32, #tpu.memory_space<vmem>>, vector<1x1x128xf32>
    %104 = vector.shape_cast %103 : vector<1x1x128xf32> to vector<1x128xf32>
    %cst_65 = arith.constant dense<0.000000e+00> : vector<256x128xf32>
    %105 = tpu.matmul %100, %102, %cst_65 {dimension_numbers = #tpu.dot_dimension_numbers<[1], [0], [0], [1], [0, 0, 1, 1], [], []>} : vector<256x128xbf16>, vector<128x128xbf16>, vector<256x128xf32> -> vector<256x128xf32>
    %106 = arith.truncf %105 : vector<256x128xf32> to vector<256x128xbf16>
    %107 = arith.truncf %104 : vector<1x128xf32> to vector<1x128xbf16>
    %108 = vector.broadcast %107 : vector<1x128xbf16> to vector<256x128xbf16>
    %109 = arith.addf %106, %108 : vector<256x128xbf16>
    %110 = math.tanh %109 : vector<256x128xbf16>
    %c10_66 = arith.constant 10 : index
    %c0_67 = arith.constant 0 : index
    %c0_68 = arith.constant 0 : index
    %111 = vector.load %arg3[%c10_66, %c0_67, %c0_68] : memref<20x128x128xbf16, #tpu.memory_space<vmem>>, vector<1x128x128xbf16>
    %112 = vector.shape_cast %111 : vector<1x128x128xbf16> to vector<128x128xbf16>
    %c11 = arith.constant 11 : index
    %c0_69 = arith.constant 0 : index
    %c0_70 = arith.constant 0 : index
    %113 = vector.load %arg4[%c11, %c0_69, %c0_70] : memref<21x1x128xf32, #tpu.memory_space<vmem>>, vector<1x1x128xf32>
    %114 = vector.shape_cast %113 : vector<1x1x128xf32> to vector<1x128xf32>
    %cst_71 = arith.constant dense<0.000000e+00> : vector<256x128xf32>
    %115 = tpu.matmul %110, %112, %cst_71 {dimension_numbers = #tpu.dot_dimension_numbers<[1], [0], [0], [1], [0, 0, 1, 1], [], []>} : vector<256x128xbf16>, vector<128x128xbf16>, vector<256x128xf32> -> vector<256x128xf32>
    %116 = arith.truncf %115 : vector<256x128xf32> to vector<256x128xbf16>
    %117 = arith.truncf %114 : vector<1x128xf32> to vector<1x128xbf16>
    %118 = vector.broadcast %117 : vector<1x128xbf16> to vector<256x128xbf16>
    %119 = arith.addf %116, %118 : vector<256x128xbf16>
    %120 = math.tanh %119 : vector<256x128xbf16>
    %c11_72 = arith.constant 11 : index
    %c0_73 = arith.constant 0 : index
    %c0_74 = arith.constant 0 : index
    %121 = vector.load %arg3[%c11_72, %c0_73, %c0_74] : memref<20x128x128xbf16, #tpu.memory_space<vmem>>, vector<1x128x128xbf16>
    %122 = vector.shape_cast %121 : vector<1x128x128xbf16> to vector<128x128xbf16>
    %c12 = arith.constant 12 : index
    %c0_75 = arith.constant 0 : index
    %c0_76 = arith.constant 0 : index
    %123 = vector.load %arg4[%c12, %c0_75, %c0_76] : memref<21x1x128xf32, #tpu.memory_space<vmem>>, vector<1x1x128xf32>
    %124 = vector.shape_cast %123 : vector<1x1x128xf32> to vector<1x128xf32>
    %cst_77 = arith.constant dense<0.000000e+00> : vector<256x128xf32>
    %125 = tpu.matmul %120, %122, %cst_77 {dimension_numbers = #tpu.dot_dimension_numbers<[1], [0], [0], [1], [0, 0, 1, 1], [], []>} : vector<256x128xbf16>, vector<128x128xbf16>, vector<256x128xf32> -> vector<256x128xf32>
    %126 = arith.truncf %125 : vector<256x128xf32> to vector<256x128xbf16>
    %127 = arith.truncf %124 : vector<1x128xf32> to vector<1x128xbf16>
    %128 = vector.broadcast %127 : vector<1x128xbf16> to vector<256x128xbf16>
    %129 = arith.addf %126, %128 : vector<256x128xbf16>
    %130 = math.tanh %129 : vector<256x128xbf16>
    %c12_78 = arith.constant 12 : index
    %c0_79 = arith.constant 0 : index
    %c0_80 = arith.constant 0 : index
    %131 = vector.load %arg3[%c12_78, %c0_79, %c0_80] : memref<20x128x128xbf16, #tpu.memory_space<vmem>>, vector<1x128x128xbf16>
    %132 = vector.shape_cast %131 : vector<1x128x128xbf16> to vector<128x128xbf16>
    %c13 = arith.constant 13 : index
    %c0_81 = arith.constant 0 : index
    %c0_82 = arith.constant 0 : index
    %133 = vector.load %arg4[%c13, %c0_81, %c0_82] : memref<21x1x128xf32, #tpu.memory_space<vmem>>, vector<1x1x128xf32>
    %134 = vector.shape_cast %133 : vector<1x1x128xf32> to vector<1x128xf32>
    %cst_83 = arith.constant dense<0.000000e+00> : vector<256x128xf32>
    %135 = tpu.matmul %130, %132, %cst_83 {dimension_numbers = #tpu.dot_dimension_numbers<[1], [0], [0], [1], [0, 0, 1, 1], [], []>} : vector<256x128xbf16>, vector<128x128xbf16>, vector<256x128xf32> -> vector<256x128xf32>
    %136 = arith.truncf %135 : vector<256x128xf32> to vector<256x128xbf16>
    %137 = arith.truncf %134 : vector<1x128xf32> to vector<1x128xbf16>
    %138 = vector.broadcast %137 : vector<1x128xbf16> to vector<256x128xbf16>
    %139 = arith.addf %136, %138 : vector<256x128xbf16>
    %140 = math.tanh %139 : vector<256x128xbf16>
    %c13_84 = arith.constant 13 : index
    %c0_85 = arith.constant 0 : index
    %c0_86 = arith.constant 0 : index
    %141 = vector.load %arg3[%c13_84, %c0_85, %c0_86] : memref<20x128x128xbf16, #tpu.memory_space<vmem>>, vector<1x128x128xbf16>
    %142 = vector.shape_cast %141 : vector<1x128x128xbf16> to vector<128x128xbf16>
    %c14 = arith.constant 14 : index
    %c0_87 = arith.constant 0 : index
    %c0_88 = arith.constant 0 : index
    %143 = vector.load %arg4[%c14, %c0_87, %c0_88] : memref<21x1x128xf32, #tpu.memory_space<vmem>>, vector<1x1x128xf32>
    %144 = vector.shape_cast %143 : vector<1x1x128xf32> to vector<1x128xf32>
    %cst_89 = arith.constant dense<0.000000e+00> : vector<256x128xf32>
    %145 = tpu.matmul %140, %142, %cst_89 {dimension_numbers = #tpu.dot_dimension_numbers<[1], [0], [0], [1], [0, 0, 1, 1], [], []>} : vector<256x128xbf16>, vector<128x128xbf16>, vector<256x128xf32> -> vector<256x128xf32>
    %146 = arith.truncf %145 : vector<256x128xf32> to vector<256x128xbf16>
    %147 = arith.truncf %144 : vector<1x128xf32> to vector<1x128xbf16>
    %148 = vector.broadcast %147 : vector<1x128xbf16> to vector<256x128xbf16>
    %149 = arith.addf %146, %148 : vector<256x128xbf16>
    %150 = math.tanh %149 : vector<256x128xbf16>
    %c14_90 = arith.constant 14 : index
    %c0_91 = arith.constant 0 : index
    %c0_92 = arith.constant 0 : index
    %151 = vector.load %arg3[%c14_90, %c0_91, %c0_92] : memref<20x128x128xbf16, #tpu.memory_space<vmem>>, vector<1x128x128xbf16>
    %152 = vector.shape_cast %151 : vector<1x128x128xbf16> to vector<128x128xbf16>
    %c15 = arith.constant 15 : index
    %c0_93 = arith.constant 0 : index
    %c0_94 = arith.constant 0 : index
    %153 = vector.load %arg4[%c15, %c0_93, %c0_94] : memref<21x1x128xf32, #tpu.memory_space<vmem>>, vector<1x1x128xf32>
    %154 = vector.shape_cast %153 : vector<1x1x128xf32> to vector<1x128xf32>
    %cst_95 = arith.constant dense<0.000000e+00> : vector<256x128xf32>
    %155 = tpu.matmul %150, %152, %cst_95 {dimension_numbers = #tpu.dot_dimension_numbers<[1], [0], [0], [1], [0, 0, 1, 1], [], []>} : vector<256x128xbf16>, vector<128x128xbf16>, vector<256x128xf32> -> vector<256x128xf32>
    %156 = arith.truncf %155 : vector<256x128xf32> to vector<256x128xbf16>
    %157 = arith.truncf %154 : vector<1x128xf32> to vector<1x128xbf16>
    %158 = vector.broadcast %157 : vector<1x128xbf16> to vector<256x128xbf16>
    %159 = arith.addf %156, %158 : vector<256x128xbf16>
    %160 = math.tanh %159 : vector<256x128xbf16>
    %c15_96 = arith.constant 15 : index
    %c0_97 = arith.constant 0 : index
    %c0_98 = arith.constant 0 : index
    %161 = vector.load %arg3[%c15_96, %c0_97, %c0_98] : memref<20x128x128xbf16, #tpu.memory_space<vmem>>, vector<1x128x128xbf16>
    %162 = vector.shape_cast %161 : vector<1x128x128xbf16> to vector<128x128xbf16>
    %c16 = arith.constant 16 : index
    %c0_99 = arith.constant 0 : index
    %c0_100 = arith.constant 0 : index
    %163 = vector.load %arg4[%c16, %c0_99, %c0_100] : memref<21x1x128xf32, #tpu.memory_space<vmem>>, vector<1x1x128xf32>
    %164 = vector.shape_cast %163 : vector<1x1x128xf32> to vector<1x128xf32>
    %cst_101 = arith.constant dense<0.000000e+00> : vector<256x128xf32>
    %165 = tpu.matmul %160, %162, %cst_101 {dimension_numbers = #tpu.dot_dimension_numbers<[1], [0], [0], [1], [0, 0, 1, 1], [], []>} : vector<256x128xbf16>, vector<128x128xbf16>, vector<256x128xf32> -> vector<256x128xf32>
    %166 = arith.truncf %165 : vector<256x128xf32> to vector<256x128xbf16>
    %167 = arith.truncf %164 : vector<1x128xf32> to vector<1x128xbf16>
    %168 = vector.broadcast %167 : vector<1x128xbf16> to vector<256x128xbf16>
    %169 = arith.addf %166, %168 : vector<256x128xbf16>
    %170 = math.tanh %169 : vector<256x128xbf16>
    %c16_102 = arith.constant 16 : index
    %c0_103 = arith.constant 0 : index
    %c0_104 = arith.constant 0 : index
    %171 = vector.load %arg3[%c16_102, %c0_103, %c0_104] : memref<20x128x128xbf16, #tpu.memory_space<vmem>>, vector<1x128x128xbf16>
    %172 = vector.shape_cast %171 : vector<1x128x128xbf16> to vector<128x128xbf16>
    %c17 = arith.constant 17 : index
    %c0_105 = arith.constant 0 : index
    %c0_106 = arith.constant 0 : index
    %173 = vector.load %arg4[%c17, %c0_105, %c0_106] : memref<21x1x128xf32, #tpu.memory_space<vmem>>, vector<1x1x128xf32>
    %174 = vector.shape_cast %173 : vector<1x1x128xf32> to vector<1x128xf32>
    %cst_107 = arith.constant dense<0.000000e+00> : vector<256x128xf32>
    %175 = tpu.matmul %170, %172, %cst_107 {dimension_numbers = #tpu.dot_dimension_numbers<[1], [0], [0], [1], [0, 0, 1, 1], [], []>} : vector<256x128xbf16>, vector<128x128xbf16>, vector<256x128xf32> -> vector<256x128xf32>
    %176 = arith.truncf %175 : vector<256x128xf32> to vector<256x128xbf16>
    %177 = arith.truncf %174 : vector<1x128xf32> to vector<1x128xbf16>
    %178 = vector.broadcast %177 : vector<1x128xbf16> to vector<256x128xbf16>
    %179 = arith.addf %176, %178 : vector<256x128xbf16>
    %180 = math.tanh %179 : vector<256x128xbf16>
    %c17_108 = arith.constant 17 : index
    %c0_109 = arith.constant 0 : index
    %c0_110 = arith.constant 0 : index
    %181 = vector.load %arg3[%c17_108, %c0_109, %c0_110] : memref<20x128x128xbf16, #tpu.memory_space<vmem>>, vector<1x128x128xbf16>
    %182 = vector.shape_cast %181 : vector<1x128x128xbf16> to vector<128x128xbf16>
    %c18 = arith.constant 18 : index
    %c0_111 = arith.constant 0 : index
    %c0_112 = arith.constant 0 : index
    %183 = vector.load %arg4[%c18, %c0_111, %c0_112] : memref<21x1x128xf32, #tpu.memory_space<vmem>>, vector<1x1x128xf32>
    %184 = vector.shape_cast %183 : vector<1x1x128xf32> to vector<1x128xf32>
    %cst_113 = arith.constant dense<0.000000e+00> : vector<256x128xf32>
    %185 = tpu.matmul %180, %182, %cst_113 {dimension_numbers = #tpu.dot_dimension_numbers<[1], [0], [0], [1], [0, 0, 1, 1], [], []>} : vector<256x128xbf16>, vector<128x128xbf16>, vector<256x128xf32> -> vector<256x128xf32>
    %186 = arith.truncf %185 : vector<256x128xf32> to vector<256x128xbf16>
    %187 = arith.truncf %184 : vector<1x128xf32> to vector<1x128xbf16>
    %188 = vector.broadcast %187 : vector<1x128xbf16> to vector<256x128xbf16>
    %189 = arith.addf %186, %188 : vector<256x128xbf16>
    %190 = math.tanh %189 : vector<256x128xbf16>
    %c18_114 = arith.constant 18 : index
    %c0_115 = arith.constant 0 : index
    %c0_116 = arith.constant 0 : index
    %191 = vector.load %arg3[%c18_114, %c0_115, %c0_116] : memref<20x128x128xbf16, #tpu.memory_space<vmem>>, vector<1x128x128xbf16>
    %192 = vector.shape_cast %191 : vector<1x128x128xbf16> to vector<128x128xbf16>
    %c19 = arith.constant 19 : index
    %c0_117 = arith.constant 0 : index
    %c0_118 = arith.constant 0 : index
    %193 = vector.load %arg4[%c19, %c0_117, %c0_118] : memref<21x1x128xf32, #tpu.memory_space<vmem>>, vector<1x1x128xf32>
    %194 = vector.shape_cast %193 : vector<1x1x128xf32> to vector<1x128xf32>
    %cst_119 = arith.constant dense<0.000000e+00> : vector<256x128xf32>
    %195 = tpu.matmul %190, %192, %cst_119 {dimension_numbers = #tpu.dot_dimension_numbers<[1], [0], [0], [1], [0, 0, 1, 1], [], []>} : vector<256x128xbf16>, vector<128x128xbf16>, vector<256x128xf32> -> vector<256x128xf32>
    %196 = arith.truncf %195 : vector<256x128xf32> to vector<256x128xbf16>
    %197 = arith.truncf %194 : vector<1x128xf32> to vector<1x128xbf16>
    %198 = vector.broadcast %197 : vector<1x128xbf16> to vector<256x128xbf16>
    %199 = arith.addf %196, %198 : vector<256x128xbf16>
    %200 = math.tanh %199 : vector<256x128xbf16>
    %c19_120 = arith.constant 19 : index
    %c0_121 = arith.constant 0 : index
    %c0_122 = arith.constant 0 : index
    %201 = vector.load %arg3[%c19_120, %c0_121, %c0_122] : memref<20x128x128xbf16, #tpu.memory_space<vmem>>, vector<1x128x128xbf16>
    %202 = vector.shape_cast %201 : vector<1x128x128xbf16> to vector<128x128xbf16>
    %cst_123 = arith.constant dense<0.000000e+00> : vector<256x128xf32>
    %203 = tpu.matmul %200, %202, %cst_123 {dimension_numbers = #tpu.dot_dimension_numbers<[1], [0], [0], [1], [0, 0, 1, 1], [], []>} : vector<256x128xbf16>, vector<128x128xbf16>, vector<256x128xf32> -> vector<256x128xf32>
    %c20 = arith.constant 20 : index
    %c0_124 = arith.constant 0 : index
    %c0_125 = arith.constant 0 : index
    %204 = vector.load %arg4[%c20, %c0_124, %c0_125] : memref<21x1x128xf32, #tpu.memory_space<vmem>>, vector<1x1x128xf32>
    %205 = vector.shape_cast %204 : vector<1x1x128xf32> to vector<1x128xf32>
    %206 = vector.broadcast %205 : vector<1x128xf32> to vector<256x128xf32>
    %207 = arith.addf %203, %206 : vector<256x128xf32>
    %208 = vector.extract_strided_slice %207 {offsets = [0, 0], sizes = [256, 1], strides = [1, 1]} : vector<256x128xf32> to vector<256x1xf32>
    %c0_126 = arith.constant 0 : index
    %c0_127 = arith.constant 0 : index
    %209 = vector.load %arg5[%c0_126, %c0_127] : memref<256x1xf32, #tpu.memory_space<vmem>>, vector<256x1xf32>
    tpu.vector_store %arg5[%c0_126, %c0_127], %208 {strides = array<i32>} : memref<256x1xf32, #tpu.memory_space<vmem>>, vector<256x1xf32>,
    return
  }
  func.func @transform_0(%arg0: i32) -> (i32, i32) {
    %c0_i32 = arith.constant 0 : i32
    %c0_i32_0 = arith.constant 0 : i32
    return %arg0, %c0_i32 : i32, i32
  }
  func.func @transform_1(%arg0: i32) -> (i32, i32) {
    %c0_i32 = arith.constant 0 : i32
    %c0_i32_0 = arith.constant 0 : i32
    %c0_i32_1 = arith.constant 0 : i32
    return %c0_i32, %c0_i32_0 : i32, i32
  }
  func.func @transform_2(%arg0: i32) -> (i32, i32, i32) {
    %c0_i32 = arith.constant 0 : i32
    %c0_i32_0 = arith.constant 0 : i32
    %c0_i32_1 = arith.constant 0 : i32
    %c0_i32_2 = arith.constant 0 : i32
    return %c0_i32, %c0_i32_0, %c0_i32_1 : i32, i32, i32
  }
  func.func @transform_3(%arg0: i32) -> (i32, i32, i32) {
    %c0_i32 = arith.constant 0 : i32
    %c0_i32_0 = arith.constant 0 : i32
    %c0_i32_1 = arith.constant 0 : i32
    %c0_i32_2 = arith.constant 0 : i32
    return %c0_i32, %c0_i32_0, %c0_i32_1 : i32, i32, i32
  }
  func.func @transform_4(%arg0: i32) -> (i32, i32) {
    %c0_i32 = arith.constant 0 : i32
    %c0_i32_0 = arith.constant 0 : i32
    return %arg0, %c0_i32 : i32, i32
  }
}

</mosaic_0001>

<llo_original>
// kernel: fcn_forward.1
$region0: #{fcn_forward.1}
  #allocation0 [shape = 'u32[]', space=smem, size = 0x4, offset = 0x4, fixed_abs, tag = 'smem constant byte address 0x4 - core index']
  #allocation1 [shape = 'u32[144,128]{1,0:T(1,128)}', space=vmem, size = 0x12000, scoped, tag = 'internal scratch']
  %s0 = inlined_call_operand.vmem [shape: f32[256,8], index: 0, kind: input, shape index: {}]
  %s1 = inlined_call_operand.hbm [shape: bf16[8,128], index: 1, kind: input, shape index: {}]
  %s2 = inlined_call_operand.vmem [shape: bf16[20,128,128], index: 2, kind: input, shape index: {}]
  %s3 = inlined_call_operand.vmem [shape: f32[21,1,128], index: 3, kind: input, shape index: {}]
  %s4 = inlined_call_operand.vmem [shape: f32[256,1], index: 4, kind: output, shape index: {}]
  %s5 = sld [smem:[#allocation0]]
  $region30: #{fcn_forward.1} parent=0
    _
  %s7 = ssub.s32 1, %s5
  %s8 = scalar_select 0, %s7, %s5
  $region1: #{fcn_forward.1} parent=0
    #allocation2 [shape = 'u8[2048]{0}', space=vmem, size = 0x800, scoped, tag = 'input window, operand 1, single buffered']
    #allocation3 [shape = 's32[1]{0}', space=sflag, size = 0x4, scoped, tag = 'scoped memory for fcn_forward.1']
    %9 = vsyncpa [#allocation3], 0
    // Predicated region
    $region2: #{fcn_forward.1} parent=1 // pred_check
      _
    $region3: #{fcn_forward.1} parent=1 // pred_check_branch
      %11 = sbr.rel (0) target = $region5
    $region4: #{fcn_forward.1} parent=1 // pred_region
      _
    $region5: #{fcn_forward.1} parent=1 // pred_fallthru
      _
    // Predicated region
    $region6: #{fcn_forward.1} parent=1 // pred_check
      _
    $region7: #{fcn_forward.1} parent=1 // pred_check_branch
      %13 = sbr.rel (0) target = $region9
    $region8: #{fcn_forward.1} parent=1 // pred_region
      %s15 = ssub.s32 64, 64
      %16 = vsyncadd [#allocation3], %s15
      %s18 = sshll.u32 [#allocation2], 4
      %s19 = int_to_ptr.vmem [resolvable:$true] %s18
      %21 = dma.hbm_to_vmem [thread:$0]  %s1, 64, %s19, [#allocation3]
    $region9: #{fcn_forward.1} parent=1 // pred_fallthru
      _
    // Predicated region
    $region10: #{fcn_forward.1} parent=1 // pred_check
      _
    $region11: #{fcn_forward.1} parent=1 // pred_check_branch
      %23 = sbr.rel (0) target = $region13
    $region12: #{fcn_forward.1} parent=1 // pred_region
      _
    $region13: #{fcn_forward.1} parent=1 // pred_fallthru
      _
    // Predicated region
    $region14: #{fcn_forward.1} parent=1 // pred_check
      _
    $region15: #{fcn_forward.1} parent=1 // pred_check_branch
      %25 = sbr.rel (0) target = $region17
    $region16: #{fcn_forward.1} parent=1 // pred_region
      _
    $region17: #{fcn_forward.1} parent=1 // pred_fallthru
      _
    // Predicated region
    $region18: #{fcn_forward.1} parent=1 // pred_check
      _
    $region19: #{fcn_forward.1} parent=1 // pred_check_branch
      %27 = sbr.rel (0) target = $region21
    $region20: #{fcn_forward.1} parent=1 // pred_region
      %28 = dma.done [#allocation3], 64
    $region21: #{fcn_forward.1} parent=1 // pred_fallthru
      _
    %v30 = vld [vmem:[%s0] sm:$0xff]
    %v31 = vld [vmem:[%s0 + $0x8] sm:$0xff]
    %v32 = vld [vmem:[%s0 + $0x10] sm:$0xff]
    %v33 = vld [vmem:[%s0 + $0x18] sm:$0xff]
    %v34 = vld [vmem:[%s0 + $0x20] sm:$0xff]
    %v35 = vld [vmem:[%s0 + $0x28] sm:$0xff]
    %v36 = vld [vmem:[%s0 + $0x30] sm:$0xff]
    %v37 = vld [vmem:[%s0 + $0x38] sm:$0xff]
    %v38 = vld [vmem:[%s0 + $0x40] sm:$0xff]
    %v39 = vld [vmem:[%s0 + $0x48] sm:$0xff]
    %v40 = vld [vmem:[%s0 + $0x50] sm:$0xff]
    %v41 = vld [vmem:[%s0 + $0x58] sm:$0xff]
    %v42 = vld [vmem:[%s0 + $0x60] sm:$0xff]
    %v43 = vld [vmem:[%s0 + $0x68] sm:$0xff]
    %v44 = vld [vmem:[%s0 + $0x70] sm:$0xff]
    %v45 = vld [vmem:[%s0 + $0x78] sm:$0xff]
    %v46 = vld [vmem:[%s0 + $0x80] sm:$0xff]
    %v47 = vld [vmem:[%s0 + $0x88] sm:$0xff]
    %v48 = vld [vmem:[%s0 + $0x90] sm:$0xff]
    %v49 = vld [vmem:[%s0 + $0x98] sm:$0xff]
    %v50 = vld [vmem:[%s0 + $0xa0] sm:$0xff]
    %v51 = vld [vmem:[%s0 + $0xa8] sm:$0xff]
    %v52 = vld [vmem:[%s0 + $0xb0] sm:$0xff]
    %v53 = vld [vmem:[%s0 + $0xb8] sm:$0xff]
    %v54 = vld [vmem:[%s0 + $0xc0] sm:$0xff]
    %v55 = vld [vmem:[%s0 + $0xc8] sm:$0xff]
    %v56 = vld [vmem:[%s0 + $0xd0] sm:$0xff]
    %v57 = vld [vmem:[%s0 + $0xd8] sm:$0xff]
    %v58 = vld [vmem:[%s0 + $0xe0] sm:$0xff]
    %v59 = vld [vmem:[%s0 + $0xe8] sm:$0xff]
    %v60 = vld [vmem:[%s0 + $0xf0] sm:$0xff]
    %v61 = vld [vmem:[%s0 + $0xf8] sm:$0xff]
    %v62 = vpack.c.bf16 %v31, %v30
    %v63 = vpack.c.bf16 %v33, %v32
    %v64 = vpack.c.bf16 %v35, %v34
    %v65 = vpack.c.bf16 %v37, %v36
    %v66 = vpack.c.bf16 %v39, %v38
    %v67 = vpack.c.bf16 %v41, %v40
    %v68 = vpack.c.bf16 %v43, %v42
    %v69 = vpack.c.bf16 %v45, %v44
    %v70 = vpack.c.bf16 %v47, %v46
    %v71 = vpack.c.bf16 %v49, %v48
    %v72 = vpack.c.bf16 %v51, %v50
    %v73 = vpack.c.bf16 %v53, %v52
    %v74 = vpack.c.bf16 %v55, %v54
    %v75 = vpack.c.bf16 %v57, %v56
    %v76 = vpack.c.bf16 %v59, %v58
    %v77 = vpack.c.bf16 %v61, %v60
    %v78 = vld [vmem:[#allocation2] sm:$0xf]
    %v79 = vld [vmem:[%s3] sm:$0x1]
    %vm80 = vcmask 64512
    %v82 = vsel %vm80, %v62, 0
    %v85 = vsel %vm80, %v63, 0
    %v88 = vsel %vm80, %v64, 0
    %v91 = vsel %vm80, %v65, 0
    %v94 = vsel %vm80, %v66, 0
    %v97 = vsel %vm80, %v67, 0
    %v100 = vsel %vm80, %v68, 0
    %v103 = vsel %vm80, %v69, 0
    %v106 = vsel %vm80, %v70, 0
    %v109 = vsel %vm80, %v71, 0
    %v112 = vsel %vm80, %v72, 0
    %v115 = vsel %vm80, %v73, 0
    %v118 = vsel %vm80, %v74, 0
    %v121 = vsel %vm80, %v75, 0
    %v124 = vsel %vm80, %v76, 0
    %v127 = vsel %vm80, %v77, 0
    %vm129 = vcmask 1043456
    %v131 = vsel %vm129, %v78, 0
    %133 = vmatprep.subr.bf16.mxu0 0
    %134 = vmatpush1.bf16.msra.mxu0 %v131
    %135 = vmatprep.subr.bf16.mxu0 0
    %136 = vmatpush1.bf16.msra.mxu0 0
    %137 = vmatprep.subr.bf16.mxu0 0
    %138 = vmatpush1.bf16.msra.mxu0 0
    %139 = vmatprep.subr.bf16.mxu0 0
    %140 = vmatpush1.bf16.msra.mxu0 0
    %141 = vmatprep.subr.bf16.mxu0 0
    %142 = vmatpush1.bf16.msra.mxu0 0
    %143 = vmatprep.subr.bf16.mxu0 0
    %144 = vmatpush1.bf16.msra.mxu0 0
    %145 = vmatprep.subr.bf16.mxu0 0
    %146 = vmatpush1.bf16.msra.mxu0 0
    %147 = vmatprep.subr.bf16.mxu0 0
    %148 = vmatpush1.bf16.msra.mxu0 0
    %149 = vmatprep.subr.bf16.mxu0 0
    %150 = vmatpush1.bf16.msra.mxu0 0
    %151 = vmatprep.subr.bf16.mxu0 0
    %152 = vmatpush1.bf16.msra.mxu0 0
    %153 = vmatprep.subr.bf16.mxu0 0
    %154 = vmatpush1.bf16.msra.mxu0 0
    %155 = vmatprep.subr.bf16.mxu0 0
    %156 = vmatpush1.bf16.msra.mxu0 0
    %157 = vmatprep.subr.bf16.mxu0 0
    %158 = vmatpush1.bf16.msra.mxu0 0
    %159 = vmatprep.subr.bf16.mxu0 0
    %160 = vmatpush1.bf16.msra.mxu0 0
    %161 = vmatprep.subr.bf16.mxu0 0
    %162 = vmatpush1.bf16.msra.mxu0 0
    %163 = vmatprep.subr.bf16.mxu0 0
    %164 = vmatpush1.bf16.msra.mxu0 0
    %165 = vmatprep.mubr.bf16.mxu0 0
    %166 = vmatmul.mubr.bf16.gmra.mrb[0].mxu0 %v82
    %v167 = vpop.f32.mrb[0].mxu0
    %v168 = vadd.f32 0.0, %v167
    %v169 = vpop.f32.mrb[0].mxu0
    %v170 = vpop.f32.mrb[0].mxu0
    %v171 = vadd.f32 0.0, %v170
    %v172 = vpop.f32.mrb[0].mxu0
    %173 = vmatprep.mubr.bf16.mxu0 0
    %174 = vmatmul.mubr.bf16.gmra.mrb[0].mxu0 %v85
    %v175 = vpop.f32.mrb[0].mxu0
    %v176 = vadd.f32 0.0, %v175
    %v177 = vpop.f32.mrb[0].mxu0
    %v178 = vpop.f32.mrb[0].mxu0
    %v179 = vadd.f32 0.0, %v178
    %v180 = vpop.f32.mrb[0].mxu0
    %181 = vmatprep.mubr.bf16.mxu0 0
    %182 = vmatmul.mubr.bf16.gmra.mrb[0].mxu0 %v88
    %v183 = vpop.f32.mrb[0].mxu0
    %v184 = vadd.f32 0.0, %v183
    %v185 = vpop.f32.mrb[0].mxu0
    %v186 = vpop.f32.mrb[0].mxu0
    %v187 = vadd.f32 0.0, %v186
    %v188 = vpop.f32.mrb[0].mxu0
    %189 = vmatprep.mubr.bf16.mxu0 0
    %190 = vmatmul.mubr.bf16.gmra.mrb[0].mxu0 %v91
    %v191 = vpop.f32.mrb[0].mxu0
    %v192 = vadd.f32 0.0, %v191
    %v193 = vpop.f32.mrb[0].mxu0
    %v194 = vpop.f32.mrb[0].mxu0
    %v195 = vadd.f32 0.0, %v194
    %v196 = vpop.f32.mrb[0].mxu0
    %197 = vmatprep.mubr.bf16.mxu0 0
    %198 = vmatmul.mubr.bf16.gmra.mrb[0].mxu0 %v94
    %v199 = vpop.f32.mrb[0].mxu0
    %v200 = vadd.f32 0.0, %v199
    %v201 = vpop.f32.mrb[0].mxu0
    %v202 = vpop.f32.mrb[0].mxu0
    %v203 = vadd.f32 0.0, %v202
    %v204 = vpop.f32.mrb[0].mxu0
    %205 = vmatprep.mubr.bf16.mxu0 0
    %206 = vmatmul.mubr.bf16.gmra.mrb[0].mxu0 %v97
    %v207 = vpop.f32.mrb[0].mxu0
    %v208 = vadd.f32 0.0, %v207
    %v209 = vpop.f32.mrb[0].mxu0
    %v210 = vpop.f32.mrb[0].mxu0
    %v211 = vadd.f32 0.0, %v210
    %v212 = vpop.f32.mrb[0].mxu0
    %213 = vmatprep.mubr.bf16.mxu0 0
    %214 = vmatmul.mubr.bf16.gmra.mrb[0].mxu0 %v100
    %v215 = vpop.f32.mrb[0].mxu0
    %v216 = vadd.f32 0.0, %v215
    %v217 = vpop.f32.mrb[0].mxu0
    %v218 = vpop.f32.mrb[0].mxu0
    %v219 = vadd.f32 0.0, %v218
    %v220 = vpop.f32.mrb[0].mxu0
    %221 = vmatprep.mubr.bf16.mxu0 0
    %222 = vmatmul.mubr.bf16.gmra.mrb[0].mxu0 %v103
    %v223 = vpop.f32.mrb[0].mxu0
    %v224 = vadd.f32 0.0, %v223
    %v225 = vpop.f32.mrb[0].mxu0
    %v226 = vpop.f32.mrb[0].mxu0
    %v227 = vadd.f32 0.0, %v226
    %v228 = vpop.f32.mrb[0].mxu0
    %229 = vmatprep.mubr.bf16.mxu0 0
    %230 = vmatmul.mubr.bf16.gmra.mrb[0].mxu0 %v106
    %v231 = vpop.f32.mrb[0].mxu0
    %v232 = vadd.f32 0.0, %v231
    %v233 = vpop.f32.mrb[0].mxu0
    %v234 = vpop.f32.mrb[0].mxu0
    %v235 = vadd.f32 0.0, %v234
    %v236 = vpop.f32.mrb[0].mxu0
    %237 = vmatprep.mubr.bf16.mxu0 0
    %238 = vmatmul.mubr.bf16.gmra.mrb[0].mxu0 %v109
    %v239 = vpop.f32.mrb[0].mxu0
    %v240 = vadd.f32 0.0, %v239
    %v241 = vpop.f32.mrb[0].mxu0
    %v242 = vpop.f32.mrb[0].mxu0
    %v243 = vadd.f32 0.0, %v242
    %v244 = vpop.f32.mrb[0].mxu0
    %245 = vmatprep.mubr.bf16.mxu0 0
    %246 = vmatmul.mubr.bf16.gmra.mrb[0].mxu0 %v112
    %v247 = vpop.f32.mrb[0].mxu0
    %v248 = vadd.f32 0.0, %v247
    %v249 = vpop.f32.mrb[0].mxu0
    %v250 = vpop.f32.mrb[0].mxu0
    %v251 = vadd.f32 0.0, %v250
    %v252 = vpop.f32.mrb[0].mxu0
    %253 = vmatprep.mubr.bf16.mxu0 0
    %254 = vmatmul.mubr.bf16.gmra.mrb[0].mxu0 %v115
    %v255 = vpop.f32.mrb[0].mxu0
    %v256 = vadd.f32 0.0, %v255
    %v257 = vpop.f32.mrb[0].mxu0
    %v258 = vpop.f32.mrb[0].mxu0
    %v259 = vadd.f32 0.0, %v258
    %v260 = vpop.f32.mrb[0].mxu0
    %261 = vmatprep.mubr.bf16.mxu0 0
    %262 = vmatmul.mubr.bf16.gmra.mrb[0].mxu0 %v118
    %v263 = vpop.f32.mrb[0].mxu0
    %v264 = vadd.f32 0.0, %v263
    %v265 = vpop.f32.mrb[0].mxu0
    %v266 = vpop.f32.mrb[0].mxu0
    %v267 = vadd.f32 0.0, %v266
    %v268 = vpop.f32.mrb[0].mxu0
    %269 = vmatprep.mubr.bf16.mxu0 0
    %270 = vmatmul.mubr.bf16.gmra.mrb[0].mxu0 %v121
    %v271 = vpop.f32.mrb[0].mxu0
    %v272 = vadd.f32 0.0, %v271
    %v273 = vpop.f32.mrb[0].mxu0
    %v274 = vpop.f32.mrb[0].mxu0
    %v275 = vadd.f32 0.0, %v274
    %v276 = vpop.f32.mrb[0].mxu0
    %277 = vmatprep.mubr.bf16.mxu0 0
    %278 = vmatmul.mubr.bf16.gmra.mrb[0].mxu0 %v124
    %v279 = vpop.f32.mrb[0].mxu0
    %v280 = vadd.f32 0.0, %v279
    %v281 = vpop.f32.mrb[0].mxu0
    %v282 = vpop.f32.mrb[0].mxu0
    %v283 = vadd.f32 0.0, %v282
    %v284 = vpop.f32.mrb[0].mxu0
    %285 = vmatprep.mubr.bf16.mxu0 0
    %286 = vmatmul.mubr.bf16.gmra.mrb[0].mxu0 %v127
    %v287 = vpop.f32.mrb[0].mxu0
    %v288 = vadd.f32 0.0, %v287
    %v289 = vpop.f32.mrb[0].mxu0
    %v290 = vpop.f32.mrb[0].mxu0
    %v291 = vadd.f32 0.0, %v290
    %v292 = vpop.f32.mrb[0].mxu0
    %293 = vdwg.mxu0
    %v294 = vpack.c.bf16 %v171, %v168
    %v295 = vpack.c.bf16 %v179, %v176
    %v296 = vpack.c.bf16 %v187, %v184
    %v297 = vpack.c.bf16 %v195, %v192
    %v298 = vpack.c.bf16 %v203, %v200
    %v299 = vpack.c.bf16 %v211, %v208
    %v300 = vpack.c.bf16 %v219, %v216
    %v301 = vpack.c.bf16 %v227, %v224
    %v302 = vpack.c.bf16 %v235, %v232
    %v303 = vpack.c.bf16 %v243, %v240
    %v304 = vpack.c.bf16 %v251, %v248
    %v305 = vpack.c.bf16 %v259, %v256
    %v306 = vpack.c.bf16 %v267, %v264
    %v307 = vpack.c.bf16 %v275, %v272
    %v308 = vpack.c.bf16 %v283, %v280
    %v309 = vpack.c.bf16 %v291, %v288
    %v310 = vpack.c.bf16 %v79, %v79
    %v312 = vpack.i.b16 %v310, %v310
    %v314 = vlaneseq
    %v315 = vshrl.u32 %v314, 7
    %v316 = vsub.s32 0, %v315
    %v317 = vrot.slane %v312, %v316
    %v318 = vadd.bf16 %v294, %v317
    %v319 = vadd.bf16 %v295, %v317
    %v320 = vadd.bf16 %v296, %v317
    %v321 = vadd.bf16 %v297, %v317
    %v322 = vadd.bf16 %v298, %v317
    %v323 = vadd.bf16 %v299, %v317
    %v324 = vadd.bf16 %v300, %v317
    %v325 = vadd.bf16 %v301, %v317
    %v326 = vadd.bf16 %v302, %v317
    %v327 = vadd.bf16 %v303, %v317
    %v328 = vadd.bf16 %v304, %v317
    %v329 = vadd.bf16 %v305, %v317
    %v330 = vadd.bf16 %v306, %v317
    %v331 = vadd.bf16 %v307, %v317
    %v332 = vadd.bf16 %v308, %v317
    %v333 = vadd.bf16 %v309, %v317
    %v334 = vtanh.bf16.pop %v318
    %v335 = vtanh.bf16.pop %v319
    %v336 = vtanh.bf16.pop %v320
    %v337 = vtanh.bf16.pop %v321
    %v338 = vtanh.bf16.pop %v322
    %v339 = vtanh.bf16.pop %v323
    %v340 = vtanh.bf16.pop %v324
    %v341 = vtanh.bf16.pop %v325
    %v342 = vtanh.bf16.pop %v326
    %v343 = vtanh.bf16.pop %v327
    %v344 = vtanh.bf16.pop %v328
    %v345 = vtanh.bf16.pop %v329
    %v346 = vtanh.bf16.pop %v330
    %v347 = vtanh.bf16.pop %v331
    %v348 = vtanh.bf16.pop %v332
    %v349 = vtanh.bf16.pop %v333
    %v350 = vld [vmem:[%s2] sm:$0xf]
    %v351 = vld [vmem:[%s2 + $0x4] sm:$0xf]
    %v352 = vld [vmem:[%s2 + $0x8] sm:$0xf]
    %v353 = vld [vmem:[%s2 + $0xc] sm:$0xf]
    %v354 = vld [vmem:[%s2 + $0x10] sm:$0xf]
    %v355 = vld [vmem:[%s2 + $0x14] sm:$0xf]
    %v356 = vld [vmem:[%s2 + $0x18] sm:$0xf]
    %v357 = vld [vmem:[%s2 + $0x1c] sm:$0xf]
    %v358 = vld [vmem:[%s2 + $0x20] sm:$0xf]
    %v359 = vld [vmem:[%s2 + $0x24] sm:$0xf]
    %v360 = vld [vmem:[%s2 + $0x28] sm:$0xf]
    %v361 = vld [vmem:[%s2 + $0x2c] sm:$0xf]
    %v362 = vld [vmem:[%s2 + $0x30] sm:$0xf]
    %v363 = vld [vmem:[%s2 + $0x34] sm:$0xf]
    %v364 = vld [vmem:[%s2 + $0x38] sm:$0xf]
    %v365 = vld [vmem:[%s2 + $0x3c] sm:$0xf]
    %s366 = scalar_lea.vmem %s3, 1
    %v367 = vld [vmem:[%s366] sm:$0x1]
    %v384 = vunpack.c.l.b16 %v350
    %v385 = vunpack.c.l.b16 %v351
    %v386 = vunpack.c.l.b16 %v352
    %v387 = vunpack.c.l.b16 %v353
    %v388 = vunpack.c.l.b16 %v354
    %v389 = vunpack.c.l.b16 %v355
    %v390 = vunpack.c.l.b16 %v356
    %v391 = vunpack.c.l.b16 %v357
    %v392 = vunpack.c.l.b16 %v358
    %v393 = vunpack.c.l.b16 %v359
    %v394 = vunpack.c.l.b16 %v360
    %v395 = vunpack.c.l.b16 %v361
    %v396 = vunpack.c.l.b16 %v362
    %v397 = vunpack.c.l.b16 %v363
    %v398 = vunpack.c.l.b16 %v364
    %v399 = vunpack.c.l.b16 %v365
    %v400 = vpack.c.b16 %v385, %v384
    %v401 = vpack.c.b16 %v387, %v386
    %v402 = vpack.c.b16 %v389, %v388
    %v403 = vpack.c.b16 %v391, %v390
    %v404 = vpack.c.b16 %v393, %v392
    %v405 = vpack.c.b16 %v395, %v394
    %v406 = vpack.c.b16 %v397, %v396
    %v407 = vpack.c.b16 %v399, %v398
    %416 = vmatprep.subr.bf16.mxu0 0
    %417 = vmatpush1.bf16.msra.mxu0 %v400
    %418 = vmatprep.subr.bf16.mxu0 0
    %419 = vmatpush1.bf16.msra.mxu0 %v401
    %420 = vmatprep.subr.bf16.mxu0 0
    %421 = vmatpush1.bf16.msra.mxu0 %v402
    %422 = vmatprep.subr.bf16.mxu0 0
    %423 = vmatpush1.bf16.msra.mxu0 %v403
    %424 = vmatprep.subr.bf16.mxu0 0
    %425 = vmatpush1.bf16.msra.mxu0 %v404
    %426 = vmatprep.subr.bf16.mxu0 0
    %427 = vmatpush1.bf16.msra.mxu0 %v405
    %428 = vmatprep.subr.bf16.mxu0 0
    %429 = vmatpush1.bf16.msra.mxu0 %v406
    %430 = vmatprep.subr.bf16.mxu0 0
    %431 = vmatpush1.bf16.msra.mxu0 %v407
    %432 = vmatprep.subr.bf16.mxu0 0
    %433 = vmatpush1.bf16.msra.mxu0 0
    %434 = vmatprep.subr.bf16.mxu0 0
    %435 = vmatpush1.bf16.msra.mxu0 0
    %436 = vmatprep.subr.bf16.mxu0 0
    %437 = vmatpush1.bf16.msra.mxu0 0
    %438 = vmatprep.subr.bf16.mxu0 0
    %439 = vmatpush1.bf16.msra.mxu0 0
    %440 = vmatprep.subr.bf16.mxu0 0
    %441 = vmatpush1.bf16.msra.mxu0 0
    %442 = vmatprep.subr.bf16.mxu0 0
    %443 = vmatpush1.bf16.msra.mxu0 0
    %444 = vmatprep.subr.bf16.mxu0 0
    %445 = vmatpush1.bf16.msra.mxu0 0
    %446 = vmatprep.subr.bf16.mxu0 0
    %447 = vmatpush1.bf16.msra.mxu0 0
    %448 = vmatprep.mubr.bf16.mxu0 0
    %449 = vmatmul.mubr.bf16.gmra.mrb[0].mxu0 %v334
    %v450 = vpop.f32.mrb[0].mxu0
    %v451 = vadd.f32 0.0, %v450
    %v452 = vpop.f32.mrb[0].mxu0
    %v453 = vpop.f32.mrb[0].mxu0
    %v454 = vadd.f32 0.0, %v453
    %v455 = vpop.f32.mrb[0].mxu0
    %456 = vmatprep.mubr.bf16.mxu0 0
    %457 = vmatmul.mubr.bf16.gmra.mrb[0].mxu0 %v335
    %v458 = vpop.f32.mrb[0].mxu0
    %v459 = vadd.f32 0.0, %v458
    %v460 = vpop.f32.mrb[0].mxu0
    %v461 = vpop.f32.mrb[0].mxu0
    %v462 = vadd.f32 0.0, %v461
    %v463 = vpop.f32.mrb[0].mxu0
    %464 = vmatprep.mubr.bf16.mxu0 0
    %465 = vmatmul.mubr.bf16.gmra.mrb[0].mxu0 %v336
    %v466 = vpop.f32.mrb[0].mxu0
    %v467 = vadd.f32 0.0, %v466
    %v468 = vpop.f32.mrb[0].mxu0
    %v469 = vpop.f32.mrb[0].mxu0
    %v470 = vadd.f32 0.0, %v469
    %v471 = vpop.f32.mrb[0].mxu0
    %472 = vmatprep.mubr.bf16.mxu0 0
    %473 = vmatmul.mubr.bf16.gmra.mrb[0].mxu0 %v337
    %v474 = vpop.f32.mrb[0].mxu0
    %v475 = vadd.f32 0.0, %v474
    %v476 = vpop.f32.mrb[0].mxu0
    %v477 = vpop.f32.mrb[0].mxu0
    %v478 = vadd.f32 0.0, %v477
    %v479 = vpop.f32.mrb[0].mxu0
    %480 = vmatprep.mubr.bf16.mxu0 0
    %481 = vmatmul.mubr.bf16.gmra.mrb[0].mxu0 %v338
    %v482 = vpop.f32.mrb[0].mxu0
    %v483 = vadd.f32 0.0, %v482
    %v484 = vpop.f32.mrb[0].mxu0
    %v485 = vpop.f32.mrb[0].mxu0
    %v486 = vadd.f32 0.0, %v485
    %v487 = vpop.f32.mrb[0].mxu0
    %488 = vmatprep.mubr.bf16.mxu0 0
    %489 = vmatmul.mubr.bf16.gmra.mrb[0].mxu0 %v339
    %v490 = vpop.f32.mrb[0].mxu0
    %v491 = vadd.f32 0.0, %v490
    %v492 = vpop.f32.mrb[0].mxu0
    %v493 = vpop.f32.mrb[0].mxu0
    %v494 = vadd.f32 0.0, %v493
    %v495 = vpop.f32.mrb[0].mxu0
    %496 = vmatprep.mubr.bf16.mxu0 0
    %497 = vmatmul.mubr.bf16.gmra.mrb[0].mxu0 %v340
    %v498 = vpop.f32.mrb[0].mxu0
    %v499 = vadd.f32 0.0, %v498
    %v500 = vpop.f32.mrb[0].mxu0
    %v501 = vpop.f32.mrb[0].mxu0
    %v502 = vadd.f32 0.0, %v501
    %v503 = vpop.f32.mrb[0].mxu0
    %504 = vmatprep.mubr.bf16.mxu0 0
    %505 = vmatmul.mubr.bf16.gmra.mrb[0].mxu0 %v341
    %v506 = vpop.f32.mrb[0].mxu0
    %v507 = vadd.f32 0.0, %v506
    %v508 = vpop.f32.mrb[0].mxu0
    %v509 = vpop.f32.mrb[0].mxu0
    %v510 = vadd.f32 0.0, %v509
    %v511 = vpop.f32.mrb[0].mxu0
    %512 = vmatprep.mubr.bf16.mxu0 0
    %513 = vmatmul.mubr.bf16.gmra.mrb[0].mxu0 %v342
    %v514 = vpop.f32.mrb[0].mxu0
    %v515 = vadd.f32 0.0, %v514
    %v516 = vpop.f32.mrb[0].mxu0
    %v517 = vpop.f32.mrb[0].mxu0
    %v518 = vadd.f32 0.0, %v517
    %v519 = vpop.f32.mrb[0].mxu0
    %520 = vmatprep.mubr.bf16.mxu0 0
    %521 = vmatmul.mubr.bf16.gmra.mrb[0].mxu0 %v343
    %v522 = vpop.f32.mrb[0].mxu0
    %v523 = vadd.f32 0.0, %v522
    %v524 = vpop.f32.mrb[0].mxu0
    %v525 = vpop.f32.mrb[0].mxu0
    %v526 = vadd.f32 0.0, %v525
    %v527 = vpop.f32.mrb[0].mxu0
    %528 = vmatprep.mubr.bf16.mxu0 0
    %529 = vmatmul.mubr.bf16.gmra.mrb[0].mxu0 %v344
    %v530 = vpop.f32.mrb[0].mxu0
    %v531 = vadd.f32 0.0, %v530
    %v532 = vpop.f32.mrb[0].mxu0
    %v533 = vpop.f32.mrb[0].mxu0
    %v534 = vadd.f32 0.0, %v533
    %v535 = vpop.f32.mrb[0].mxu0
    %536 = vmatprep.mubr.bf16.mxu0 0
    %537 = vmatmul.mubr.bf16.gmra.mrb[0].mxu0 %v345
    %v538 = vpop.f32.mrb[0].mxu0
    %v539 = vadd.f32 0.0, %v538
    %v540 = vpop.f32.mrb[0].mxu0
    %v541 = vpop.f32.mrb[0].mxu0
    %v542 = vadd.f32 0.0, %v541
    %v543 = vpop.f32.mrb[0].mxu0
    %544 = vmatprep.mubr.bf16.mxu0 0
    %545 = vmatmul.mubr.bf16.gmra.mrb[0].mxu0 %v346
    %v546 = vpop.f32.mrb[0].mxu0
    %v547 = vadd.f32 0.0, %v546
    %v548 = vpop.f32.mrb[0].mxu0
    %v549 = vpop.f32.mrb[0].mxu0
    %v550 = vadd.f32 0.0, %v549
    %v551 = vpop.f32.mrb[0].mxu0
    %552 = vmatprep.mubr.bf16.mxu0 0
    %553 = vmatmul.mubr.bf16.gmra.mrb[0].mxu0 %v347
    %v554 = vpop.f32.mrb[0].mxu0
    %v555 = vadd.f32 0.0, %v554
    %v556 = vpop.f32.mrb[0].mxu0
    %v557 = vpop.f32.mrb[0].mxu0
    %v558 = vadd.f32 0.0, %v557
    %v559 = vpop.f32.mrb[0].mxu0
    %560 = vmatprep.mubr.bf16.mxu0 0
    %561 = vmatmul.mubr.bf16.gmra.mrb[0].mxu0 %v348
    %v562 = vpop.f32.mrb[0].mxu0
    %v563 = vadd.f32 0.0, %v562
    %v564 = vpop.f32.mrb[0].mxu0
    %v565 = vpop.f32.mrb[0].mxu0
    %v566 = vadd.f32 0.0, %v565
    %v567 = vpop.f32.mrb[0].mxu0
    %568 = vmatprep.mubr.bf16.mxu0 0
    %569 = vmatmul.mubr.bf16.gmra.mrb[0].mxu0 %v349
    %v570 = vpop.f32.mrb[0].mxu0
    %v571 = vadd.f32 0.0, %v570
    %v572 = vpop.f32.mrb[0].mxu0
    %v573 = vpop.f32.mrb[0].mxu0
    %v574 = vadd.f32 0.0, %v573
    %v575 = vpop.f32.mrb[0].mxu0
    %576 = vdwg.mxu0
    %v577 = vpack.c.bf16 %v454, %v451
    %v578 = vpack.c.bf16 %v462, %v459
    %v579 = vpack.c.bf16 %v470, %v467
    %v580 = vpack.c.bf16 %v478, %v475
    %v581 = vpack.c.bf16 %v486, %v483
    %v582 = vpack.c.bf16 %v494, %v491
    %v583 = vpack.c.bf16 %v502, %v499
    %v584 = vpack.c.bf16 %v510, %v507
    %v585 = vpack.c.bf16 %v518, %v515
    %v586 = vpack.c.bf16 %v526, %v523
    %v587 = vpack.c.bf16 %v534, %v531
    %v588 = vpack.c.bf16 %v542, %v539
    %v589 = vpack.c.bf16 %v550, %v547
    %v590 = vpack.c.bf16 %v558, %v555
    %v591 = vpack.c.bf16 %v566, %v563
    %v592 = vpack.c.bf16 %v574, %v571
    %v593 = vpack.c.bf16 %v367, %v367
    %v595 = vpack.i.b16 %v593, %v593
    %v597 = vlaneseq
    %v598 = vshrl.u32 %v597, 7
    %v599 = vsub.s32 0, %v598
    %v600 = vrot.slane %v595, %v599
    %v601 = vadd.bf16 %v577, %v600
    %v602 = vadd.bf16 %v578, %v600
    %v603 = vadd.bf16 %v579, %v600
    %v604 = vadd.bf16 %v580, %v600
    %v605 = vadd.bf16 %v581, %v600
    %v606 = vadd.bf16 %v582, %v600
    %v607 = vadd.bf16 %v583, %v600
    %v608 = vadd.bf16 %v584, %v600
    %v609 = vadd.bf16 %v585, %v600
    %v610 = vadd.bf16 %v586, %v600
    %v611 = vadd.bf16 %v587, %v600
    %v612 = vadd.bf16 %v588, %v600
    %v613 = vadd.bf16 %v589, %v600
    %v614 = vadd.bf16 %v590, %v600
    %v615 = vadd.bf16 %v591, %v600
    %v616 = vadd.bf16 %v592, %v600
    %v617 = vtanh.bf16.pop %v601
    %v618 = vtanh.bf16.pop %v602
    %v619 = vtanh.bf16.pop %v603
    %v620 = vtanh.bf16.pop %v604
    %v621 = vtanh.bf16.pop %v605
    %v622 = vtanh.bf16.pop %v606
    %v623 = vtanh.bf16.pop %v607
    %v624 = vtanh.bf16.pop %v608
    %v625 = vtanh.bf16.pop %v609
    %v626 = vtanh.bf16.pop %v610
    %v627 = vtanh.bf16.pop %v611
    %v628 = vtanh.bf16.pop %v612
    %v629 = vtanh.bf16.pop %v613
    %v630 = vtanh.bf16.pop %v614
    %v631 = vtanh.bf16.pop %v615
    %v632 = vtanh.bf16.pop %v616
    %s633 = scalar_lea.vmem %s2, 64
    %v634 = vld [vmem:[%s633] sm:$0xf]
    %v635 = vld [vmem:[%s633 + $0x4] sm:$0xf]
    %v636 = vld [vmem:[%s633 + $0x8] sm:$0xf]
    %v637 = vld [vmem:[%s633 + $0xc] sm:$0xf]
    %v638 = vld [vmem:[%s633 + $0x10] sm:$0xf]
    %v639 = vld [vmem:[%s633 + $0x14] sm:$0xf]
    %v640 = vld [vmem:[%s633 + $0x18] sm:$0xf]
    %v641 = vld [vmem:[%s633 + $0x1c] sm:$0xf]
    %v642 = vld [vmem:[%s633 + $0x20] sm:$0xf]
    %v643 = vld [vmem:[%s633 + $0x24] sm:$0xf]
    %v644 = vld [vmem:[%s633 + $0x28] sm:$0xf]
    %v645 = vld [vmem:[%s633 + $0x2c] sm:$0xf]
    %v646 = vld [vmem:[%s633 + $0x30] sm:$0xf]
    %v647 = vld [vmem:[%s633 + $0x34] sm:$0xf]
    %v648 = vld [vmem:[%s633 + $0x38] sm:$0xf]
    %v649 = vld [vmem:[%s633 + $0x3c] sm:$0xf]
    %s650 = scalar_lea.vmem %s3, 2
    %v651 = vld [vmem:[%s650] sm:$0x1]
    %v668 = vunpack.c.l.b16 %v634
    %v669 = vunpack.c.l.b16 %v635
    %v670 = vunpack.c.l.b16 %v636
    %v671 = vunpack.c.l.b16 %v637
    %v672 = vunpack.c.l.b16 %v638
    %v673 = vunpack.c.l.b16 %v639
    %v674 = vunpack.c.l.b16 %v640
    %v675 = vunpack.c.l.b16 %v641
    %v676 = vunpack.c.l.b16 %v642
    %v677 = vunpack.c.l.b16 %v643
    %v678 = vunpack.c.l.b16 %v644
    %v679 = vunpack.c.l.b16 %v645
    %v680 = vunpack.c.l.b16 %v646
    %v681 = vunpack.c.l.b16 %v647
    %v682 = vunpack.c.l.b16 %v648
    %v683 = vunpack.c.l.b16 %v649
    %v684 = vpack.c.b16 %v669, %v668
    %v685 = vpack.c.b16 %v671, %v670
    %v686 = vpack.c.b16 %v673, %v672
    %v687 = vpack.c.b16 %v675, %v674
    %v688 = vpack.c.b16 %v677, %v676
    %v689 = vpack.c.b16 %v679, %v678
    %v690 = vpack.c.b16 %v681, %v680
    %v691 = vpack.c.b16 %v683, %v682
    %700 = vmatprep.subr.bf16.mxu0 0
    %701 = vmatpush1.bf16.msra.mxu0 %v684
    %702 = vmatprep.subr.bf16.mxu0 0
    %703 = vmatpush1.bf16.msra.mxu0 %v685
    %704 = vmatprep.subr.bf16.mxu0 0
    %705 = vmatpush1.bf16.msra.mxu0 %v686
    %706 = vmatprep.subr.bf16.mxu0 0
    %707 = vmatpush1.bf16.msra.mxu0 %v687
    %708 = vmatprep.subr.bf16.mxu0 0
    %709 = vmatpush1.bf16.msra.mxu0 %v688
    %710 = vmatprep.subr.bf16.mxu0 0
    %711 = vmatpush1.bf16.msra.mxu0 %v689
    %712 = vmatprep.subr.bf16.mxu0 0
    %713 = vmatpush1.bf16.msra.mxu0 %v690
    %714 = vmatprep.subr.bf16.mxu0 0
    %715 = vmatpush1.bf16.msra.mxu0 %v691
    %716 = vmatprep.subr.bf16.mxu0 0
    %717 = vmatpush1.bf16.msra.mxu0 0
    %718 = vmatprep.subr.bf16.mxu0 0
    %719 = vmatpush1.bf16.msra.mxu0 0
    %720 = vmatprep.subr.bf16.mxu0 0
    %721 = vmatpush1.bf16.msra.mxu0 0
    %722 = vmatprep.subr.bf16.mxu0 0
    %723 = vmatpush1.bf16.msra.mxu0 0
    %724 = vmatprep.subr.bf16.mxu0 0
    %725 = vmatpush1.bf16.msra.mxu0 0
    %726 = vmatprep.subr.bf16.mxu0 0
    %727 = vmatpush1.bf16.msra.mxu0 0
    %728 = vmatprep.subr.bf16.mxu0 0
    %729 = vmatpush1.bf16.msra.mxu0 0
    %730 = vmatprep.subr.bf16.mxu0 0
    %731 = vmatpush1.bf16.msra.mxu0 0
    %732 = vmatprep.mubr.bf16.mxu0 0
    %733 = vmatmul.mubr.bf16.gmra.mrb[0].mxu0 %v617
    %v734 = vpop.f32.mrb[0].mxu0
    %v735 = vadd.f32 0.0, %v734
    %v736 = vpop.f32.mrb[0].mxu0
    %v737 = vpop.f32.mrb[0].mxu0
    %v738 = vadd.f32 0.0, %v737
    %v739 = vpop.f32.mrb[0].mxu0
    %740 = vmatprep.mubr.bf16.mxu0 0
    %741 = vmatmul.mubr.bf16.gmra.mrb[0].mxu0 %v618
    %v742 = vpop.f32.mrb[0].mxu0
    %v743 = vadd.f32 0.0, %v742
    %v744 = vpop.f32.mrb[0].mxu0
    %v745 = vpop.f32.mrb[0].mxu0
    %v746 = vadd.f32 0.0, %v745
    %v747 = vpop.f32.mrb[0].mxu0
    %748 = vmatprep.mubr.bf16.mxu0 0
    %749 = vmatmul.mubr.bf16.gmra.mrb[0].mxu0 %v619
    %v750 = vpop.f32.mrb[0].mxu0
    %v751 = vadd.f32 0.0, %v750
    %v752 = vpop.f32.mrb[0].mxu0
    %v753 = vpop.f32.mrb[0].mxu0
    %v754 = vadd.f32 0.0, %v753
    %v755 = vpop.f32.mrb[0].mxu0
    %756 = vmatprep.mubr.bf16.mxu0 0
    %757 = vmatmul.mubr.bf16.gmra.mrb[0].mxu0 %v620
    %v758 = vpop.f32.mrb[0].mxu0
    %v759 = vadd.f32 0.0, %v758
    %v760 = vpop.f32.mrb[0].mxu0
    %v761 = vpop.f32.mrb[0].mxu0
    %v762 = vadd.f32 0.0, %v761
    %v763 = vpop.f32.mrb[0].mxu0
    %764 = vmatprep.mubr.bf16.mxu0 0
    %765 = vmatmul.mubr.bf16.gmra.mrb[0].mxu0 %v621
    %v766 = vpop.f32.mrb[0].mxu0
    %v767 = vadd.f32 0.0, %v766
    %v768 = vpop.f32.mrb[0].mxu0
    %v769 = vpop.f32.mrb[0].mxu0
    %v770 = vadd.f32 0.0, %v769
    %v771 = vpop.f32.mrb[0].mxu0
    %772 = vmatprep.mubr.bf16.mxu0 0
    %773 = vmatmul.mubr.bf16.gmra.mrb[0].mxu0 %v622
    %v774 = vpop.f32.mrb[0].mxu0
    %v775 = vadd.f32 0.0, %v774
    %v776 = vpop.f32.mrb[0].mxu0
    %v777 = vpop.f32.mrb[0].mxu0
    %v778 = vadd.f32 0.0, %v777
    %v779 = vpop.f32.mrb[0].mxu0
    %780 = vmatprep.mubr.bf16.mxu0 0
    %781 = vmatmul.mubr.bf16.gmra.mrb[0].mxu0 %v623
    %v782 = vpop.f32.mrb[0].mxu0
    %v783 = vadd.f32 0.0, %v782
    %v784 = vpop.f32.mrb[0].mxu0
    %v785 = vpop.f32.mrb[0].mxu0
    %v786 = vadd.f32 0.0, %v785
    %v787 = vpop.f32.mrb[0].mxu0
    %788 = vmatprep.mubr.bf16.mxu0 0
    %789 = vmatmul.mubr.bf16.gmra.mrb[0].mxu0 %v624
    %v790 = vpop.f32.mrb[0].mxu0
    %v791 = vadd.f32 0.0, %v790
    %v792 = vpop.f32.mrb[0].mxu0
    %v793 = vpop.f32.mrb[0].mxu0
    %v794 = vadd.f32 0.0, %v793
    %v795 = vpop.f32.mrb[0].mxu0
    %796 = vmatprep.mubr.bf16.mxu0 0
    %797 = vmatmul.mubr.bf16.gmra.mrb[0].mxu0 %v625
    %v798 = vpop.f32.mrb[0].mxu0
    %v799 = vadd.f32 0.0, %v798
    %v800 = vpop.f32.mrb[0].mxu0
    %v801 = vpop.f32.mrb[0].mxu0
    %v802 = vadd.f32 0.0, %v801
    %v803 = vpop.f32.mrb[0].mxu0
    %804 = vmatprep.mubr.bf16.mxu0 0
    %805 = vmatmul.mubr.bf16.gmra.mrb[0].mxu0 %v626
    %v806 = vpop.f32.mrb[0].mxu0
    %v807 = vadd.f32 0.0, %v806
    %v808 = vpop.f32.mrb[0].mxu0
    %v809 = vpop.f32.mrb[0].mxu0
    %v810 = vadd.f32 0.0, %v809
    %v811 = vpop.f32.mrb[0].mxu0
    %812 = vmatprep.mubr.bf16.mxu0 0
    %813 = vmatmul.mubr.bf16.gmra.mrb[0].mxu0 %v627
    %v814 = vpop.f32.mrb[0].mxu0
    %v815 = vadd.f32 0.0, %v814
    %v816 = vpop.f32.mrb[0].mxu0
    %v817 = vpop.f32.mrb[0].mxu0
    %v818 = vadd.f32 0.0, %v817
    %v819 = vpop.f32.mrb[0].mxu0
    %820 = vmatprep.mubr.bf16.mxu0 0
    %821 = vmatmul.mubr.bf16.gmra.mrb[0].mxu0 %v628
    %v822 = vpop.f32.mrb[0].mxu0
    %v823 = vadd.f32 0.0, %v822
    %v824 = vpop.f32.mrb[0].mxu0
    %v825 = vpop.f32.mrb[0].mxu0
    %v826 = vadd.f32 0.0, %v825
    %v827 = vpop.f32.mrb[0].mxu0
    %828 = vmatprep.mubr.bf16.mxu0 0
    %829 = vmatmul.mubr.bf16.gmra.mrb[0].mxu0 %v629
    %v830 = vpop.f32.mrb[0].mxu0
    %v831 = vadd.f32 0.0, %v830
    %v832 = vpop.f32.mrb[0].mxu0
    %v833 = vpop.f32.mrb[0].mxu0
    %v834 = vadd.f32 0.0, %v833
    %v835 = vpop.f32.mrb[0].mxu0
    %836 = vmatprep.mubr.bf16.mxu0 0
    %837 = vmatmul.mubr.bf16.gmra.mrb[0].mxu0 %v630
    %v838 = vpop.f32.mrb[0].mxu0
    %v839 = vadd.f32 0.0, %v838
    %v840 = vpop.f32.mrb[0].mxu0
    %v841 = vpop.f32.mrb[0].mxu0
    %v842 = vadd.f32 0.0, %v841
    %v843 = vpop.f32.mrb[0].mxu0
    %844 = vmatprep.mubr.bf16.mxu0 0
    %845 = vmatmul.mubr.bf16.gmra.mrb[0].mxu0 %v631
    %v846 = vpop.f32.mrb[0].mxu0
    %v847 = vadd.f32 0.0, %v846
    %v848 = vpop.f32.mrb[0].mxu0
    %v849 = vpop.f32.mrb[0].mxu0
    %v850 = vadd.f32 0.0, %v849
    %v851 = vpop.f32.mrb[0].mxu0
    %852 = vmatprep.mubr.bf16.mxu0 0
    %853 = vmatmul.mubr.bf16.gmra.mrb[0].mxu0 %v632
    %v854 = vpop.f32.mrb[0].mxu0
    %v855 = vadd.f32 0.0, %v854
    %v856 = vpop.f32.mrb[0].mxu0
    %v857 = vpop.f32.mrb[0].mxu0
    %v858 = vadd.f32 0.0, %v857
    %v859 = vpop.f32.mrb[0].mxu0
    %860 = vdwg.mxu0
    %v861 = vpack.c.bf16 %v738, %v735
    %v862 = vpack.c.bf16 %v746, %v743
    %v863 = vpack.c.bf16 %v754, %v751
    %v864 = vpack.c.bf16 %v762, %v759
    %v865 = vpack.c.bf16 %v770, %v767
    %v866 = vpack.c.bf16 %v778, %v775
    %v867 = vpack.c.bf16 %v786, %v783
    %v868 = vpack.c.bf16 %v794, %v791
    %v869 = vpack.c.bf16 %v802, %v799
    %v870 = vpack.c.bf16 %v810, %v807
    %v871 = vpack.c.bf16 %v818, %v815
    %v872 = vpack.c.bf16 %v826, %v823
    %v873 = vpack.c.bf16 %v834, %v831
    %v874 = vpack.c.bf16 %v842, %v839
    %v875 = vpack.c.bf16 %v850, %v847
    %v876 = vpack.c.bf16 %v858, %v855
    %v877 = vpack.c.bf16 %v651, %v651
    %v879 = vpack.i.b16 %v877, %v877
    %v881 = vlaneseq
    %v882 = vshrl.u32 %v881, 7
    %v883 = vsub.s32 0, %v882
    %v884 = vrot.slane %v879, %v883
    %v885 = vadd.bf16 %v861, %v884
    %v886 = vadd.bf16 %v862, %v884
    %v887 = vadd.bf16 %v863, %v884
    %v888 = vadd.bf16 %v864, %v884
    %v889 = vadd.bf16 %v865, %v884
    %v890 = vadd.bf16 %v866, %v884
    %v891 = vadd.bf16 %v867, %v884
    %v892 = vadd.bf16 %v868, %v884
    %v893 = vadd.bf16 %v869, %v884
    %v894 = vadd.bf16 %v870, %v884
    %v895 = vadd.bf16 %v871, %v884
    %v896 = vadd.bf16 %v872, %v884
    %v897 = vadd.bf16 %v873, %v884
    %v898 = vadd.bf16 %v874, %v884
    %v899 = vadd.bf16 %v875, %v884
    %v900 = vadd.bf16 %v876, %v884
    %v901 = vtanh.bf16.pop %v885
    %v902 = vtanh.bf16.pop %v886
    %v903 = vtanh.bf16.pop %v887
    %v904 = vtanh.bf16.pop %v888
    %v905 = vtanh.bf16.pop %v889
    %v906 = vtanh.bf16.pop %v890
    %v907 = vtanh.bf16.pop %v891
    %v908 = vtanh.bf16.pop %v892
    %v909 = vtanh.bf16.pop %v893
    %v910 = vtanh.bf16.pop %v894
    %v911 = vtanh.bf16.pop %v895
    %v912 = vtanh.bf16.pop %v896
    %v913 = vtanh.bf16.pop %v897
    %v914 = vtanh.bf16.pop %v898
    %v915 = vtanh.bf16.pop %v899
    %v916 = vtanh.bf16.pop %v900
    %s917 = scalar_lea.vmem %s2, 128
    %v918 = vld [vmem:[%s917] sm:$0xf]
    %v919 = vld [vmem:[%s917 + $0x4] sm:$0xf]
    %v920 = vld [vmem:[%s917 + $0x8] sm:$0xf]
    %v921 = vld [vmem:[%s917 + $0xc] sm:$0xf]
    %v922 = vld [vmem:[%s917 + $0x10] sm:$0xf]
    %v923 = vld [vmem:[%s917 + $0x14] sm:$0xf]
    %v924 = vld [vmem:[%s917 + $0x18] sm:$0xf]
    %v925 = vld [vmem:[%s917 + $0x1c] sm:$0xf]
    %v926 = vld [vmem:[%s917 + $0x20] sm:$0xf]
    %v927 = vld [vmem:[%s917 + $0x24] sm:$0xf]
    %v928 = vld [vmem:[%s917 + $0x28] sm:$0xf]
    %v929 = vld [vmem:[%s917 + $0x2c] sm:$0xf]
    %v930 = vld [vmem:[%s917 + $0x30] sm:$0xf]
    %v931 = vld [vmem:[%s917 + $0x34] sm:$0xf]
    %v932 = vld [vmem:[%s917 + $0x38] sm:$0xf]
    %v933 = vld [vmem:[%s917 + $0x3c] sm:$0xf]
    %s934 = scalar_lea.vmem %s3, 3
    %v935 = vld [vmem:[%s934] sm:$0x1]
    %v952 = vunpack.c.l.b16 %v918
    %v953 = vunpack.c.l.b16 %v919
    %v954 = vunpack.c.l.b16 %v920
    %v955 = vunpack.c.l.b16 %v921
    %v956 = vunpack.c.l.b16 %v922
    %v957 = vunpack.c.l.b16 %v923
    %v958 = vunpack.c.l.b16 %v924
    %v959 = vunpack.c.l.b16 %v925
    %v960 = vunpack.c.l.b16 %v926
    %v961 = vunpack.c.l.b16 %v927
    %v962 = vunpack.c.l.b16 %v928
    %v963 = vunpack.c.l.b16 %v929
    %v964 = vunpack.c.l.b16 %v930
    %v965 = vunpack.c.l.b16 %v931
    %v966 = vunpack.c.l.b16 %v932
    %v967 = vunpack.c.l.b16 %v933
    %v968 = vpack.c.b16 %v953, %v952
    %v969 = vpack.c.b16 %v955, %v954
    %v970 = vpack.c.b16 %v957, %v956
    %v971 = vpack.c.b16 %v959, %v958
    %v972 = vpack.c.b16 %v961, %v960
    %v973 = vpack.c.b16 %v963, %v962
    %v974 = vpack.c.b16 %v965, %v964
    %v975 = vpack.c.b16 %v967, %v966
    %984 = vmatprep.subr.bf16.mxu0 0
    %985 = vmatpush1.bf16.msra.mxu0 %v968
    %986 = vmatprep.subr.bf16.mxu0 0
    %987 = vmatpush1.bf16.msra.mxu0 %v969
    %988 = vmatprep.subr.bf16.mxu0 0
    %989 = vmatpush1.bf16.msra.mxu0 %v970
    %990 = vmatprep.subr.bf16.mxu0 0
    %991 = vmatpush1.bf16.msra.mxu0 %v971
    %992 = vmatprep.subr.bf16.mxu0 0
    %993 = vmatpush1.bf16.msra.mxu0 %v972
    %994 = vmatprep.subr.bf16.mxu0 0
    %995 = vmatpush1.bf16.msra.mxu0 %v973
    %996 = vmatprep.subr.bf16.mxu0 0
    %997 = vmatpush1.bf16.msra.mxu0 %v974
    %998 = vmatprep.subr.bf16.mxu0 0
    %999 = vmatpush1.bf16.msra.mxu0 %v975
    %1000 = vmatprep.subr.bf16.mxu0 0
    %1001 = vmatpush1.bf16.msra.mxu0 0
    %1002 = vmatprep.subr.bf16.mxu0 0
    %1003 = vmatpush1.bf16.msra.mxu0 0
    %1004 = vmatprep.subr.bf16.mxu0 0
    %1005 = vmatpush1.bf16.msra.mxu0 0
    %1006 = vmatprep.subr.bf16.mxu0 0
    %1007 = vmatpush1.bf16.msra.mxu0 0
    %1008 = vmatprep.subr.bf16.mxu0 0
    %1009 = vmatpush1.bf16.msra.mxu0 0
    %1010 = vmatprep.subr.bf16.mxu0 0
    %1011 = vmatpush1.bf16.msra.mxu0 0
    %1012 = vmatprep.subr.bf16.mxu0 0
    %1013 = vmatpush1.bf16.msra.mxu0 0
    %1014 = vmatprep.subr.bf16.mxu0 0
    %1015 = vmatpush1.bf16.msra.mxu0 0
    %1016 = vmatprep.mubr.bf16.mxu0 0
    %1017 = vmatmul.mubr.bf16.gmra.mrb[0].mxu0 %v901
    %v1018 = vpop.f32.mrb[0].mxu0
    %v1019 = vadd.f32 0.0, %v1018
    %v1020 = vpop.f32.mrb[0].mxu0
    %v1021 = vpop.f32.mrb[0].mxu0
    %v1022 = vadd.f32 0.0, %v1021
    %v1023 = vpop.f32.mrb[0].mxu0
    %1024 = vmatprep.mubr.bf16.mxu0 0
    %1025 = vmatmul.mubr.bf16.gmra.mrb[0].mxu0 %v902
    %v1026 = vpop.f32.mrb[0].mxu0
    %v1027 = vadd.f32 0.0, %v1026
    %v1028 = vpop.f32.mrb[0].mxu0
    %v1029 = vpop.f32.mrb[0].mxu0
    %v1030 = vadd.f32 0.0, %v1029
    %v1031 = vpop.f32.mrb[0].mxu0
    %1032 = vmatprep.mubr.bf16.mxu0 0
    %1033 = vmatmul.mubr.bf16.gmra.mrb[0].mxu0 %v903
    %v1034 = vpop.f32.mrb[0].mxu0
    %v1035 = vadd.f32 0.0, %v1034
    %v1036 = vpop.f32.mrb[0].mxu0
    %v1037 = vpop.f32.mrb[0].mxu0
    %v1038 = vadd.f32 0.0, %v1037
    %v1039 = vpop.f32.mrb[0].mxu0
    %1040 = vmatprep.mubr.bf16.mxu0 0
    %1041 = vmatmul.mubr.bf16.gmra.mrb[0].mxu0 %v904
    %v1042 = vpop.f32.mrb[0].mxu0
    %v1043 = vadd.f32 0.0, %v1042
    %v1044 = vpop.f32.mrb[0].mxu0
    %v1045 = vpop.f32.mrb[0].mxu0
    %v1046 = vadd.f32 0.0, %v1045
    %v1047 = vpop.f32.mrb[0].mxu0
    %1048 = vmatprep.mubr.bf16.mxu0 0
    %1049 = vmatmul.mubr.bf16.gmra.mrb[0].mxu0 %v905
    %v1050 = vpop.f32.mrb[0].mxu0
    %v1051 = vadd.f32 0.0, %v1050
    %v1052 = vpop.f32.mrb[0].mxu0
    %v1053 = vpop.f32.mrb[0].mxu0
    %v1054 = vadd.f32 0.0, %v1053
    %v1055 = vpop.f32.mrb[0].mxu0
    %1056 = vmatprep.mubr.bf16.mxu0 0
    %1057 = vmatmul.mubr.bf16.gmra.mrb[0].mxu0 %v906
    %v1058 = vpop.f32.mrb[0].mxu0
    %v1059 = vadd.f32 0.0, %v1058
    %v1060 = vpop.f32.mrb[0].mxu0
    %v1061 = vpop.f32.mrb[0].mxu0
    %v1062 = vadd.f32 0.0, %v1061
    %v1063 = vpop.f32.mrb[0].mxu0
    %1064 = vmatprep.mubr.bf16.mxu0 0
    %1065 = vmatmul.mubr.bf16.gmra.mrb[0].mxu0 %v907
    %v1066 = vpop.f32.mrb[0].mxu0
    %v1067 = vadd.f32 0.0, %v1066
    %v1068 = vpop.f32.mrb[0].mxu0
    %v1069 = vpop.f32.mrb[0].mxu0
    %v1070 = vadd.f32 0.0, %v1069
    %v1071 = vpop.f32.mrb[0].mxu0
    %1072 = vmatprep.mubr.bf16.mxu0 0
    %1073 = vmatmul.mubr.bf16.gmra.mrb[0].mxu0 %v908
    %v1074 = vpop.f32.mrb[0].mxu0
    %v1075 = vadd.f32 0.0, %v1074
    %v1076 = vpop.f32.mrb[0].mxu0
    %v1077 = vpop.f32.mrb[0].mxu0
    %v1078 = vadd.f32 0.0, %v1077
    %v1079 = vpop.f32.mrb[0].mxu0
    %1080 = vmatprep.mubr.bf16.mxu0 0
    %1081 = vmatmul.mubr.bf16.gmra.mrb[0].mxu0 %v909
    %v1082 = vpop.f32.mrb[0].mxu0
    %v1083 = vadd.f32 0.0, %v1082
    %v1084 = vpop.f32.mrb[0].mxu0
    %v1085 = vpop.f32.mrb[0].mxu0
    %v1086 = vadd.f32 0.0, %v1085
    %v1087 = vpop.f32.mrb[0].mxu0
    %1088 = vmatprep.mubr.bf16.mxu0 0
    %1089 = vmatmul.mubr.bf16.gmra.mrb[0].mxu0 %v910
    %v1090 = vpop.f32.mrb[0].mxu0
    %v1091 = vadd.f32 0.0, %v1090
    %v1092 = vpop.f32.mrb[0].mxu0
    %v1093 = vpop.f32.mrb[0].mxu0
    %v1094 = vadd.f32 0.0, %v1093
    %v1095 = vpop.f32.mrb[0].mxu0
    %1096 = vmatprep.mubr.bf16.mxu0 0
    %1097 = vmatmul.mubr.bf16.gmra.mrb[0].mxu0 %v911
    %v1098 = vpop.f32.mrb[0].mxu0
    %v1099 = vadd.f32 0.0, %v1098
    %v1100 = vpop.f32.mrb[0].mxu0
    %v1101 = vpop.f32.mrb[0].mxu0
    %v1102 = vadd.f32 0.0, %v1101
    %v1103 = vpop.f32.mrb[0].mxu0
    %1104 = vmatprep.mubr.bf16.mxu0 0
    %1105 = vmatmul.mubr.bf16.gmra.mrb[0].mxu0 %v912
    %v1106 = vpop.f32.mrb[0].mxu0
    %v1107 = vadd.f32 0.0, %v1106
    %v1108 = vpop.f32.mrb[0].mxu0
    %v1109 = vpop.f32.mrb[0].mxu0
    %v1110 = vadd.f32 0.0, %v1109
    %v1111 = vpop.f32.mrb[0].mxu0
    %1112 = vmatprep.mubr.bf16.mxu0 0
    %1113 = vmatmul.mubr.bf16.gmra.mrb[0].mxu0 %v913
    %v1114 = vpop.f32.mrb[0].mxu0
    %v1115 = vadd.f32 0.0, %v1114
    %v1116 = vpop.f32.mrb[0].mxu0
    %v1117 = vpop.f32.mrb[0].mxu0
    %v1118 = vadd.f32 0.0, %v1117
    %v1119 = vpop.f32.mrb[0].mxu0
    %1120 = vmatprep.mubr.bf16.mxu0 0
    %1121 = vmatmul.mubr.bf16.gmra.mrb[0].mxu0 %v914
    %v1122 = vpop.f32.mrb[0].mxu0
    %v1123 = vadd.f32 0.0, %v1122
    %v1124 = vpop.f32.mrb[0].mxu0
    %v1125 = vpop.f32.mrb[0].mxu0
    %v1126 = vadd.f32 0.0, %v1125
    %v1127 = vpop.f32.mrb[0].mxu0
    %1128 = vmatprep.mubr.bf16.mxu0 0
    %1129 = vmatmul.mubr.bf16.gmra.mrb[0].mxu0 %v915
    %v1130 = vpop.f32.mrb[0].mxu0
    %v1131 = vadd.f32 0.0, %v1130
    %v1132 = vpop.f32.mrb[0].mxu0
    %v1133 = vpop.f32.mrb[0].mxu0
    %v1134 = vadd.f32 0.0, %v1133
    %v1135 = vpop.f32.mrb[0].mxu0
    %1136 = vmatprep.mubr.bf16.mxu0 0
    %1137 = vmatmul.mubr.bf16.gmra.mrb[0].mxu0 %v916
    %v1138 = vpop.f32.mrb[0].mxu0
    %v1139 = vadd.f32 0.0, %v1138
    %v1140 = vpop.f32.mrb[0].mxu0
    %v1141 = vpop.f32.mrb[0].mxu0
    %v1142 = vadd.f32 0.0, %v1141
    %v1143 = vpop.f32.mrb[0].mxu0
    %1144 = vdwg.mxu0
    %v1145 = vpack.c.bf16 %v1022, %v1019
    %v1146 = vpack.c.bf16 %v1030, %v1027
    %v1147 = vpack.c.bf16 %v1038, %v1035
    %v1148 = vpack.c.bf16 %v1046, %v1043
    %v1149 = vpack.c.bf16 %v1054, %v1051
    %v1150 = vpack.c.bf16 %v1062, %v1059
    %v1151 = vpack.c.bf16 %v1070, %v1067
    %v1152 = vpack.c.bf16 %v1078, %v1075
    %v1153 = vpack.c.bf16 %v1086, %v1083
    %v1154 = vpack.c.bf16 %v1094, %v1091
    %v1155 = vpack.c.bf16 %v1102, %v1099
    %v1156 = vpack.c.bf16 %v1110, %v1107
    %v1157 = vpack.c.bf16 %v1118, %v1115
    %v1158 = vpack.c.bf16 %v1126, %v1123
    %v1159 = vpack.c.bf16 %v1134, %v1131
    %v1160 = vpack.c.bf16 %v1142, %v1139
    %v1161 = vpack.c.bf16 %v935, %v935
    %v1163 = vpack.i.b16 %v1161, %v1161
    %v1165 = vlaneseq
    %v1166 = vshrl.u32 %v1165, 7
    %v1167 = vsub.s32 0, %v1166
    %v1168 = vrot.slane %v1163, %v1167
    %v1169 = vadd.bf16 %v1145, %v1168
    %v1170 = vadd.bf16 %v1146, %v1168
    %v1171 = vadd.bf16 %v1147, %v1168
    %v1172 = vadd.bf16 %v1148, %v1168
    %v1173 = vadd.bf16 %v1149, %v1168
    %v1174 = vadd.bf16 %v1150, %v1168
    %v1175 = vadd.bf16 %v1151, %v1168
    %v1176 = vadd.bf16 %v1152, %v1168
    %v1177 = vadd.bf16 %v1153, %v1168
    %v1178 = vadd.bf16 %v1154, %v1168
    %v1179 = vadd.bf16 %v1155, %v1168
    %v1180 = vadd.bf16 %v1156, %v1168
    %v1181 = vadd.bf16 %v1157, %v1168
    %v1182 = vadd.bf16 %v1158, %v1168
    %v1183 = vadd.bf16 %v1159, %v1168
    %v1184 = vadd.bf16 %v1160, %v1168
    %v1185 = vtanh.bf16.pop %v1169
    %v1186 = vtanh.bf16.pop %v1170
    %v1187 = vtanh.bf16.pop %v1171
    %v1188 = vtanh.bf16.pop %v1172
    %v1189 = vtanh.bf16.pop %v1173
    %v1190 = vtanh.bf16.pop %v1174
    %v1191 = vtanh.bf16.pop %v1175
    %v1192 = vtanh.bf16.pop %v1176
    %v1193 = vtanh.bf16.pop %v1177
    %v1194 = vtanh.bf16.pop %v1178
    %v1195 = vtanh.bf16.pop %v1179
    %v1196 = vtanh.bf16.pop %v1180
    %v1197 = vtanh.bf16.pop %v1181
    %v1198 = vtanh.bf16.pop %v1182
    %v1199 = vtanh.bf16.pop %v1183
    %v1200 = vtanh.bf16.pop %v1184
    %s1201 = scalar_lea.vmem %s2, 192
    %v1202 = vld [vmem:[%s1201] sm:$0xf]
    %v1203 = vld [vmem:[%s1201 + $0x4] sm:$0xf]
    %v1204 = vld [vmem:[%s1201 + $0x8] sm:$0xf]
    %v1205 = vld [vmem:[%s1201 + $0xc] sm:$0xf]
    %v1206 = vld [vmem:[%s1201 + $0x10] sm:$0xf]
    %v1207 = vld [vmem:[%s1201 + $0x14] sm:$0xf]
    %v1208 = vld [vmem:[%s1201 + $0x18] sm:$0xf]
    %v1209 = vld [vmem:[%s1201 + $0x1c] sm:$0xf]
    %v1210 = vld [vmem:[%s1201 + $0x20] sm:$0xf]
    %v1211 = vld [vmem:[%s1201 + $0x24] sm:$0xf]
    %v1212 = vld [vmem:[%s1201 + $0x28] sm:$0xf]
    %v1213 = vld [vmem:[%s1201 + $0x2c] sm:$0xf]
    %v1214 = vld [vmem:[%s1201 + $0x30] sm:$0xf]
    %v1215 = vld [vmem:[%s1201 + $0x34] sm:$0xf]
    %v1216 = vld [vmem:[%s1201 + $0x38] sm:$0xf]
    %v1217 = vld [vmem:[%s1201 + $0x3c] sm:$0xf]
    %s1218 = scalar_lea.vmem %s3, 4
    %v1219 = vld [vmem:[%s1218] sm:$0x1]
    %v1236 = vunpack.c.l.b16 %v1202
    %v1237 = vunpack.c.l.b16 %v1203
    %v1238 = vunpack.c.l.b16 %v1204
    %v1239 = vunpack.c.l.b16 %v1205
    %v1240 = vunpack.c.l.b16 %v1206
    %v1241 = vunpack.c.l.b16 %v1207
    %v1242 = vunpack.c.l.b16 %v1208
    %v1243 = vunpack.c.l.b16 %v1209
    %v1244 = vunpack.c.l.b16 %v1210
    %v1245 = vunpack.c.l.b16 %v1211
    %v1246 = vunpack.c.l.b16 %v1212
    %v1247 = vunpack.c.l.b16 %v1213
    %v1248 = vunpack.c.l.b16 %v1214
    %v1249 = vunpack.c.l.b16 %v1215
    %v1250 = vunpack.c.l.b16 %v1216
    %v1251 = vunpack.c.l.b16 %v1217
    %v1252 = vpack.c.b16 %v1237, %v1236
    %v1253 = vpack.c.b16 %v1239, %v1238
    %v1254 = vpack.c.b16 %v1241, %v1240
    %v1255 = vpack.c.b16 %v1243, %v1242
    %v1256 = vpack.c.b16 %v1245, %v1244
    %v1257 = vpack.c.b16 %v1247, %v1246
    %v1258 = vpack.c.b16 %v1249, %v1248
    %v1259 = vpack.c.b16 %v1251, %v1250
    %1268 = vmatprep.subr.bf16.mxu0 0
    %1269 = vmatpush1.bf16.msra.mxu0 %v1252
    %1270 = vmatprep.subr.bf16.mxu0 0
    %1271 = vmatpush1.bf16.msra.mxu0 %v1253
    %1272 = vmatprep.subr.bf16.mxu0 0
    %1273 = vmatpush1.bf16.msra.mxu0 %v1254
    %1274 = vmatprep.subr.bf16.mxu0 0
    %1275 = vmatpush1.bf16.msra.mxu0 %v1255
    %1276 = vmatprep.subr.bf16.mxu0 0
    %1277 = vmatpush1.bf16.msra.mxu0 %v1256
    %1278 = vmatprep.subr.bf16.mxu0 0
    %1279 = vmatpush1.bf16.msra.mxu0 %v1257
    %1280 = vmatprep.subr.bf16.mxu0 0
    %1281 = vmatpush1.bf16.msra.mxu0 %v1258
    %1282 = vmatprep.subr.bf16.mxu0 0
    %1283 = vmatpush1.bf16.msra.mxu0 %v1259
    %1284 = vmatprep.subr.bf16.mxu0 0
    %1285 = vmatpush1.bf16.msra.mxu0 0
    %1286 = vmatprep.subr.bf16.mxu0 0
    %1287 = vmatpush1.bf16.msra.mxu0 0
    %1288 = vmatprep.subr.bf16.mxu0 0
    %1289 = vmatpush1.bf16.msra.mxu0 0
    %1290 = vmatprep.subr.bf16.mxu0 0
    %1291 = vmatpush1.bf16.msra.mxu0 0
    %1292 = vmatprep.subr.bf16.mxu0 0
    %1293 = vmatpush1.bf16.msra.mxu0 0
    %1294 = vmatprep.subr.bf16.mxu0 0
    %1295 = vmatpush1.bf16.msra.mxu0 0
    %1296 = vmatprep.subr.bf16.mxu0 0
    %1297 = vmatpush1.bf16.msra.mxu0 0
    %1298 = vmatprep.subr.bf16.mxu0 0
    %1299 = vmatpush1.bf16.msra.mxu0 0
    %1300 = vmatprep.mubr.bf16.mxu0 0
    %1301 = vmatmul.mubr.bf16.gmra.mrb[0].mxu0 %v1185
    %v1302 = vpop.f32.mrb[0].mxu0
    %v1303 = vadd.f32 0.0, %v1302
    %v1304 = vpop.f32.mrb[0].mxu0
    %v1305 = vpop.f32.mrb[0].mxu0
    %v1306 = vadd.f32 0.0, %v1305
    %v1307 = vpop.f32.mrb[0].mxu0
    %1308 = vmatprep.mubr.bf16.mxu0 0
    %1309 = vmatmul.mubr.bf16.gmra.mrb[0].mxu0 %v1186
    %v1310 = vpop.f32.mrb[0].mxu0
    %v1311 = vadd.f32 0.0, %v1310
    %v1312 = vpop.f32.mrb[0].mxu0
    %v1313 = vpop.f32.mrb[0].mxu0
    %v1314 = vadd.f32 0.0, %v1313
    %v1315 = vpop.f32.mrb[0].mxu0
    %1316 = vmatprep.mubr.bf16.mxu0 0
    %1317 = vmatmul.mubr.bf16.gmra.mrb[0].mxu0 %v1187
    %v1318 = vpop.f32.mrb[0].mxu0
    %v1319 = vadd.f32 0.0, %v1318
    %v1320 = vpop.f32.mrb[0].mxu0
    %v1321 = vpop.f32.mrb[0].mxu0
    %v1322 = vadd.f32 0.0, %v1321
    %v1323 = vpop.f32.mrb[0].mxu0
    %1324 = vmatprep.mubr.bf16.mxu0 0
    %1325 = vmatmul.mubr.bf16.gmra.mrb[0].mxu0 %v1188
    %v1326 = vpop.f32.mrb[0].mxu0
    %v1327 = vadd.f32 0.0, %v1326
    %v1328 = vpop.f32.mrb[0].mxu0
    %v1329 = vpop.f32.mrb[0].mxu0
    %v1330 = vadd.f32 0.0, %v1329
    %v1331 = vpop.f32.mrb[0].mxu0
    %1332 = vmatprep.mubr.bf16.mxu0 0
    %1333 = vmatmul.mubr.bf16.gmra.mrb[0].mxu0 %v1189
    %v1334 = vpop.f32.mrb[0].mxu0
    %v1335 = vadd.f32 0.0, %v1334
    %v1336 = vpop.f32.mrb[0].mxu0
    %v1337 = vpop.f32.mrb[0].mxu0
    %v1338 = vadd.f32 0.0, %v1337
    %v1339 = vpop.f32.mrb[0].mxu0
    %1340 = vmatprep.mubr.bf16.mxu0 0
    %1341 = vmatmul.mubr.bf16.gmra.mrb[0].mxu0 %v1190
    %v1342 = vpop.f32.mrb[0].mxu0
    %v1343 = vadd.f32 0.0, %v1342
    %v1344 = vpop.f32.mrb[0].mxu0
    %v1345 = vpop.f32.mrb[0].mxu0
    %v1346 = vadd.f32 0.0, %v1345
    %v1347 = vpop.f32.mrb[0].mxu0
    %1348 = vmatprep.mubr.bf16.mxu0 0
    %1349 = vmatmul.mubr.bf16.gmra.mrb[0].mxu0 %v1191
    %v1350 = vpop.f32.mrb[0].mxu0
    %v1351 = vadd.f32 0.0, %v1350
    %v1352 = vpop.f32.mrb[0].mxu0
    %v1353 = vpop.f32.mrb[0].mxu0
    %v1354 = vadd.f32 0.0, %v1353
    %v1355 = vpop.f32.mrb[0].mxu0
    %1356 = vmatprep.mubr.bf16.mxu0 0
    %1357 = vmatmul.mubr.bf16.gmra.mrb[0].mxu0 %v1192
    %v1358 = vpop.f32.mrb[0].mxu0
    %v1359 = vadd.f32 0.0, %v1358
    %v1360 = vpop.f32.mrb[0].mxu0
    %v1361 = vpop.f32.mrb[0].mxu0
    %v1362 = vadd.f32 0.0, %v1361
    %v1363 = vpop.f32.mrb[0].mxu0
    %1364 = vmatprep.mubr.bf16.mxu0 0
    %1365 = vmatmul.mubr.bf16.gmra.mrb[0].mxu0 %v1193
    %v1366 = vpop.f32.mrb[0].mxu0
    %v1367 = vadd.f32 0.0, %v1366
    %v1368 = vpop.f32.mrb[0].mxu0
    %v1369 = vpop.f32.mrb[0].mxu0
    %v1370 = vadd.f32 0.0, %v1369
    %v1371 = vpop.f32.mrb[0].mxu0
    %1372 = vmatprep.mubr.bf16.mxu0 0
    %1373 = vmatmul.mubr.bf16.gmra.mrb[0].mxu0 %v1194
    %v1374 = vpop.f32.mrb[0].mxu0
    %v1375 = vadd.f32 0.0, %v1374
    %v1376 = vpop.f32.mrb[0].mxu0
    %v1377 = vpop.f32.mrb[0].mxu0
    %v1378 = vadd.f32 0.0, %v1377
    %v1379 = vpop.f32.mrb[0].mxu0
    %1380 = vmatprep.mubr.bf16.mxu0 0
    %1381 = vmatmul.mubr.bf16.gmra.mrb[0].mxu0 %v1195
    %v1382 = vpop.f32.mrb[0].mxu0
    %v1383 = vadd.f32 0.0, %v1382
    %v1384 = vpop.f32.mrb[0].mxu0
    %v1385 = vpop.f32.mrb[0].mxu0
    %v1386 = vadd.f32 0.0, %v1385
    %v1387 = vpop.f32.mrb[0].mxu0
    %1388 = vmatprep.mubr.bf16.mxu0 0
    %1389 = vmatmul.mubr.bf16.gmra.mrb[0].mxu0 %v1196
    %v1390 = vpop.f32.mrb[0].mxu0
    %v1391 = vadd.f32 0.0, %v1390
    %v1392 = vpop.f32.mrb[0].mxu0
    %v1393 = vpop.f32.mrb[0].mxu0
    %v1394 = vadd.f32 0.0, %v1393
    %v1395 = vpop.f32.mrb[0].mxu0
    %1396 = vmatprep.mubr.bf16.mxu0 0
    %1397 = vmatmul.mubr.bf16.gmra.mrb[0].mxu0 %v1197
    %v1398 = vpop.f32.mrb[0].mxu0
    %v1399 = vadd.f32 0.0, %v1398
    %v1400 = vpop.f32.mrb[0].mxu0
    %v1401 = vpop.f32.mrb[0].mxu0
    %v1402 = vadd.f32 0.0, %v1401
    %v1403 = vpop.f32.mrb[0].mxu0
    %1404 = vmatprep.mubr.bf16.mxu0 0
    %1405 = vmatmul.mubr.bf16.gmra.mrb[0].mxu0 %v1198
    %v1406 = vpop.f32.mrb[0].mxu0
    %v1407 = vadd.f32 0.0, %v1406
    %v1408 = vpop.f32.mrb[0].mxu0
    %v1409 = vpop.f32.mrb[0].mxu0
    %v1410 = vadd.f32 0.0, %v1409
    %v1411 = vpop.f32.mrb[0].mxu0
    %1412 = vmatprep.mubr.bf16.mxu0 0
    %1413 = vmatmul.mubr.bf16.gmra.mrb[0].mxu0 %v1199
    %v1414 = vpop.f32.mrb[0].mxu0
    %v1415 = vadd.f32 0.0, %v1414
    %v1416 = vpop.f32.mrb[0].mxu0
    %v1417 = vpop.f32.mrb[0].mxu0
    %v1418 = vadd.f32 0.0, %v1417
    %v1419 = vpop.f32.mrb[0].mxu0
    %1420 = vmatprep.mubr.bf16.mxu0 0
    %1421 = vmatmul.mubr.bf16.gmra.mrb[0].mxu0 %v1200
    %v1422 = vpop.f32.mrb[0].mxu0
    %v1423 = vadd.f32 0.0, %v1422
    %v1424 = vpop.f32.mrb[0].mxu0
    %v1425 = vpop.f32.mrb[0].mxu0
    %v1426 = vadd.f32 0.0, %v1425
    %v1427 = vpop.f32.mrb[0].mxu0
    %1428 = vdwg.mxu0
    %v1429 = vpack.c.bf16 %v1306, %v1303
    %v1430 = vpack.c.bf16 %v1314, %v1311
    %v1431 = vpack.c.bf16 %v1322, %v1319
    %v1432 = vpack.c.bf16 %v1330, %v1327
    %v1433 = vpack.c.bf16 %v1338, %v1335
    %v1434 = vpack.c.bf16 %v1346, %v1343
    %v1435 = vpack.c.bf16 %v1354, %v1351
    %v1436 = vpack.c.bf16 %v1362, %v1359
    %v1437 = vpack.c.bf16 %v1370, %v1367
    %v1438 = vpack.c.bf16 %v1378, %v1375
    %v1439 = vpack.c.bf16 %v1386, %v1383
    %v1440 = vpack.c.bf16 %v1394, %v1391
    %v1441 = vpack.c.bf16 %v1402, %v1399
    %v1442 = vpack.c.bf16 %v1410, %v1407
    %v1443 = vpack.c.bf16 %v1418, %v1415
    %v1444 = vpack.c.bf16 %v1426, %v1423
    %v1445 = vpack.c.bf16 %v1219, %v1219
    %v1447 = vpack.i.b16 %v1445, %v1445
    %v1449 = vlaneseq
    %v1450 = vshrl.u32 %v1449, 7
    %v1451 = vsub.s32 0, %v1450
    %v1452 = vrot.slane %v1447, %v1451
    %v1453 = vadd.bf16 %v1429, %v1452
    %v1454 = vadd.bf16 %v1430, %v1452
    %v1455 = vadd.bf16 %v1431, %v1452
    %v1456 = vadd.bf16 %v1432, %v1452
    %v1457 = vadd.bf16 %v1433, %v1452
    %v1458 = vadd.bf16 %v1434, %v1452
    %v1459 = vadd.bf16 %v1435, %v1452
    %v1460 = vadd.bf16 %v1436, %v1452
    %v1461 = vadd.bf16 %v1437, %v1452
    %v1462 = vadd.bf16 %v1438, %v1452
    %v1463 = vadd.bf16 %v1439, %v1452
    %v1464 = vadd.bf16 %v1440, %v1452
    %v1465 = vadd.bf16 %v1441, %v1452
    %v1466 = vadd.bf16 %v1442, %v1452
    %v1467 = vadd.bf16 %v1443, %v1452
    %v1468 = vadd.bf16 %v1444, %v1452
    %v1469 = vtanh.bf16.pop %v1453
    %v1470 = vtanh.bf16.pop %v1454
    %v1471 = vtanh.bf16.pop %v1455
    %v1472 = vtanh.bf16.pop %v1456
    %v1473 = vtanh.bf16.pop %v1457
    %v1474 = vtanh.bf16.pop %v1458
    %v1475 = vtanh.bf16.pop %v1459
    %v1476 = vtanh.bf16.pop %v1460
    %v1477 = vtanh.bf16.pop %v1461
    %v1478 = vtanh.bf16.pop %v1462
    %v1479 = vtanh.bf16.pop %v1463
    %v1480 = vtanh.bf16.pop %v1464
    %v1481 = vtanh.bf16.pop %v1465
    %v1482 = vtanh.bf16.pop %v1466
    %v1483 = vtanh.bf16.pop %v1467
    %v1484 = vtanh.bf16.pop %v1468
    %s1485 = scalar_lea.vmem %s2, 256
    %v1486 = vld [vmem:[%s1485] sm:$0xf]
    %v1487 = vld [vmem:[%s1485 + $0x4] sm:$0xf]
    %v1488 = vld [vmem:[%s1485 + $0x8] sm:$0xf]
    %v1489 = vld [vmem:[%s1485 + $0xc] sm:$0xf]
    %v1490 = vld [vmem:[%s1485 + $0x10] sm:$0xf]
    %v1491 = vld [vmem:[%s1485 + $0x14] sm:$0xf]
    %v1492 = vld [vmem:[%s1485 + $0x18] sm:$0xf]
    %v1493 = vld [vmem:[%s1485 + $0x1c] sm:$0xf]
    %v1494 = vld [vmem:[%s1485 + $0x20] sm:$0xf]
    %v1495 = vld [vmem:[%s1485 + $0x24] sm:$0xf]
    %v1496 = vld [vmem:[%s1485 + $0x28] sm:$0xf]
    %v1497 = vld [vmem:[%s1485 + $0x2c] sm:$0xf]
    %v1498 = vld [vmem:[%s1485 + $0x30] sm:$0xf]
    %v1499 = vld [vmem:[%s1485 + $0x34] sm:$0xf]
    %v1500 = vld [vmem:[%s1485 + $0x38] sm:$0xf]
    %v1501 = vld [vmem:[%s1485 + $0x3c] sm:$0xf]
    %s1502 = scalar_lea.vmem %s3, 5
    %v1503 = vld [vmem:[%s1502] sm:$0x1]
    %v1520 = vunpack.c.l.b16 %v1486
    %v1521 = vunpack.c.l.b16 %v1487
    %v1522 = vunpack.c.l.b16 %v1488
    %v1523 = vunpack.c.l.b16 %v1489
    %v1524 = vunpack.c.l.b16 %v1490
    %v1525 = vunpack.c.l.b16 %v1491
    %v1526 = vunpack.c.l.b16 %v1492
    %v1527 = vunpack.c.l.b16 %v1493
    %v1528 = vunpack.c.l.b16 %v1494
    %v1529 = vunpack.c.l.b16 %v1495
    %v1530 = vunpack.c.l.b16 %v1496
    %v1531 = vunpack.c.l.b16 %v1497
    %v1532 = vunpack.c.l.b16 %v1498
    %v1533 = vunpack.c.l.b16 %v1499
    %v1534 = vunpack.c.l.b16 %v1500
    %v1535 = vunpack.c.l.b16 %v1501
    %v1536 = vpack.c.b16 %v1521, %v1520
    %v1537 = vpack.c.b16 %v1523, %v1522
    %v1538 = vpack.c.b16 %v1525, %v1524
    %v1539 = vpack.c.b16 %v1527, %v1526
    %v1540 = vpack.c.b16 %v1529, %v1528
    %v1541 = vpack.c.b16 %v1531, %v1530
    %v1542 = vpack.c.b16 %v1533, %v1532
    %v1543 = vpack.c.b16 %v1535, %v1534
    %1552 = vmatprep.subr.bf16.mxu0 0
    %1553 = vmatpush1.bf16.msra.mxu0 %v1536
    %1554 = vmatprep.subr.bf16.mxu0 0
    %1555 = vmatpush1.bf16.msra.mxu0 %v1537
    %1556 = vmatprep.subr.bf16.mxu0 0
    %1557 = vmatpush1.bf16.msra.mxu0 %v1538
    %1558 = vmatprep.subr.bf16.mxu0 0
    %1559 = vmatpush1.bf16.msra.mxu0 %v1539
    %1560 = vmatprep.subr.bf16.mxu0 0
    %1561 = vmatpush1.bf16.msra.mxu0 %v1540
    %1562 = vmatprep.subr.bf16.mxu0 0
    %1563 = vmatpush1.bf16.msra.mxu0 %v1541
    %1564 = vmatprep.subr.bf16.mxu0 0
    %1565 = vmatpush1.bf16.msra.mxu0 %v1542
    %1566 = vmatprep.subr.bf16.mxu0 0
    %1567 = vmatpush1.bf16.msra.mxu0 %v1543
    %1568 = vmatprep.subr.bf16.mxu0 0
    %1569 = vmatpush1.bf16.msra.mxu0 0
    %1570 = vmatprep.subr.bf16.mxu0 0
    %1571 = vmatpush1.bf16.msra.mxu0 0
    %1572 = vmatprep.subr.bf16.mxu0 0
    %1573 = vmatpush1.bf16.msra.mxu0 0
    %1574 = vmatprep.subr.bf16.mxu0 0
    %1575 = vmatpush1.bf16.msra.mxu0 0
    %1576 = vmatprep.subr.bf16.mxu0 0
    %1577 = vmatpush1.bf16.msra.mxu0 0
    %1578 = vmatprep.subr.bf16.mxu0 0
    %1579 = vmatpush1.bf16.msra.mxu0 0
    %1580 = vmatprep.subr.bf16.mxu0 0
    %1581 = vmatpush1.bf16.msra.mxu0 0
    %1582 = vmatprep.subr.bf16.mxu0 0
    %1583 = vmatpush1.bf16.msra.mxu0 0
    %1584 = vmatprep.mubr.bf16.mxu0 0
    %1585 = vmatmul.mubr.bf16.gmra.mrb[0].mxu0 %v1469
    %v1586 = vpop.f32.mrb[0].mxu0
    %v1587 = vadd.f32 0.0, %v1586
    %v1588 = vpop.f32.mrb[0].mxu0
    %v1589 = vpop.f32.mrb[0].mxu0
    %v1590 = vadd.f32 0.0, %v1589
    %v1591 = vpop.f32.mrb[0].mxu0
    %1592 = vmatprep.mubr.bf16.mxu0 0
    %1593 = vmatmul.mubr.bf16.gmra.mrb[0].mxu0 %v1470
    %v1594 = vpop.f32.mrb[0].mxu0
    %v1595 = vadd.f32 0.0, %v1594
    %v1596 = vpop.f32.mrb[0].mxu0
    %v1597 = vpop.f32.mrb[0].mxu0
    %v1598 = vadd.f32 0.0, %v1597
    %v1599 = vpop.f32.mrb[0].mxu0
    %1600 = vmatprep.mubr.bf16.mxu0 0
    %1601 = vmatmul.mubr.bf16.gmra.mrb[0].mxu0 %v1471
    %v1602 = vpop.f32.mrb[0].mxu0
    %v1603 = vadd.f32 0.0, %v1602
    %v1604 = vpop.f32.mrb[0].mxu0
    %v1605 = vpop.f32.mrb[0].mxu0
    %v1606 = vadd.f32 0.0, %v1605
    %v1607 = vpop.f32.mrb[0].mxu0
    %1608 = vmatprep.mubr.bf16.mxu0 0
    %1609 = vmatmul.mubr.bf16.gmra.mrb[0].mxu0 %v1472
    %v1610 = vpop.f32.mrb[0].mxu0
    %v1611 = vadd.f32 0.0, %v1610
    %v1612 = vpop.f32.mrb[0].mxu0
    %v1613 = vpop.f32.mrb[0].mxu0
    %v1614 = vadd.f32 0.0, %v1613
    %v1615 = vpop.f32.mrb[0].mxu0
    %1616 = vmatprep.mubr.bf16.mxu0 0
    %1617 = vmatmul.mubr.bf16.gmra.mrb[0].mxu0 %v1473
    %v1618 = vpop.f32.mrb[0].mxu0
    %v1619 = vadd.f32 0.0, %v1618
    %v1620 = vpop.f32.mrb[0].mxu0
    %v1621 = vpop.f32.mrb[0].mxu0
    %v1622 = vadd.f32 0.0, %v1621
    %v1623 = vpop.f32.mrb[0].mxu0
    %1624 = vmatprep.mubr.bf16.mxu0 0
    %1625 = vmatmul.mubr.bf16.gmra.mrb[0].mxu0 %v1474
    %v1626 = vpop.f32.mrb[0].mxu0
    %v1627 = vadd.f32 0.0, %v1626
    %v1628 = vpop.f32.mrb[0].mxu0
    %v1629 = vpop.f32.mrb[0].mxu0
    %v1630 = vadd.f32 0.0, %v1629
    %v1631 = vpop.f32.mrb[0].mxu0
    %1632 = vmatprep.mubr.bf16.mxu0 0
    %1633 = vmatmul.mubr.bf16.gmra.mrb[0].mxu0 %v1475
    %v1634 = vpop.f32.mrb[0].mxu0
    %v1635 = vadd.f32 0.0, %v1634
    %v1636 = vpop.f32.mrb[0].mxu0
    %v1637 = vpop.f32.mrb[0].mxu0
    %v1638 = vadd.f32 0.0, %v1637
    %v1639 = vpop.f32.mrb[0].mxu0
    %1640 = vmatprep.mubr.bf16.mxu0 0
    %1641 = vmatmul.mubr.bf16.gmra.mrb[0].mxu0 %v1476
    %v1642 = vpop.f32.mrb[0].mxu0
    %v1643 = vadd.f32 0.0, %v1642
    %v1644 = vpop.f32.mrb[0].mxu0
    %v1645 = vpop.f32.mrb[0].mxu0
    %v1646 = vadd.f32 0.0, %v1645
    %v1647 = vpop.f32.mrb[0].mxu0
    %1648 = vmatprep.mubr.bf16.mxu0 0
    %1649 = vmatmul.mubr.bf16.gmra.mrb[0].mxu0 %v1477
    %v1650 = vpop.f32.mrb[0].mxu0
    %v1651 = vadd.f32 0.0, %v1650
    %v1652 = vpop.f32.mrb[0].mxu0
    %v1653 = vpop.f32.mrb[0].mxu0
    %v1654 = vadd.f32 0.0, %v1653
    %v1655 = vpop.f32.mrb[0].mxu0
    %1656 = vmatprep.mubr.bf16.mxu0 0
    %1657 = vmatmul.mubr.bf16.gmra.mrb[0].mxu0 %v1478
    %v1658 = vpop.f32.mrb[0].mxu0
    %v1659 = vadd.f32 0.0, %v1658
    %v1660 = vpop.f32.mrb[0].mxu0
    %v1661 = vpop.f32.mrb[0].mxu0
    %v1662 = vadd.f32 0.0, %v1661
    %v1663 = vpop.f32.mrb[0].mxu0
    %1664 = vmatprep.mubr.bf16.mxu0 0
    %1665 = vmatmul.mubr.bf16.gmra.mrb[0].mxu0 %v1479
    %v1666 = vpop.f32.mrb[0].mxu0
    %v1667 = vadd.f32 0.0, %v1666
    %v1668 = vpop.f32.mrb[0].mxu0
    %v1669 = vpop.f32.mrb[0].mxu0
    %v1670 = vadd.f32 0.0, %v1669
    %v1671 = vpop.f32.mrb[0].mxu0
    %1672 = vmatprep.mubr.bf16.mxu0 0
    %1673 = vmatmul.mubr.bf16.gmra.mrb[0].mxu0 %v1480
    %v1674 = vpop.f32.mrb[0].mxu0
    %v1675 = vadd.f32 0.0, %v1674
    %v1676 = vpop.f32.mrb[0].mxu0
    %v1677 = vpop.f32.mrb[0].mxu0
    %v1678 = vadd.f32 0.0, %v1677
    %v1679 = vpop.f32.mrb[0].mxu0
    %1680 = vmatprep.mubr.bf16.mxu0 0
    %1681 = vmatmul.mubr.bf16.gmra.mrb[0].mxu0 %v1481
    %v1682 = vpop.f32.mrb[0].mxu0
    %v1683 = vadd.f32 0.0, %v1682
    %v1684 = vpop.f32.mrb[0].mxu0
    %v1685 = vpop.f32.mrb[0].mxu0
    %v1686 = vadd.f32 0.0, %v1685
    %v1687 = vpop.f32.mrb[0].mxu0
    %1688 = vmatprep.mubr.bf16.mxu0 0
    %1689 = vmatmul.mubr.bf16.gmra.mrb[0].mxu0 %v1482
    %v1690 = vpop.f32.mrb[0].mxu0
    %v1691 = vadd.f32 0.0, %v1690
    %v1692 = vpop.f32.mrb[0].mxu0
    %v1693 = vpop.f32.mrb[0].mxu0
    %v1694 = vadd.f32 0.0, %v1693
    %v1695 = vpop.f32.mrb[0].mxu0
    %1696 = vmatprep.mubr.bf16.mxu0 0
    %1697 = vmatmul.mubr.bf16.gmra.mrb[0].mxu0 %v1483
    %v1698 = vpop.f32.mrb[0].mxu0
    %v1699 = vadd.f32 0.0, %v1698
    %v1700 = vpop.f32.mrb[0].mxu0
    %v1701 = vpop.f32.mrb[0].mxu0
    %v1702 = vadd.f32 0.0, %v1701
    %v1703 = vpop.f32.mrb[0].mxu0
    %1704 = vmatprep.mubr.bf16.mxu0 0
    %1705 = vmatmul.mubr.bf16.gmra.mrb[0].mxu0 %v1484
    %v1706 = vpop.f32.mrb[0].mxu0
    %v1707 = vadd.f32 0.0, %v1706
    %v1708 = vpop.f32.mrb[0].mxu0
    %v1709 = vpop.f32.mrb[0].mxu0
    %v1710 = vadd.f32 0.0, %v1709
    %v1711 = vpop.f32.mrb[0].mxu0
    %1712 = vdwg.mxu0
    %v1713 = vpack.c.bf16 %v1590, %v1587
    %v1714 = vpack.c.bf16 %v1598, %v1595
    %v1715 = vpack.c.bf16 %v1606, %v1603
    %v1716 = vpack.c.bf16 %v1614, %v1611
    %v1717 = vpack.c.bf16 %v1622, %v1619
    %v1718 = vpack.c.bf16 %v1630, %v1627
    %v1719 = vpack.c.bf16 %v1638, %v1635
    %v1720 = vpack.c.bf16 %v1646, %v1643
    %v1721 = vpack.c.bf16 %v1654, %v1651
    %v1722 = vpack.c.bf16 %v1662, %v1659
    %v1723 = vpack.c.bf16 %v1670, %v1667
    %v1724 = vpack.c.bf16 %v1678, %v1675
    %v1725 = vpack.c.bf16 %v1686, %v1683
    %v1726 = vpack.c.bf16 %v1694, %v1691
    %v1727 = vpack.c.bf16 %v1702, %v1699
    %v1728 = vpack.c.bf16 %v1710, %v1707
    %v1729 = vpack.c.bf16 %v1503, %v1503
    %v1731 = vpack.i.b16 %v1729, %v1729
    %v1733 = vlaneseq
    %v1734 = vshrl.u32 %v1733, 7
    %v1735 = vsub.s32 0, %v1734
    %v1736 = vrot.slane %v1731, %v1735
    %v1737 = vadd.bf16 %v1713, %v1736
    %v1738 = vadd.bf16 %v1714, %v1736
    %v1739 = vadd.bf16 %v1715, %v1736
    %v1740 = vadd.bf16 %v1716, %v1736
    %v1741 = vadd.bf16 %v1717, %v1736
    %v1742 = vadd.bf16 %v1718, %v1736
    %v1743 = vadd.bf16 %v1719, %v1736
    %v1744 = vadd.bf16 %v1720, %v1736
    %v1745 = vadd.bf16 %v1721, %v1736
    %v1746 = vadd.bf16 %v1722, %v1736
    %v1747 = vadd.bf16 %v1723, %v1736
    %v1748 = vadd.bf16 %v1724, %v1736
    %v1749 = vadd.bf16 %v1725, %v1736
    %v1750 = vadd.bf16 %v1726, %v1736
    %v1751 = vadd.bf16 %v1727, %v1736
    %v1752 = vadd.bf16 %v1728, %v1736
    %v1753 = vtanh.bf16.pop %v1737
    %v1754 = vtanh.bf16.pop %v1738
    %v1755 = vtanh.bf16.pop %v1739
    %v1756 = vtanh.bf16.pop %v1740
    %v1757 = vtanh.bf16.pop %v1741
    %v1758 = vtanh.bf16.pop %v1742
    %v1759 = vtanh.bf16.pop %v1743
    %v1760 = vtanh.bf16.pop %v1744
    %v1761 = vtanh.bf16.pop %v1745
    %v1762 = vtanh.bf16.pop %v1746
    %v1763 = vtanh.bf16.pop %v1747
    %v1764 = vtanh.bf16.pop %v1748
    %v1765 = vtanh.bf16.pop %v1749
    %v1766 = vtanh.bf16.pop %v1750
    %v1767 = vtanh.bf16.pop %v1751
    %v1768 = vtanh.bf16.pop %v1752
    %s1769 = scalar_lea.vmem %s2, 320
    %v1770 = vld [vmem:[%s1769] sm:$0xf]
    %v1771 = vld [vmem:[%s1769 + $0x4] sm:$0xf]
    %v1772 = vld [vmem:[%s1769 + $0x8] sm:$0xf]
    %v1773 = vld [vmem:[%s1769 + $0xc] sm:$0xf]
    %v1774 = vld [vmem:[%s1769 + $0x10] sm:$0xf]
    %v1775 = vld [vmem:[%s1769 + $0x14] sm:$0xf]
    %v1776 = vld [vmem:[%s1769 + $0x18] sm:$0xf]
    %v1777 = vld [vmem:[%s1769 + $0x1c] sm:$0xf]
    %v1778 = vld [vmem:[%s1769 + $0x20] sm:$0xf]
    %v1779 = vld [vmem:[%s1769 + $0x24] sm:$0xf]
    %v1780 = vld [vmem:[%s1769 + $0x28] sm:$0xf]
    %v1781 = vld [vmem:[%s1769 + $0x2c] sm:$0xf]
    %v1782 = vld [vmem:[%s1769 + $0x30] sm:$0xf]
    %v1783 = vld [vmem:[%s1769 + $0x34] sm:$0xf]
    %v1784 = vld [vmem:[%s1769 + $0x38] sm:$0xf]
    %v1785 = vld [vmem:[%s1769 + $0x3c] sm:$0xf]
    %s1786 = scalar_lea.vmem %s3, 6
    %v1787 = vld [vmem:[%s1786] sm:$0x1]
    %v1804 = vunpack.c.l.b16 %v1770
    %v1805 = vunpack.c.l.b16 %v1771
    %v1806 = vunpack.c.l.b16 %v1772
    %v1807 = vunpack.c.l.b16 %v1773
    %v1808 = vunpack.c.l.b16 %v1774
    %v1809 = vunpack.c.l.b16 %v1775
    %v1810 = vunpack.c.l.b16 %v1776
    %v1811 = vunpack.c.l.b16 %v1777
    %v1812 = vunpack.c.l.b16 %v1778
    %v1813 = vunpack.c.l.b16 %v1779
    %v1814 = vunpack.c.l.b16 %v1780
    %v1815 = vunpack.c.l.b16 %v1781
    %v1816 = vunpack.c.l.b16 %v1782
    %v1817 = vunpack.c.l.b16 %v1783
    %v1818 = vunpack.c.l.b16 %v1784
    %v1819 = vunpack.c.l.b16 %v1785
    %v1820 = vpack.c.b16 %v1805, %v1804
    %v1821 = vpack.c.b16 %v1807, %v1806
    %v1822 = vpack.c.b16 %v1809, %v1808
    %v1823 = vpack.c.b16 %v1811, %v1810
    %v1824 = vpack.c.b16 %v1813, %v1812
    %v1825 = vpack.c.b16 %v1815, %v1814
    %v1826 = vpack.c.b16 %v1817, %v1816
    %v1827 = vpack.c.b16 %v1819, %v1818
    %1836 = vmatprep.subr.bf16.mxu0 0
    %1837 = vmatpush1.bf16.msra.mxu0 %v1820
    %1838 = vmatprep.subr.bf16.mxu0 0
    %1839 = vmatpush1.bf16.msra.mxu0 %v1821
    %1840 = vmatprep.subr.bf16.mxu0 0
    %1841 = vmatpush1.bf16.msra.mxu0 %v1822
    %1842 = vmatprep.subr.bf16.mxu0 0
    %1843 = vmatpush1.bf16.msra.mxu0 %v1823
    %1844 = vmatprep.subr.bf16.mxu0 0
    %1845 = vmatpush1.bf16.msra.mxu0 %v1824
    %1846 = vmatprep.subr.bf16.mxu0 0
    %1847 = vmatpush1.bf16.msra.mxu0 %v1825
    %1848 = vmatprep.subr.bf16.mxu0 0
    %1849 = vmatpush1.bf16.msra.mxu0 %v1826
    %1850 = vmatprep.subr.bf16.mxu0 0
    %1851 = vmatpush1.bf16.msra.mxu0 %v1827
    %1852 = vmatprep.subr.bf16.mxu0 0
    %1853 = vmatpush1.bf16.msra.mxu0 0
    %1854 = vmatprep.subr.bf16.mxu0 0
    %1855 = vmatpush1.bf16.msra.mxu0 0
    %1856 = vmatprep.subr.bf16.mxu0 0
    %1857 = vmatpush1.bf16.msra.mxu0 0
    %1858 = vmatprep.subr.bf16.mxu0 0
    %1859 = vmatpush1.bf16.msra.mxu0 0
    %1860 = vmatprep.subr.bf16.mxu0 0
    %1861 = vmatpush1.bf16.msra.mxu0 0
    %1862 = vmatprep.subr.bf16.mxu0 0
    %1863 = vmatpush1.bf16.msra.mxu0 0
    %1864 = vmatprep.subr.bf16.mxu0 0
    %1865 = vmatpush1.bf16.msra.mxu0 0
    %1866 = vmatprep.subr.bf16.mxu0 0
    %1867 = vmatpush1.bf16.msra.mxu0 0
    %1868 = vmatprep.mubr.bf16.mxu0 0
    %1869 = vmatmul.mubr.bf16.gmra.mrb[0].mxu0 %v1753
    %v1870 = vpop.f32.mrb[0].mxu0
    %v1871 = vadd.f32 0.0, %v1870
    %v1872 = vpop.f32.mrb[0].mxu0
    %v1873 = vpop.f32.mrb[0].mxu0
    %v1874 = vadd.f32 0.0, %v1873
    %v1875 = vpop.f32.mrb[0].mxu0
    %1876 = vmatprep.mubr.bf16.mxu0 0
    %1877 = vmatmul.mubr.bf16.gmra.mrb[0].mxu0 %v1754
    %v1878 = vpop.f32.mrb[0].mxu0
    %v1879 = vadd.f32 0.0, %v1878
    %v1880 = vpop.f32.mrb[0].mxu0
    %v1881 = vpop.f32.mrb[0].mxu0
    %v1882 = vadd.f32 0.0, %v1881
    %v1883 = vpop.f32.mrb[0].mxu0
    %1884 = vmatprep.mubr.bf16.mxu0 0
    %1885 = vmatmul.mubr.bf16.gmra.mrb[0].mxu0 %v1755
    %v1886 = vpop.f32.mrb[0].mxu0
    %v1887 = vadd.f32 0.0, %v1886
    %v1888 = vpop.f32.mrb[0].mxu0
    %v1889 = vpop.f32.mrb[0].mxu0
    %v1890 = vadd.f32 0.0, %v1889
    %v1891 = vpop.f32.mrb[0].mxu0
    %1892 = vmatprep.mubr.bf16.mxu0 0
    %1893 = vmatmul.mubr.bf16.gmra.mrb[0].mxu0 %v1756
    %v1894 = vpop.f32.mrb[0].mxu0
    %v1895 = vadd.f32 0.0, %v1894
    %v1896 = vpop.f32.mrb[0].mxu0
    %v1897 = vpop.f32.mrb[0].mxu0
    %v1898 = vadd.f32 0.0, %v1897
    %v1899 = vpop.f32.mrb[0].mxu0
    %1900 = vmatprep.mubr.bf16.mxu0 0
    %1901 = vmatmul.mubr.bf16.gmra.mrb[0].mxu0 %v1757
    %v1902 = vpop.f32.mrb[0].mxu0
    %v1903 = vadd.f32 0.0, %v1902
    %v1904 = vpop.f32.mrb[0].mxu0
    %v1905 = vpop.f32.mrb[0].mxu0
    %v1906 = vadd.f32 0.0, %v1905
    %v1907 = vpop.f32.mrb[0].mxu0
    %1908 = vmatprep.mubr.bf16.mxu0 0
    %1909 = vmatmul.mubr.bf16.gmra.mrb[0].mxu0 %v1758
    %v1910 = vpop.f32.mrb[0].mxu0
    %v1911 = vadd.f32 0.0, %v1910
    %v1912 = vpop.f32.mrb[0].mxu0
    %v1913 = vpop.f32.mrb[0].mxu0
    %v1914 = vadd.f32 0.0, %v1913
    %v1915 = vpop.f32.mrb[0].mxu0
    %1916 = vmatprep.mubr.bf16.mxu0 0
    %1917 = vmatmul.mubr.bf16.gmra.mrb[0].mxu0 %v1759
    %v1918 = vpop.f32.mrb[0].mxu0
    %v1919 = vadd.f32 0.0, %v1918
    %v1920 = vpop.f32.mrb[0].mxu0
    %v1921 = vpop.f32.mrb[0].mxu0
    %v1922 = vadd.f32 0.0, %v1921
    %v1923 = vpop.f32.mrb[0].mxu0
    %1924 = vmatprep.mubr.bf16.mxu0 0
    %1925 = vmatmul.mubr.bf16.gmra.mrb[0].mxu0 %v1760
    %v1926 = vpop.f32.mrb[0].mxu0
    %v1927 = vadd.f32 0.0, %v1926
    %v1928 = vpop.f32.mrb[0].mxu0
    %v1929 = vpop.f32.mrb[0].mxu0
    %v1930 = vadd.f32 0.0, %v1929
    %v1931 = vpop.f32.mrb[0].mxu0
    %1932 = vmatprep.mubr.bf16.mxu0 0
    %1933 = vmatmul.mubr.bf16.gmra.mrb[0].mxu0 %v1761
    %v1934 = vpop.f32.mrb[0].mxu0
    %v1935 = vadd.f32 0.0, %v1934
    %v1936 = vpop.f32.mrb[0].mxu0
    %v1937 = vpop.f32.mrb[0].mxu0
    %v1938 = vadd.f32 0.0, %v1937
    %v1939 = vpop.f32.mrb[0].mxu0
    %1940 = vmatprep.mubr.bf16.mxu0 0
    %1941 = vmatmul.mubr.bf16.gmra.mrb[0].mxu0 %v1762
    %v1942 = vpop.f32.mrb[0].mxu0
    %v1943 = vadd.f32 0.0, %v1942
    %v1944 = vpop.f32.mrb[0].mxu0
    %v1945 = vpop.f32.mrb[0].mxu0
    %v1946 = vadd.f32 0.0, %v1945
    %v1947 = vpop.f32.mrb[0].mxu0
    %1948 = vmatprep.mubr.bf16.mxu0 0
    %1949 = vmatmul.mubr.bf16.gmra.mrb[0].mxu0 %v1763
    %v1950 = vpop.f32.mrb[0].mxu0
    %v1951 = vadd.f32 0.0, %v1950
    %v1952 = vpop.f32.mrb[0].mxu0
    %v1953 = vpop.f32.mrb[0].mxu0
    %v1954 = vadd.f32 0.0, %v1953
    %v1955 = vpop.f32.mrb[0].mxu0
    %1956 = vmatprep.mubr.bf16.mxu0 0
    %1957 = vmatmul.mubr.bf16.gmra.mrb[0].mxu0 %v1764
    %v1958 = vpop.f32.mrb[0].mxu0
    %v1959 = vadd.f32 0.0, %v1958
    %v1960 = vpop.f32.mrb[0].mxu0
    %v1961 = vpop.f32.mrb[0].mxu0
    %v1962 = vadd.f32 0.0, %v1961
    %v1963 = vpop.f32.mrb[0].mxu0
    %1964 = vmatprep.mubr.bf16.mxu0 0
    %1965 = vmatmul.mubr.bf16.gmra.mrb[0].mxu0 %v1765
    %v1966 = vpop.f32.mrb[0].mxu0
    %v1967 = vadd.f32 0.0, %v1966
    %v1968 = vpop.f32.mrb[0].mxu0
    %v1969 = vpop.f32.mrb[0].mxu0
    %v1970 = vadd.f32 0.0, %v1969
    %v1971 = vpop.f32.mrb[0].mxu0
    %1972 = vmatprep.mubr.bf16.mxu0 0
    %1973 = vmatmul.mubr.bf16.gmra.mrb[0].mxu0 %v1766
    %v1974 = vpop.f32.mrb[0].mxu0
    %v1975 = vadd.f32 0.0, %v1974
    %v1976 = vpop.f32.mrb[0].mxu0
    %v1977 = vpop.f32.mrb[0].mxu0
    %v1978 = vadd.f32 0.0, %v1977
    %v1979 = vpop.f32.mrb[0].mxu0
    %1980 = vmatprep.mubr.bf16.mxu0 0
    %1981 = vmatmul.mubr.bf16.gmra.mrb[0].mxu0 %v1767
    %v1982 = vpop.f32.mrb[0].mxu0
    %v1983 = vadd.f32 0.0, %v1982
    %v1984 = vpop.f32.mrb[0].mxu0
    %v1985 = vpop.f32.mrb[0].mxu0
    %v1986 = vadd.f32 0.0, %v1985
    %v1987 = vpop.f32.mrb[0].mxu0
    %1988 = vmatprep.mubr.bf16.mxu0 0
    %1989 = vmatmul.mubr.bf16.gmra.mrb[0].mxu0 %v1768
    %v1990 = vpop.f32.mrb[0].mxu0
    %v1991 = vadd.f32 0.0, %v1990
    %v1992 = vpop.f32.mrb[0].mxu0
    %v1993 = vpop.f32.mrb[0].mxu0
    %v1994 = vadd.f32 0.0, %v1993
    %v1995 = vpop.f32.mrb[0].mxu0
    %1996 = vdwg.mxu0
    %v1997 = vpack.c.bf16 %v1874, %v1871
    %v1998 = vpack.c.bf16 %v1882, %v1879
    %v1999 = vpack.c.bf16 %v1890, %v1887
    %v2000 = vpack.c.bf16 %v1898, %v1895
    %v2001 = vpack.c.bf16 %v1906, %v1903
    %v2002 = vpack.c.bf16 %v1914, %v1911
    %v2003 = vpack.c.bf16 %v1922, %v1919
    %v2004 = vpack.c.bf16 %v1930, %v1927
    %v2005 = vpack.c.bf16 %v1938, %v1935
    %v2006 = vpack.c.bf16 %v1946, %v1943
    %v2007 = vpack.c.bf16 %v1954, %v1951
    %v2008 = vpack.c.bf16 %v1962, %v1959
    %v2009 = vpack.c.bf16 %v1970, %v1967
    %v2010 = vpack.c.bf16 %v1978, %v1975
    %v2011 = vpack.c.bf16 %v1986, %v1983
    %v2012 = vpack.c.bf16 %v1994, %v1991
    %v2013 = vpack.c.bf16 %v1787, %v1787
    %v2015 = vpack.i.b16 %v2013, %v2013
    %v2017 = vlaneseq
    %v2018 = vshrl.u32 %v2017, 7
    %v2019 = vsub.s32 0, %v2018
    %v2020 = vrot.slane %v2015, %v2019
    %v2021 = vadd.bf16 %v1997, %v2020
    %v2022 = vadd.bf16 %v1998, %v2020
    %v2023 = vadd.bf16 %v1999, %v2020
    %v2024 = vadd.bf16 %v2000, %v2020
    %v2025 = vadd.bf16 %v2001, %v2020
    %v2026 = vadd.bf16 %v2002, %v2020
    %v2027 = vadd.bf16 %v2003, %v2020
    %v2028 = vadd.bf16 %v2004, %v2020
    %v2029 = vadd.bf16 %v2005, %v2020
    %v2030 = vadd.bf16 %v2006, %v2020
    %v2031 = vadd.bf16 %v2007, %v2020
    %v2032 = vadd.bf16 %v2008, %v2020
    %v2033 = vadd.bf16 %v2009, %v2020
    %v2034 = vadd.bf16 %v2010, %v2020
    %v2035 = vadd.bf16 %v2011, %v2020
    %v2036 = vadd.bf16 %v2012, %v2020
    %v2037 = vtanh.bf16.pop %v2021
    %v2038 = vtanh.bf16.pop %v2022
    %v2039 = vtanh.bf16.pop %v2023
    %v2040 = vtanh.bf16.pop %v2024
    %v2041 = vtanh.bf16.pop %v2025
    %v2042 = vtanh.bf16.pop %v2026
    %v2043 = vtanh.bf16.pop %v2027
    %v2044 = vtanh.bf16.pop %v2028
    %v2045 = vtanh.bf16.pop %v2029
    %v2046 = vtanh.bf16.pop %v2030
    %v2047 = vtanh.bf16.pop %v2031
    %v2048 = vtanh.bf16.pop %v2032
    %v2049 = vtanh.bf16.pop %v2033
    %v2050 = vtanh.bf16.pop %v2034
    %v2051 = vtanh.bf16.pop %v2035
    %v2052 = vtanh.bf16.pop %v2036
    %s2053 = scalar_lea.vmem %s2, 384
    %v2054 = vld [vmem:[%s2053] sm:$0xf]
    %v2055 = vld [vmem:[%s2053 + $0x4] sm:$0xf]
    %v2056 = vld [vmem:[%s2053 + $0x8] sm:$0xf]
    %v2057 = vld [vmem:[%s2053 + $0xc] sm:$0xf]
    %v2058 = vld [vmem:[%s2053 + $0x10] sm:$0xf]
    %v2059 = vld [vmem:[%s2053 + $0x14] sm:$0xf]
    %v2060 = vld [vmem:[%s2053 + $0x18] sm:$0xf]
    %v2061 = vld [vmem:[%s2053 + $0x1c] sm:$0xf]
    %v2062 = vld [vmem:[%s2053 + $0x20] sm:$0xf]
    %v2063 = vld [vmem:[%s2053 + $0x24] sm:$0xf]
    %v2064 = vld [vmem:[%s2053 + $0x28] sm:$0xf]
    %v2065 = vld [vmem:[%s2053 + $0x2c] sm:$0xf]
    %v2066 = vld [vmem:[%s2053 + $0x30] sm:$0xf]
    %v2067 = vld [vmem:[%s2053 + $0x34] sm:$0xf]
    %v2068 = vld [vmem:[%s2053 + $0x38] sm:$0xf]
    %v2069 = vld [vmem:[%s2053 + $0x3c] sm:$0xf]
    %s2070 = scalar_lea.vmem %s3, 7
    %v2071 = vld [vmem:[%s2070] sm:$0x1]
    %v2088 = vunpack.c.l.b16 %v2054
    %v2089 = vunpack.c.l.b16 %v2055
    %v2090 = vunpack.c.l.b16 %v2056
    %v2091 = vunpack.c.l.b16 %v2057
    %v2092 = vunpack.c.l.b16 %v2058
    %v2093 = vunpack.c.l.b16 %v2059
    %v2094 = vunpack.c.l.b16 %v2060
    %v2095 = vunpack.c.l.b16 %v2061
    %v2096 = vunpack.c.l.b16 %v2062
    %v2097 = vunpack.c.l.b16 %v2063
    %v2098 = vunpack.c.l.b16 %v2064
    %v2099 = vunpack.c.l.b16 %v2065
    %v2100 = vunpack.c.l.b16 %v2066
    %v2101 = vunpack.c.l.b16 %v2067
    %v2102 = vunpack.c.l.b16 %v2068
    %v2103 = vunpack.c.l.b16 %v2069
    %v2104 = vpack.c.b16 %v2089, %v2088
    %v2105 = vpack.c.b16 %v2091, %v2090
    %v2106 = vpack.c.b16 %v2093, %v2092
    %v2107 = vpack.c.b16 %v2095, %v2094
    %v2108 = vpack.c.b16 %v2097, %v2096
    %v2109 = vpack.c.b16 %v2099, %v2098
    %v2110 = vpack.c.b16 %v2101, %v2100
    %v2111 = vpack.c.b16 %v2103, %v2102
    %2120 = vmatprep.subr.bf16.mxu0 0
    %2121 = vmatpush1.bf16.msra.mxu0 %v2104
    %2122 = vmatprep.subr.bf16.mxu0 0
    %2123 = vmatpush1.bf16.msra.mxu0 %v2105
    %2124 = vmatprep.subr.bf16.mxu0 0
    %2125 = vmatpush1.bf16.msra.mxu0 %v2106
    %2126 = vmatprep.subr.bf16.mxu0 0
    %2127 = vmatpush1.bf16.msra.mxu0 %v2107
    %2128 = vmatprep.subr.bf16.mxu0 0
    %2129 = vmatpush1.bf16.msra.mxu0 %v2108
    %2130 = vmatprep.subr.bf16.mxu0 0
    %2131 = vmatpush1.bf16.msra.mxu0 %v2109
    %2132 = vmatprep.subr.bf16.mxu0 0
    %2133 = vmatpush1.bf16.msra.mxu0 %v2110
    %2134 = vmatprep.subr.bf16.mxu0 0
    %2135 = vmatpush1.bf16.msra.mxu0 %v2111
    %2136 = vmatprep.subr.bf16.mxu0 0
    %2137 = vmatpush1.bf16.msra.mxu0 0
    %2138 = vmatprep.subr.bf16.mxu0 0
    %2139 = vmatpush1.bf16.msra.mxu0 0
    %2140 = vmatprep.subr.bf16.mxu0 0
    %2141 = vmatpush1.bf16.msra.mxu0 0
    %2142 = vmatprep.subr.bf16.mxu0 0
    %2143 = vmatpush1.bf16.msra.mxu0 0
    %2144 = vmatprep.subr.bf16.mxu0 0
    %2145 = vmatpush1.bf16.msra.mxu0 0
    %2146 = vmatprep.subr.bf16.mxu0 0
    %2147 = vmatpush1.bf16.msra.mxu0 0
    %2148 = vmatprep.subr.bf16.mxu0 0
    %2149 = vmatpush1.bf16.msra.mxu0 0
    %2150 = vmatprep.subr.bf16.mxu0 0
    %2151 = vmatpush1.bf16.msra.mxu0 0
    %2152 = vmatprep.mubr.bf16.mxu0 0
    %2153 = vmatmul.mubr.bf16.gmra.mrb[0].mxu0 %v2037
    %v2154 = vpop.f32.mrb[0].mxu0
    %v2155 = vadd.f32 0.0, %v2154
    %v2156 = vpop.f32.mrb[0].mxu0
    %v2157 = vpop.f32.mrb[0].mxu0
    %v2158 = vadd.f32 0.0, %v2157
    %v2159 = vpop.f32.mrb[0].mxu0
    %2160 = vmatprep.mubr.bf16.mxu0 0
    %2161 = vmatmul.mubr.bf16.gmra.mrb[0].mxu0 %v2038
    %v2162 = vpop.f32.mrb[0].mxu0
    %v2163 = vadd.f32 0.0, %v2162
    %v2164 = vpop.f32.mrb[0].mxu0
    %v2165 = vpop.f32.mrb[0].mxu0
    %v2166 = vadd.f32 0.0, %v2165
    %v2167 = vpop.f32.mrb[0].mxu0
    %2168 = vmatprep.mubr.bf16.mxu0 0
    %2169 = vmatmul.mubr.bf16.gmra.mrb[0].mxu0 %v2039
    %v2170 = vpop.f32.mrb[0].mxu0
    %v2171 = vadd.f32 0.0, %v2170
    %v2172 = vpop.f32.mrb[0].mxu0
    %v2173 = vpop.f32.mrb[0].mxu0
    %v2174 = vadd.f32 0.0, %v2173
    %v2175 = vpop.f32.mrb[0].mxu0
    %2176 = vmatprep.mubr.bf16.mxu0 0
    %2177 = vmatmul.mubr.bf16.gmra.mrb[0].mxu0 %v2040
    %v2178 = vpop.f32.mrb[0].mxu0
    %v2179 = vadd.f32 0.0, %v2178
    %v2180 = vpop.f32.mrb[0].mxu0
    %v2181 = vpop.f32.mrb[0].mxu0
    %v2182 = vadd.f32 0.0, %v2181
    %v2183 = vpop.f32.mrb[0].mxu0
    %2184 = vmatprep.mubr.bf16.mxu0 0
    %2185 = vmatmul.mubr.bf16.gmra.mrb[0].mxu0 %v2041
    %v2186 = vpop.f32.mrb[0].mxu0
    %v2187 = vadd.f32 0.0, %v2186
    %v2188 = vpop.f32.mrb[0].mxu0
    %v2189 = vpop.f32.mrb[0].mxu0
    %v2190 = vadd.f32 0.0, %v2189
    %v2191 = vpop.f32.mrb[0].mxu0
    %2192 = vmatprep.mubr.bf16.mxu0 0
    %2193 = vmatmul.mubr.bf16.gmra.mrb[0].mxu0 %v2042
    %v2194 = vpop.f32.mrb[0].mxu0
    %v2195 = vadd.f32 0.0, %v2194
    %v2196 = vpop.f32.mrb[0].mxu0
    %v2197 = vpop.f32.mrb[0].mxu0
    %v2198 = vadd.f32 0.0, %v2197
    %v2199 = vpop.f32.mrb[0].mxu0
    %2200 = vmatprep.mubr.bf16.mxu0 0
    %2201 = vmatmul.mubr.bf16.gmra.mrb[0].mxu0 %v2043
    %v2202 = vpop.f32.mrb[0].mxu0
    %v2203 = vadd.f32 0.0, %v2202
    %v2204 = vpop.f32.mrb[0].mxu0
    %v2205 = vpop.f32.mrb[0].mxu0
    %v2206 = vadd.f32 0.0, %v2205
    %v2207 = vpop.f32.mrb[0].mxu0
    %2208 = vmatprep.mubr.bf16.mxu0 0
    %2209 = vmatmul.mubr.bf16.gmra.mrb[0].mxu0 %v2044
    %v2210 = vpop.f32.mrb[0].mxu0
    %v2211 = vadd.f32 0.0, %v2210
    %v2212 = vpop.f32.mrb[0].mxu0
    %v2213 = vpop.f32.mrb[0].mxu0
    %v2214 = vadd.f32 0.0, %v2213
    %v2215 = vpop.f32.mrb[0].mxu0
    %2216 = vmatprep.mubr.bf16.mxu0 0
    %2217 = vmatmul.mubr.bf16.gmra.mrb[0].mxu0 %v2045
    %v2218 = vpop.f32.mrb[0].mxu0
    %v2219 = vadd.f32 0.0, %v2218
    %v2220 = vpop.f32.mrb[0].mxu0
    %v2221 = vpop.f32.mrb[0].mxu0
    %v2222 = vadd.f32 0.0, %v2221
    %v2223 = vpop.f32.mrb[0].mxu0
    %2224 = vmatprep.mubr.bf16.mxu0 0
    %2225 = vmatmul.mubr.bf16.gmra.mrb[0].mxu0 %v2046
    %v2226 = vpop.f32.mrb[0].mxu0
    %v2227 = vadd.f32 0.0, %v2226
    %v2228 = vpop.f32.mrb[0].mxu0
    %v2229 = vpop.f32.mrb[0].mxu0
    %v2230 = vadd.f32 0.0, %v2229
    %v2231 = vpop.f32.mrb[0].mxu0
    %2232 = vmatprep.mubr.bf16.mxu0 0
    %2233 = vmatmul.mubr.bf16.gmra.mrb[0].mxu0 %v2047
    %v2234 = vpop.f32.mrb[0].mxu0
    %v2235 = vadd.f32 0.0, %v2234
    %v2236 = vpop.f32.mrb[0].mxu0
    %v2237 = vpop.f32.mrb[0].mxu0
    %v2238 = vadd.f32 0.0, %v2237
    %v2239 = vpop.f32.mrb[0].mxu0
    %2240 = vmatprep.mubr.bf16.mxu0 0
    %2241 = vmatmul.mubr.bf16.gmra.mrb[0].mxu0 %v2048
    %v2242 = vpop.f32.mrb[0].mxu0
    %v2243 = vadd.f32 0.0, %v2242
    %v2244 = vpop.f32.mrb[0].mxu0
    %v2245 = vpop.f32.mrb[0].mxu0
    %v2246 = vadd.f32 0.0, %v2245
    %v2247 = vpop.f32.mrb[0].mxu0
    %2248 = vmatprep.mubr.bf16.mxu0 0
    %2249 = vmatmul.mubr.bf16.gmra.mrb[0].mxu0 %v2049
    %v2250 = vpop.f32.mrb[0].mxu0
    %v2251 = vadd.f32 0.0, %v2250
    %v2252 = vpop.f32.mrb[0].mxu0
    %v2253 = vpop.f32.mrb[0].mxu0
    %v2254 = vadd.f32 0.0, %v2253
    %v2255 = vpop.f32.mrb[0].mxu0
    %2256 = vmatprep.mubr.bf16.mxu0 0
    %2257 = vmatmul.mubr.bf16.gmra.mrb[0].mxu0 %v2050
    %v2258 = vpop.f32.mrb[0].mxu0
    %v2259 = vadd.f32 0.0, %v2258
    %v2260 = vpop.f32.mrb[0].mxu0
    %v2261 = vpop.f32.mrb[0].mxu0
    %v2262 = vadd.f32 0.0, %v2261
    %v2263 = vpop.f32.mrb[0].mxu0
    %2264 = vmatprep.mubr.bf16.mxu0 0
    %2265 = vmatmul.mubr.bf16.gmra.mrb[0].mxu0 %v2051
    %v2266 = vpop.f32.mrb[0].mxu0
    %v2267 = vadd.f32 0.0, %v2266
    %v2268 = vpop.f32.mrb[0].mxu0
    %v2269 = vpop.f32.mrb[0].mxu0
    %v2270 = vadd.f32 0.0, %v2269
    %v2271 = vpop.f32.mrb[0].mxu0
    %2272 = vmatprep.mubr.bf16.mxu0 0
    %2273 = vmatmul.mubr.bf16.gmra.mrb[0].mxu0 %v2052
    %v2274 = vpop.f32.mrb[0].mxu0
    %v2275 = vadd.f32 0.0, %v2274
    %v2276 = vpop.f32.mrb[0].mxu0
    %v2277 = vpop.f32.mrb[0].mxu0
    %v2278 = vadd.f32 0.0, %v2277
    %v2279 = vpop.f32.mrb[0].mxu0
    %2280 = vdwg.mxu0
    %v2281 = vpack.c.bf16 %v2158, %v2155
    %v2282 = vpack.c.bf16 %v2166, %v2163
    %v2283 = vpack.c.bf16 %v2174, %v2171
    %v2284 = vpack.c.bf16 %v2182, %v2179
    %v2285 = vpack.c.bf16 %v2190, %v2187
    %v2286 = vpack.c.bf16 %v2198, %v2195
    %v2287 = vpack.c.bf16 %v2206, %v2203
    %v2288 = vpack.c.bf16 %v2214, %v2211
    %v2289 = vpack.c.bf16 %v2222, %v2219
    %v2290 = vpack.c.bf16 %v2230, %v2227
    %v2291 = vpack.c.bf16 %v2238, %v2235
    %v2292 = vpack.c.bf16 %v2246, %v2243
    %v2293 = vpack.c.bf16 %v2254, %v2251
    %v2294 = vpack.c.bf16 %v2262, %v2259
    %v2295 = vpack.c.bf16 %v2270, %v2267
    %v2296 = vpack.c.bf16 %v2278, %v2275
    %v2297 = vpack.c.bf16 %v2071, %v2071
    %v2299 = vpack.i.b16 %v2297, %v2297
    %v2301 = vlaneseq
    %v2302 = vshrl.u32 %v2301, 7
    %v2303 = vsub.s32 0, %v2302
    %v2304 = vrot.slane %v2299, %v2303
    %v2305 = vadd.bf16 %v2281, %v2304
    %v2306 = vadd.bf16 %v2282, %v2304
    %v2307 = vadd.bf16 %v2283, %v2304
    %v2308 = vadd.bf16 %v2284, %v2304
    %v2309 = vadd.bf16 %v2285, %v2304
    %v2310 = vadd.bf16 %v2286, %v2304
    %v2311 = vadd.bf16 %v2287, %v2304
    %v2312 = vadd.bf16 %v2288, %v2304
    %v2313 = vadd.bf16 %v2289, %v2304
    %v2314 = vadd.bf16 %v2290, %v2304
    %v2315 = vadd.bf16 %v2291, %v2304
    %v2316 = vadd.bf16 %v2292, %v2304
    %v2317 = vadd.bf16 %v2293, %v2304
    %v2318 = vadd.bf16 %v2294, %v2304
    %v2319 = vadd.bf16 %v2295, %v2304
    %v2320 = vadd.bf16 %v2296, %v2304
    %v2321 = vtanh.bf16.pop %v2305
    %v2322 = vtanh.bf16.pop %v2306
    %v2323 = vtanh.bf16.pop %v2307
    %v2324 = vtanh.bf16.pop %v2308
    %v2325 = vtanh.bf16.pop %v2309
    %v2326 = vtanh.bf16.pop %v2310
    %v2327 = vtanh.bf16.pop %v2311
    %v2328 = vtanh.bf16.pop %v2312
    %v2329 = vtanh.bf16.pop %v2313
    %v2330 = vtanh.bf16.pop %v2314
    %v2331 = vtanh.bf16.pop %v2315
    %v2332 = vtanh.bf16.pop %v2316
    %v2333 = vtanh.bf16.pop %v2317
    %v2334 = vtanh.bf16.pop %v2318
    %v2335 = vtanh.bf16.pop %v2319
    %v2336 = vtanh.bf16.pop %v2320
    %s2337 = scalar_lea.vmem %s2, 448
    %v2338 = vld [vmem:[%s2337] sm:$0xf]
    %v2339 = vld [vmem:[%s2337 + $0x4] sm:$0xf]
    %v2340 = vld [vmem:[%s2337 + $0x8] sm:$0xf]
    %v2341 = vld [vmem:[%s2337 + $0xc] sm:$0xf]
    %v2342 = vld [vmem:[%s2337 + $0x10] sm:$0xf]
    %v2343 = vld [vmem:[%s2337 + $0x14] sm:$0xf]
    %v2344 = vld [vmem:[%s2337 + $0x18] sm:$0xf]
    %v2345 = vld [vmem:[%s2337 + $0x1c] sm:$0xf]
    %v2346 = vld [vmem:[%s2337 + $0x20] sm:$0xf]
    %v2347 = vld [vmem:[%s2337 + $0x24] sm:$0xf]
    %v2348 = vld [vmem:[%s2337 + $0x28] sm:$0xf]
    %v2349 = vld [vmem:[%s2337 + $0x2c] sm:$0xf]
    %v2350 = vld [vmem:[%s2337 + $0x30] sm:$0xf]
    %v2351 = vld [vmem:[%s2337 + $0x34] sm:$0xf]
    %v2352 = vld [vmem:[%s2337 + $0x38] sm:$0xf]
    %v2353 = vld [vmem:[%s2337 + $0x3c] sm:$0xf]
    %s2354 = scalar_lea.vmem %s3, 8
    %v2355 = vld [vmem:[%s2354] sm:$0x1]
    %v2372 = vunpack.c.l.b16 %v2338
    %v2373 = vunpack.c.l.b16 %v2339
    %v2374 = vunpack.c.l.b16 %v2340
    %v2375 = vunpack.c.l.b16 %v2341
    %v2376 = vunpack.c.l.b16 %v2342
    %v2377 = vunpack.c.l.b16 %v2343
    %v2378 = vunpack.c.l.b16 %v2344
    %v2379 = vunpack.c.l.b16 %v2345
    %v2380 = vunpack.c.l.b16 %v2346
    %v2381 = vunpack.c.l.b16 %v2347
    %v2382 = vunpack.c.l.b16 %v2348
    %v2383 = vunpack.c.l.b16 %v2349
    %v2384 = vunpack.c.l.b16 %v2350
    %v2385 = vunpack.c.l.b16 %v2351
    %v2386 = vunpack.c.l.b16 %v2352
    %v2387 = vunpack.c.l.b16 %v2353
    %v2388 = vpack.c.b16 %v2373, %v2372
    %v2389 = vpack.c.b16 %v2375, %v2374
    %v2390 = vpack.c.b16 %v2377, %v2376
    %v2391 = vpack.c.b16 %v2379, %v2378
    %v2392 = vpack.c.b16 %v2381, %v2380
    %v2393 = vpack.c.b16 %v2383, %v2382
    %v2394 = vpack.c.b16 %v2385, %v2384
    %v2395 = vpack.c.b16 %v2387, %v2386
    %2404 = vmatprep.subr.bf16.mxu0 0
    %2405 = vmatpush1.bf16.msra.mxu0 %v2388
    %2406 = vmatprep.subr.bf16.mxu0 0
    %2407 = vmatpush1.bf16.msra.mxu0 %v2389
    %2408 = vmatprep.subr.bf16.mxu0 0
    %2409 = vmatpush1.bf16.msra.mxu0 %v2390
    %2410 = vmatprep.subr.bf16.mxu0 0
    %2411 = vmatpush1.bf16.msra.mxu0 %v2391
    %2412 = vmatprep.subr.bf16.mxu0 0
    %2413 = vmatpush1.bf16.msra.mxu0 %v2392
    %2414 = vmatprep.subr.bf16.mxu0 0
    %2415 = vmatpush1.bf16.msra.mxu0 %v2393
    %2416 = vmatprep.subr.bf16.mxu0 0
    %2417 = vmatpush1.bf16.msra.mxu0 %v2394
    %2418 = vmatprep.subr.bf16.mxu0 0
    %2419 = vmatpush1.bf16.msra.mxu0 %v2395
    %2420 = vmatprep.subr.bf16.mxu0 0
    %2421 = vmatpush1.bf16.msra.mxu0 0
    %2422 = vmatprep.subr.bf16.mxu0 0
    %2423 = vmatpush1.bf16.msra.mxu0 0
    %2424 = vmatprep.subr.bf16.mxu0 0
    %2425 = vmatpush1.bf16.msra.mxu0 0
    %2426 = vmatprep.subr.bf16.mxu0 0
    %2427 = vmatpush1.bf16.msra.mxu0 0
    %2428 = vmatprep.subr.bf16.mxu0 0
    %2429 = vmatpush1.bf16.msra.mxu0 0
    %2430 = vmatprep.subr.bf16.mxu0 0
    %2431 = vmatpush1.bf16.msra.mxu0 0
    %2432 = vmatprep.subr.bf16.mxu0 0
    %2433 = vmatpush1.bf16.msra.mxu0 0
    %2434 = vmatprep.subr.bf16.mxu0 0
    %2435 = vmatpush1.bf16.msra.mxu0 0
    %2436 = vmatprep.mubr.bf16.mxu0 0
    %2437 = vmatmul.mubr.bf16.gmra.mrb[0].mxu0 %v2321
    %v2438 = vpop.f32.mrb[0].mxu0
    %v2439 = vadd.f32 0.0, %v2438
    %v2440 = vpop.f32.mrb[0].mxu0
    %v2441 = vpop.f32.mrb[0].mxu0
    %v2442 = vadd.f32 0.0, %v2441
    %v2443 = vpop.f32.mrb[0].mxu0
    %2444 = vmatprep.mubr.bf16.mxu0 0
    %2445 = vmatmul.mubr.bf16.gmra.mrb[0].mxu0 %v2322
    %v2446 = vpop.f32.mrb[0].mxu0
    %v2447 = vadd.f32 0.0, %v2446
    %v2448 = vpop.f32.mrb[0].mxu0
    %v2449 = vpop.f32.mrb[0].mxu0
    %v2450 = vadd.f32 0.0, %v2449
    %v2451 = vpop.f32.mrb[0].mxu0
    %2452 = vmatprep.mubr.bf16.mxu0 0
    %2453 = vmatmul.mubr.bf16.gmra.mrb[0].mxu0 %v2323
    %v2454 = vpop.f32.mrb[0].mxu0
    %v2455 = vadd.f32 0.0, %v2454
    %v2456 = vpop.f32.mrb[0].mxu0
    %v2457 = vpop.f32.mrb[0].mxu0
    %v2458 = vadd.f32 0.0, %v2457
    %v2459 = vpop.f32.mrb[0].mxu0
    %2460 = vmatprep.mubr.bf16.mxu0 0
    %2461 = vmatmul.mubr.bf16.gmra.mrb[0].mxu0 %v2324
    %v2462 = vpop.f32.mrb[0].mxu0
    %v2463 = vadd.f32 0.0, %v2462
    %v2464 = vpop.f32.mrb[0].mxu0
    %v2465 = vpop.f32.mrb[0].mxu0
    %v2466 = vadd.f32 0.0, %v2465
    %v2467 = vpop.f32.mrb[0].mxu0
    %2468 = vmatprep.mubr.bf16.mxu0 0
    %2469 = vmatmul.mubr.bf16.gmra.mrb[0].mxu0 %v2325
    %v2470 = vpop.f32.mrb[0].mxu0
    %v2471 = vadd.f32 0.0, %v2470
    %v2472 = vpop.f32.mrb[0].mxu0
    %v2473 = vpop.f32.mrb[0].mxu0
    %v2474 = vadd.f32 0.0, %v2473
    %v2475 = vpop.f32.mrb[0].mxu0
    %2476 = vmatprep.mubr.bf16.mxu0 0
    %2477 = vmatmul.mubr.bf16.gmra.mrb[0].mxu0 %v2326
    %v2478 = vpop.f32.mrb[0].mxu0
    %v2479 = vadd.f32 0.0, %v2478
    %v2480 = vpop.f32.mrb[0].mxu0
    %v2481 = vpop.f32.mrb[0].mxu0
    %v2482 = vadd.f32 0.0, %v2481
    %v2483 = vpop.f32.mrb[0].mxu0
    %2484 = vmatprep.mubr.bf16.mxu0 0
    %2485 = vmatmul.mubr.bf16.gmra.mrb[0].mxu0 %v2327
    %v2486 = vpop.f32.mrb[0].mxu0
    %v2487 = vadd.f32 0.0, %v2486
    %v2488 = vpop.f32.mrb[0].mxu0
    %v2489 = vpop.f32.mrb[0].mxu0
    %v2490 = vadd.f32 0.0, %v2489
    %v2491 = vpop.f32.mrb[0].mxu0
    %2492 = vmatprep.mubr.bf16.mxu0 0
    %2493 = vmatmul.mubr.bf16.gmra.mrb[0].mxu0 %v2328
    %v2494 = vpop.f32.mrb[0].mxu0
    %v2495 = vadd.f32 0.0, %v2494
    %v2496 = vpop.f32.mrb[0].mxu0
    %v2497 = vpop.f32.mrb[0].mxu0
    %v2498 = vadd.f32 0.0, %v2497
    %v2499 = vpop.f32.mrb[0].mxu0
    %2500 = vmatprep.mubr.bf16.mxu0 0
    %2501 = vmatmul.mubr.bf16.gmra.mrb[0].mxu0 %v2329
    %v2502 = vpop.f32.mrb[0].mxu0
    %v2503 = vadd.f32 0.0, %v2502
    %v2504 = vpop.f32.mrb[0].mxu0
    %v2505 = vpop.f32.mrb[0].mxu0
    %v2506 = vadd.f32 0.0, %v2505
    %v2507 = vpop.f32.mrb[0].mxu0
    %2508 = vmatprep.mubr.bf16.mxu0 0
    %2509 = vmatmul.mubr.bf16.gmra.mrb[0].mxu0 %v2330
    %v2510 = vpop.f32.mrb[0].mxu0
    %v2511 = vadd.f32 0.0, %v2510
    %v2512 = vpop.f32.mrb[0].mxu0
    %v2513 = vpop.f32.mrb[0].mxu0
    %v2514 = vadd.f32 0.0, %v2513
    %v2515 = vpop.f32.mrb[0].mxu0
    %2516 = vmatprep.mubr.bf16.mxu0 0
    %2517 = vmatmul.mubr.bf16.gmra.mrb[0].mxu0 %v2331
    %v2518 = vpop.f32.mrb[0].mxu0
    %v2519 = vadd.f32 0.0, %v2518
    %v2520 = vpop.f32.mrb[0].mxu0
    %v2521 = vpop.f32.mrb[0].mxu0
    %v2522 = vadd.f32 0.0, %v2521
    %v2523 = vpop.f32.mrb[0].mxu0
    %2524 = vmatprep.mubr.bf16.mxu0 0
    %2525 = vmatmul.mubr.bf16.gmra.mrb[0].mxu0 %v2332
    %v2526 = vpop.f32.mrb[0].mxu0
    %v2527 = vadd.f32 0.0, %v2526
    %v2528 = vpop.f32.mrb[0].mxu0
    %v2529 = vpop.f32.mrb[0].mxu0
    %v2530 = vadd.f32 0.0, %v2529
    %v2531 = vpop.f32.mrb[0].mxu0
    %2532 = vmatprep.mubr.bf16.mxu0 0
    %2533 = vmatmul.mubr.bf16.gmra.mrb[0].mxu0 %v2333
    %v2534 = vpop.f32.mrb[0].mxu0
    %v2535 = vadd.f32 0.0, %v2534
    %v2536 = vpop.f32.mrb[0].mxu0
    %v2537 = vpop.f32.mrb[0].mxu0
    %v2538 = vadd.f32 0.0, %v2537
    %v2539 = vpop.f32.mrb[0].mxu0
    %2540 = vmatprep.mubr.bf16.mxu0 0
    %2541 = vmatmul.mubr.bf16.gmra.mrb[0].mxu0 %v2334
    %v2542 = vpop.f32.mrb[0].mxu0
    %v2543 = vadd.f32 0.0, %v2542
    %v2544 = vpop.f32.mrb[0].mxu0
    %v2545 = vpop.f32.mrb[0].mxu0
    %v2546 = vadd.f32 0.0, %v2545
    %v2547 = vpop.f32.mrb[0].mxu0
    %2548 = vmatprep.mubr.bf16.mxu0 0
    %2549 = vmatmul.mubr.bf16.gmra.mrb[0].mxu0 %v2335
    %v2550 = vpop.f32.mrb[0].mxu0
    %v2551 = vadd.f32 0.0, %v2550
    %v2552 = vpop.f32.mrb[0].mxu0
    %v2553 = vpop.f32.mrb[0].mxu0
    %v2554 = vadd.f32 0.0, %v2553
    %v2555 = vpop.f32.mrb[0].mxu0
    %2556 = vmatprep.mubr.bf16.mxu0 0
    %2557 = vmatmul.mubr.bf16.gmra.mrb[0].mxu0 %v2336
    %v2558 = vpop.f32.mrb[0].mxu0
    %v2559 = vadd.f32 0.0, %v2558
    %v2560 = vpop.f32.mrb[0].mxu0
    %v2561 = vpop.f32.mrb[0].mxu0
    %v2562 = vadd.f32 0.0, %v2561
    %v2563 = vpop.f32.mrb[0].mxu0
    %2564 = vdwg.mxu0
    %v2565 = vpack.c.bf16 %v2442, %v2439
    %v2566 = vpack.c.bf16 %v2450, %v2447
    %v2567 = vpack.c.bf16 %v2458, %v2455
    %v2568 = vpack.c.bf16 %v2466, %v2463
    %v2569 = vpack.c.bf16 %v2474, %v2471
    %v2570 = vpack.c.bf16 %v2482, %v2479
    %v2571 = vpack.c.bf16 %v2490, %v2487
    %v2572 = vpack.c.bf16 %v2498, %v2495
    %v2573 = vpack.c.bf16 %v2506, %v2503
    %v2574 = vpack.c.bf16 %v2514, %v2511
    %v2575 = vpack.c.bf16 %v2522, %v2519
    %v2576 = vpack.c.bf16 %v2530, %v2527
    %v2577 = vpack.c.bf16 %v2538, %v2535
    %v2578 = vpack.c.bf16 %v2546, %v2543
    %v2579 = vpack.c.bf16 %v2554, %v2551
    %v2580 = vpack.c.bf16 %v2562, %v2559
    %v2581 = vpack.c.bf16 %v2355, %v2355
    %v2583 = vpack.i.b16 %v2581, %v2581
    %v2585 = vlaneseq
    %v2586 = vshrl.u32 %v2585, 7
    %v2587 = vsub.s32 0, %v2586
    %v2588 = vrot.slane %v2583, %v2587
    %v2589 = vadd.bf16 %v2565, %v2588
    %v2590 = vadd.bf16 %v2566, %v2588
    %v2591 = vadd.bf16 %v2567, %v2588
    %v2592 = vadd.bf16 %v2568, %v2588
    %v2593 = vadd.bf16 %v2569, %v2588
    %v2594 = vadd.bf16 %v2570, %v2588
    %v2595 = vadd.bf16 %v2571, %v2588
    %v2596 = vadd.bf16 %v2572, %v2588
    %v2597 = vadd.bf16 %v2573, %v2588
    %v2598 = vadd.bf16 %v2574, %v2588
    %v2599 = vadd.bf16 %v2575, %v2588
    %v2600 = vadd.bf16 %v2576, %v2588
    %v2601 = vadd.bf16 %v2577, %v2588
    %v2602 = vadd.bf16 %v2578, %v2588
    %v2603 = vadd.bf16 %v2579, %v2588
    %v2604 = vadd.bf16 %v2580, %v2588
    %v2605 = vtanh.bf16.pop %v2589
    %v2606 = vtanh.bf16.pop %v2590
    %v2607 = vtanh.bf16.pop %v2591
    %v2608 = vtanh.bf16.pop %v2592
    %v2609 = vtanh.bf16.pop %v2593
    %v2610 = vtanh.bf16.pop %v2594
    %v2611 = vtanh.bf16.pop %v2595
    %v2612 = vtanh.bf16.pop %v2596
    %v2613 = vtanh.bf16.pop %v2597
    %v2614 = vtanh.bf16.pop %v2598
    %v2615 = vtanh.bf16.pop %v2599
    %v2616 = vtanh.bf16.pop %v2600
    %v2617 = vtanh.bf16.pop %v2601
    %v2618 = vtanh.bf16.pop %v2602
    %v2619 = vtanh.bf16.pop %v2603
    %v2620 = vtanh.bf16.pop %v2604
    %s2621 = scalar_lea.vmem %s2, 512
    %v2622 = vld [vmem:[%s2621] sm:$0xf]
    %v2623 = vld [vmem:[%s2621 + $0x4] sm:$0xf]
    %v2624 = vld [vmem:[%s2621 + $0x8] sm:$0xf]
    %v2625 = vld [vmem:[%s2621 + $0xc] sm:$0xf]
    %v2626 = vld [vmem:[%s2621 + $0x10] sm:$0xf]
    %v2627 = vld [vmem:[%s2621 + $0x14] sm:$0xf]
    %v2628 = vld [vmem:[%s2621 + $0x18] sm:$0xf]
    %v2629 = vld [vmem:[%s2621 + $0x1c] sm:$0xf]
    %v2630 = vld [vmem:[%s2621 + $0x20] sm:$0xf]
    %v2631 = vld [vmem:[%s2621 + $0x24] sm:$0xf]
    %v2632 = vld [vmem:[%s2621 + $0x28] sm:$0xf]
    %v2633 = vld [vmem:[%s2621 + $0x2c] sm:$0xf]
    %v2634 = vld [vmem:[%s2621 + $0x30] sm:$0xf]
    %v2635 = vld [vmem:[%s2621 + $0x34] sm:$0xf]
    %v2636 = vld [vmem:[%s2621 + $0x38] sm:$0xf]
    %v2637 = vld [vmem:[%s2621 + $0x3c] sm:$0xf]
    %s2638 = scalar_lea.vmem %s3, 9
    %v2639 = vld [vmem:[%s2638] sm:$0x1]
    %v2656 = vunpack.c.l.b16 %v2622
    %v2657 = vunpack.c.l.b16 %v2623
    %v2658 = vunpack.c.l.b16 %v2624
    %v2659 = vunpack.c.l.b16 %v2625
    %v2660 = vunpack.c.l.b16 %v2626
    %v2661 = vunpack.c.l.b16 %v2627
    %v2662 = vunpack.c.l.b16 %v2628
    %v2663 = vunpack.c.l.b16 %v2629
    %v2664 = vunpack.c.l.b16 %v2630
    %v2665 = vunpack.c.l.b16 %v2631
    %v2666 = vunpack.c.l.b16 %v2632
    %v2667 = vunpack.c.l.b16 %v2633
    %v2668 = vunpack.c.l.b16 %v2634
    %v2669 = vunpack.c.l.b16 %v2635
    %v2670 = vunpack.c.l.b16 %v2636
    %v2671 = vunpack.c.l.b16 %v2637
    %v2672 = vpack.c.b16 %v2657, %v2656
    %v2673 = vpack.c.b16 %v2659, %v2658
    %v2674 = vpack.c.b16 %v2661, %v2660
    %v2675 = vpack.c.b16 %v2663, %v2662
    %v2676 = vpack.c.b16 %v2665, %v2664
    %v2677 = vpack.c.b16 %v2667, %v2666
    %v2678 = vpack.c.b16 %v2669, %v2668
    %v2679 = vpack.c.b16 %v2671, %v2670
    %2688 = vmatprep.subr.bf16.mxu0 0
    %2689 = vmatpush1.bf16.msra.mxu0 %v2672
    %2690 = vmatprep.subr.bf16.mxu0 0
    %2691 = vmatpush1.bf16.msra.mxu0 %v2673
    %2692 = vmatprep.subr.bf16.mxu0 0
    %2693 = vmatpush1.bf16.msra.mxu0 %v2674
    %2694 = vmatprep.subr.bf16.mxu0 0
    %2695 = vmatpush1.bf16.msra.mxu0 %v2675
    %2696 = vmatprep.subr.bf16.mxu0 0
    %2697 = vmatpush1.bf16.msra.mxu0 %v2676
    %2698 = vmatprep.subr.bf16.mxu0 0
    %2699 = vmatpush1.bf16.msra.mxu0 %v2677
    %2700 = vmatprep.subr.bf16.mxu0 0
    %2701 = vmatpush1.bf16.msra.mxu0 %v2678
    %2702 = vmatprep.subr.bf16.mxu0 0
    %2703 = vmatpush1.bf16.msra.mxu0 %v2679
    %2704 = vmatprep.subr.bf16.mxu0 0
    %2705 = vmatpush1.bf16.msra.mxu0 0
    %2706 = vmatprep.subr.bf16.mxu0 0
    %2707 = vmatpush1.bf16.msra.mxu0 0
    %2708 = vmatprep.subr.bf16.mxu0 0
    %2709 = vmatpush1.bf16.msra.mxu0 0
    %2710 = vmatprep.subr.bf16.mxu0 0
    %2711 = vmatpush1.bf16.msra.mxu0 0
    %2712 = vmatprep.subr.bf16.mxu0 0
    %2713 = vmatpush1.bf16.msra.mxu0 0
    %2714 = vmatprep.subr.bf16.mxu0 0
    %2715 = vmatpush1.bf16.msra.mxu0 0
    %2716 = vmatprep.subr.bf16.mxu0 0
    %2717 = vmatpush1.bf16.msra.mxu0 0
    %2718 = vmatprep.subr.bf16.mxu0 0
    %2719 = vmatpush1.bf16.msra.mxu0 0
    %2720 = vmatprep.mubr.bf16.mxu0 0
    %2721 = vmatmul.mubr.bf16.gmra.mrb[0].mxu0 %v2605
    %v2722 = vpop.f32.mrb[0].mxu0
    %v2723 = vadd.f32 0.0, %v2722
    %v2724 = vpop.f32.mrb[0].mxu0
    %v2725 = vpop.f32.mrb[0].mxu0
    %v2726 = vadd.f32 0.0, %v2725
    %v2727 = vpop.f32.mrb[0].mxu0
    %2728 = vmatprep.mubr.bf16.mxu0 0
    %2729 = vmatmul.mubr.bf16.gmra.mrb[0].mxu0 %v2606
    %v2730 = vpop.f32.mrb[0].mxu0
    %v2731 = vadd.f32 0.0, %v2730
    %v2732 = vpop.f32.mrb[0].mxu0
    %v2733 = vpop.f32.mrb[0].mxu0
    %v2734 = vadd.f32 0.0, %v2733
    %v2735 = vpop.f32.mrb[0].mxu0
    %2736 = vmatprep.mubr.bf16.mxu0 0
    %2737 = vmatmul.mubr.bf16.gmra.mrb[0].mxu0 %v2607
    %v2738 = vpop.f32.mrb[0].mxu0
    %v2739 = vadd.f32 0.0, %v2738
    %v2740 = vpop.f32.mrb[0].mxu0
    %v2741 = vpop.f32.mrb[0].mxu0
    %v2742 = vadd.f32 0.0, %v2741
    %v2743 = vpop.f32.mrb[0].mxu0
    %2744 = vmatprep.mubr.bf16.mxu0 0
    %2745 = vmatmul.mubr.bf16.gmra.mrb[0].mxu0 %v2608
    %v2746 = vpop.f32.mrb[0].mxu0
    %v2747 = vadd.f32 0.0, %v2746
    %v2748 = vpop.f32.mrb[0].mxu0
    %v2749 = vpop.f32.mrb[0].mxu0
    %v2750 = vadd.f32 0.0, %v2749
    %v2751 = vpop.f32.mrb[0].mxu0
    %2752 = vmatprep.mubr.bf16.mxu0 0
    %2753 = vmatmul.mubr.bf16.gmra.mrb[0].mxu0 %v2609
    %v2754 = vpop.f32.mrb[0].mxu0
    %v2755 = vadd.f32 0.0, %v2754
    %v2756 = vpop.f32.mrb[0].mxu0
    %v2757 = vpop.f32.mrb[0].mxu0
    %v2758 = vadd.f32 0.0, %v2757
    %v2759 = vpop.f32.mrb[0].mxu0
    %2760 = vmatprep.mubr.bf16.mxu0 0
    %2761 = vmatmul.mubr.bf16.gmra.mrb[0].mxu0 %v2610
    %v2762 = vpop.f32.mrb[0].mxu0
    %v2763 = vadd.f32 0.0, %v2762
    %v2764 = vpop.f32.mrb[0].mxu0
    %v2765 = vpop.f32.mrb[0].mxu0
    %v2766 = vadd.f32 0.0, %v2765
    %v2767 = vpop.f32.mrb[0].mxu0
    %2768 = vmatprep.mubr.bf16.mxu0 0
    %2769 = vmatmul.mubr.bf16.gmra.mrb[0].mxu0 %v2611
    %v2770 = vpop.f32.mrb[0].mxu0
    %v2771 = vadd.f32 0.0, %v2770
    %v2772 = vpop.f32.mrb[0].mxu0
    %v2773 = vpop.f32.mrb[0].mxu0
    %v2774 = vadd.f32 0.0, %v2773
    %v2775 = vpop.f32.mrb[0].mxu0
    %2776 = vmatprep.mubr.bf16.mxu0 0
    %2777 = vmatmul.mubr.bf16.gmra.mrb[0].mxu0 %v2612
    %v2778 = vpop.f32.mrb[0].mxu0
    %v2779 = vadd.f32 0.0, %v2778
    %v2780 = vpop.f32.mrb[0].mxu0
    %v2781 = vpop.f32.mrb[0].mxu0
    %v2782 = vadd.f32 0.0, %v2781
    %v2783 = vpop.f32.mrb[0].mxu0
    %2784 = vmatprep.mubr.bf16.mxu0 0
    %2785 = vmatmul.mubr.bf16.gmra.mrb[0].mxu0 %v2613
    %v2786 = vpop.f32.mrb[0].mxu0
    %v2787 = vadd.f32 0.0, %v2786
    %v2788 = vpop.f32.mrb[0].mxu0
    %v2789 = vpop.f32.mrb[0].mxu0
    %v2790 = vadd.f32 0.0, %v2789
    %v2791 = vpop.f32.mrb[0].mxu0
    %2792 = vmatprep.mubr.bf16.mxu0 0
    %2793 = vmatmul.mubr.bf16.gmra.mrb[0].mxu0 %v2614
    %v2794 = vpop.f32.mrb[0].mxu0
    %v2795 = vadd.f32 0.0, %v2794
    %v2796 = vpop.f32.mrb[0].mxu0
    %v2797 = vpop.f32.mrb[0].mxu0
    %v2798 = vadd.f32 0.0, %v2797
    %v2799 = vpop.f32.mrb[0].mxu0
    %2800 = vmatprep.mubr.bf16.mxu0 0
    %2801 = vmatmul.mubr.bf16.gmra.mrb[0].mxu0 %v2615
    %v2802 = vpop.f32.mrb[0].mxu0
    %v2803 = vadd.f32 0.0, %v2802
    %v2804 = vpop.f32.mrb[0].mxu0
    %v2805 = vpop.f32.mrb[0].mxu0
    %v2806 = vadd.f32 0.0, %v2805
    %v2807 = vpop.f32.mrb[0].mxu0
    %2808 = vmatprep.mubr.bf16.mxu0 0
    %2809 = vmatmul.mubr.bf16.gmra.mrb[0].mxu0 %v2616
    %v2810 = vpop.f32.mrb[0].mxu0
    %v2811 = vadd.f32 0.0, %v2810
    %v2812 = vpop.f32.mrb[0].mxu0
    %v2813 = vpop.f32.mrb[0].mxu0
    %v2814 = vadd.f32 0.0, %v2813
    %v2815 = vpop.f32.mrb[0].mxu0
    %2816 = vmatprep.mubr.bf16.mxu0 0
    %2817 = vmatmul.mubr.bf16.gmra.mrb[0].mxu0 %v2617
    %v2818 = vpop.f32.mrb[0].mxu0
    %v2819 = vadd.f32 0.0, %v2818
    %v2820 = vpop.f32.mrb[0].mxu0
    %v2821 = vpop.f32.mrb[0].mxu0
    %v2822 = vadd.f32 0.0, %v2821
    %v2823 = vpop.f32.mrb[0].mxu0
    %2824 = vmatprep.mubr.bf16.mxu0 0
    %2825 = vmatmul.mubr.bf16.gmra.mrb[0].mxu0 %v2618
    %v2826 = vpop.f32.mrb[0].mxu0
    %v2827 = vadd.f32 0.0, %v2826
    %v2828 = vpop.f32.mrb[0].mxu0
    %v2829 = vpop.f32.mrb[0].mxu0
    %v2830 = vadd.f32 0.0, %v2829
    %v2831 = vpop.f32.mrb[0].mxu0
    %2832 = vmatprep.mubr.bf16.mxu0 0
    %2833 = vmatmul.mubr.bf16.gmra.mrb[0].mxu0 %v2619
    %v2834 = vpop.f32.mrb[0].mxu0
    %v2835 = vadd.f32 0.0, %v2834
    %v2836 = vpop.f32.mrb[0].mxu0
    %v2837 = vpop.f32.mrb[0].mxu0
    %v2838 = vadd.f32 0.0, %v2837
    %v2839 = vpop.f32.mrb[0].mxu0
    %2840 = vmatprep.mubr.bf16.mxu0 0
    %2841 = vmatmul.mubr.bf16.gmra.mrb[0].mxu0 %v2620
    %v2842 = vpop.f32.mrb[0].mxu0
    %v2843 = vadd.f32 0.0, %v2842
    %v2844 = vpop.f32.mrb[0].mxu0
    %v2845 = vpop.f32.mrb[0].mxu0
    %v2846 = vadd.f32 0.0, %v2845
    %v2847 = vpop.f32.mrb[0].mxu0
    %2848 = vdwg.mxu0
    %v2849 = vpack.c.bf16 %v2726, %v2723
    %v2850 = vpack.c.bf16 %v2734, %v2731
    %v2851 = vpack.c.bf16 %v2742, %v2739
    %v2852 = vpack.c.bf16 %v2750, %v2747
    %v2853 = vpack.c.bf16 %v2758, %v2755
    %v2854 = vpack.c.bf16 %v2766, %v2763
    %v2855 = vpack.c.bf16 %v2774, %v2771
    %v2856 = vpack.c.bf16 %v2782, %v2779
    %v2857 = vpack.c.bf16 %v2790, %v2787
    %v2858 = vpack.c.bf16 %v2798, %v2795
    %v2859 = vpack.c.bf16 %v2806, %v2803
    %v2860 = vpack.c.bf16 %v2814, %v2811
    %v2861 = vpack.c.bf16 %v2822, %v2819
    %v2862 = vpack.c.bf16 %v2830, %v2827
    %v2863 = vpack.c.bf16 %v2838, %v2835
    %v2864 = vpack.c.bf16 %v2846, %v2843
    %v2865 = vpack.c.bf16 %v2639, %v2639
    %v2867 = vpack.i.b16 %v2865, %v2865
    %v2869 = vlaneseq
    %v2870 = vshrl.u32 %v2869, 7
    %v2871 = vsub.s32 0, %v2870
    %v2872 = vrot.slane %v2867, %v2871
    %v2873 = vadd.bf16 %v2849, %v2872
    %v2874 = vadd.bf16 %v2850, %v2872
    %v2875 = vadd.bf16 %v2851, %v2872
    %v2876 = vadd.bf16 %v2852, %v2872
    %v2877 = vadd.bf16 %v2853, %v2872
    %v2878 = vadd.bf16 %v2854, %v2872
    %v2879 = vadd.bf16 %v2855, %v2872
    %v2880 = vadd.bf16 %v2856, %v2872
    %v2881 = vadd.bf16 %v2857, %v2872
    %v2882 = vadd.bf16 %v2858, %v2872
    %v2883 = vadd.bf16 %v2859, %v2872
    %v2884 = vadd.bf16 %v2860, %v2872
    %v2885 = vadd.bf16 %v2861, %v2872
    %v2886 = vadd.bf16 %v2862, %v2872
    %v2887 = vadd.bf16 %v2863, %v2872
    %v2888 = vadd.bf16 %v2864, %v2872
    %v2889 = vtanh.bf16.pop %v2873
    %v2890 = vtanh.bf16.pop %v2874
    %v2891 = vtanh.bf16.pop %v2875
    %v2892 = vtanh.bf16.pop %v2876
    %v2893 = vtanh.bf16.pop %v2877
    %v2894 = vtanh.bf16.pop %v2878
    %v2895 = vtanh.bf16.pop %v2879
    %v2896 = vtanh.bf16.pop %v2880
    %v2897 = vtanh.bf16.pop %v2881
    %v2898 = vtanh.bf16.pop %v2882
    %v2899 = vtanh.bf16.pop %v2883
    %v2900 = vtanh.bf16.pop %v2884
    %v2901 = vtanh.bf16.pop %v2885
    %v2902 = vtanh.bf16.pop %v2886
    %v2903 = vtanh.bf16.pop %v2887
    %v2904 = vtanh.bf16.pop %v2888
    %s2905 = scalar_lea.vmem %s2, 576
    %v2906 = vld [vmem:[%s2905] sm:$0xf]
    %v2907 = vld [vmem:[%s2905 + $0x4] sm:$0xf]
    %v2908 = vld [vmem:[%s2905 + $0x8] sm:$0xf]
    %v2909 = vld [vmem:[%s2905 + $0xc] sm:$0xf]
    %v2910 = vld [vmem:[%s2905 + $0x10] sm:$0xf]
    %v2911 = vld [vmem:[%s2905 + $0x14] sm:$0xf]
    %v2912 = vld [vmem:[%s2905 + $0x18] sm:$0xf]
    %v2913 = vld [vmem:[%s2905 + $0x1c] sm:$0xf]
    %v2914 = vld [vmem:[%s2905 + $0x20] sm:$0xf]
    %v2915 = vld [vmem:[%s2905 + $0x24] sm:$0xf]
    %v2916 = vld [vmem:[%s2905 + $0x28] sm:$0xf]
    %v2917 = vld [vmem:[%s2905 + $0x2c] sm:$0xf]
    %v2918 = vld [vmem:[%s2905 + $0x30] sm:$0xf]
    %v2919 = vld [vmem:[%s2905 + $0x34] sm:$0xf]
    %v2920 = vld [vmem:[%s2905 + $0x38] sm:$0xf]
    %v2921 = vld [vmem:[%s2905 + $0x3c] sm:$0xf]
    %s2922 = scalar_lea.vmem %s3, 10
    %v2923 = vld [vmem:[%s2922] sm:$0x1]
    %v2940 = vunpack.c.l.b16 %v2906
    %v2941 = vunpack.c.l.b16 %v2907
    %v2942 = vunpack.c.l.b16 %v2908
    %v2943 = vunpack.c.l.b16 %v2909
    %v2944 = vunpack.c.l.b16 %v2910
    %v2945 = vunpack.c.l.b16 %v2911
    %v2946 = vunpack.c.l.b16 %v2912
    %v2947 = vunpack.c.l.b16 %v2913
    %v2948 = vunpack.c.l.b16 %v2914
    %v2949 = vunpack.c.l.b16 %v2915
    %v2950 = vunpack.c.l.b16 %v2916
    %v2951 = vunpack.c.l.b16 %v2917
    %v2952 = vunpack.c.l.b16 %v2918
    %v2953 = vunpack.c.l.b16 %v2919
    %v2954 = vunpack.c.l.b16 %v2920
    %v2955 = vunpack.c.l.b16 %v2921
    %v2956 = vpack.c.b16 %v2941, %v2940
    %v2957 = vpack.c.b16 %v2943, %v2942
    %v2958 = vpack.c.b16 %v2945, %v2944
    %v2959 = vpack.c.b16 %v2947, %v2946
    %v2960 = vpack.c.b16 %v2949, %v2948
    %v2961 = vpack.c.b16 %v2951, %v2950
    %v2962 = vpack.c.b16 %v2953, %v2952
    %v2963 = vpack.c.b16 %v2955, %v2954
    %2972 = vmatprep.subr.bf16.mxu0 0
    %2973 = vmatpush1.bf16.msra.mxu0 %v2956
    %2974 = vmatprep.subr.bf16.mxu0 0
    %2975 = vmatpush1.bf16.msra.mxu0 %v2957
    %2976 = vmatprep.subr.bf16.mxu0 0
    %2977 = vmatpush1.bf16.msra.mxu0 %v2958
    %2978 = vmatprep.subr.bf16.mxu0 0
    %2979 = vmatpush1.bf16.msra.mxu0 %v2959
    %2980 = vmatprep.subr.bf16.mxu0 0
    %2981 = vmatpush1.bf16.msra.mxu0 %v2960
    %2982 = vmatprep.subr.bf16.mxu0 0
    %2983 = vmatpush1.bf16.msra.mxu0 %v2961
    %2984 = vmatprep.subr.bf16.mxu0 0
    %2985 = vmatpush1.bf16.msra.mxu0 %v2962
    %2986 = vmatprep.subr.bf16.mxu0 0
    %2987 = vmatpush1.bf16.msra.mxu0 %v2963
    %2988 = vmatprep.subr.bf16.mxu0 0
    %2989 = vmatpush1.bf16.msra.mxu0 0
    %2990 = vmatprep.subr.bf16.mxu0 0
    %2991 = vmatpush1.bf16.msra.mxu0 0
    %2992 = vmatprep.subr.bf16.mxu0 0
    %2993 = vmatpush1.bf16.msra.mxu0 0
    %2994 = vmatprep.subr.bf16.mxu0 0
    %2995 = vmatpush1.bf16.msra.mxu0 0
    %2996 = vmatprep.subr.bf16.mxu0 0
    %2997 = vmatpush1.bf16.msra.mxu0 0
    %2998 = vmatprep.subr.bf16.mxu0 0
    %2999 = vmatpush1.bf16.msra.mxu0 0
    %3000 = vmatprep.subr.bf16.mxu0 0
    %3001 = vmatpush1.bf16.msra.mxu0 0
    %3002 = vmatprep.subr.bf16.mxu0 0
    %3003 = vmatpush1.bf16.msra.mxu0 0
    %3004 = vmatprep.mubr.bf16.mxu0 0
    %3005 = vmatmul.mubr.bf16.gmra.mrb[0].mxu0 %v2889
    %v3006 = vpop.f32.mrb[0].mxu0
    %v3007 = vadd.f32 0.0, %v3006
    %v3008 = vpop.f32.mrb[0].mxu0
    %v3009 = vpop.f32.mrb[0].mxu0
    %v3010 = vadd.f32 0.0, %v3009
    %v3011 = vpop.f32.mrb[0].mxu0
    %3012 = vmatprep.mubr.bf16.mxu0 0
    %3013 = vmatmul.mubr.bf16.gmra.mrb[0].mxu0 %v2890
    %v3014 = vpop.f32.mrb[0].mxu0
    %v3015 = vadd.f32 0.0, %v3014
    %v3016 = vpop.f32.mrb[0].mxu0
    %v3017 = vpop.f32.mrb[0].mxu0
    %v3018 = vadd.f32 0.0, %v3017
    %v3019 = vpop.f32.mrb[0].mxu0
    %3020 = vmatprep.mubr.bf16.mxu0 0
    %3021 = vmatmul.mubr.bf16.gmra.mrb[0].mxu0 %v2891
    %v3022 = vpop.f32.mrb[0].mxu0
    %v3023 = vadd.f32 0.0, %v3022
    %v3024 = vpop.f32.mrb[0].mxu0
    %v3025 = vpop.f32.mrb[0].mxu0
    %v3026 = vadd.f32 0.0, %v3025
    %v3027 = vpop.f32.mrb[0].mxu0
    %3028 = vmatprep.mubr.bf16.mxu0 0
    %3029 = vmatmul.mubr.bf16.gmra.mrb[0].mxu0 %v2892
    %v3030 = vpop.f32.mrb[0].mxu0
    %v3031 = vadd.f32 0.0, %v3030
    %v3032 = vpop.f32.mrb[0].mxu0
    %v3033 = vpop.f32.mrb[0].mxu0
    %v3034 = vadd.f32 0.0, %v3033
    %v3035 = vpop.f32.mrb[0].mxu0
    %3036 = vmatprep.mubr.bf16.mxu0 0
    %3037 = vmatmul.mubr.bf16.gmra.mrb[0].mxu0 %v2893
    %v3038 = vpop.f32.mrb[0].mxu0
    %v3039 = vadd.f32 0.0, %v3038
    %v3040 = vpop.f32.mrb[0].mxu0
    %v3041 = vpop.f32.mrb[0].mxu0
    %v3042 = vadd.f32 0.0, %v3041
    %v3043 = vpop.f32.mrb[0].mxu0
    %3044 = vmatprep.mubr.bf16.mxu0 0
    %3045 = vmatmul.mubr.bf16.gmra.mrb[0].mxu0 %v2894
    %v3046 = vpop.f32.mrb[0].mxu0
    %v3047 = vadd.f32 0.0, %v3046
    %v3048 = vpop.f32.mrb[0].mxu0
    %v3049 = vpop.f32.mrb[0].mxu0
    %v3050 = vadd.f32 0.0, %v3049
    %v3051 = vpop.f32.mrb[0].mxu0
    %3052 = vmatprep.mubr.bf16.mxu0 0
    %3053 = vmatmul.mubr.bf16.gmra.mrb[0].mxu0 %v2895
    %v3054 = vpop.f32.mrb[0].mxu0
    %v3055 = vadd.f32 0.0, %v3054
    %v3056 = vpop.f32.mrb[0].mxu0
    %v3057 = vpop.f32.mrb[0].mxu0
    %v3058 = vadd.f32 0.0, %v3057
    %v3059 = vpop.f32.mrb[0].mxu0
    %3060 = vmatprep.mubr.bf16.mxu0 0
    %3061 = vmatmul.mubr.bf16.gmra.mrb[0].mxu0 %v2896
    %v3062 = vpop.f32.mrb[0].mxu0
    %v3063 = vadd.f32 0.0, %v3062
    %v3064 = vpop.f32.mrb[0].mxu0
    %v3065 = vpop.f32.mrb[0].mxu0
    %v3066 = vadd.f32 0.0, %v3065
    %v3067 = vpop.f32.mrb[0].mxu0
    %3068 = vmatprep.mubr.bf16.mxu0 0
    %3069 = vmatmul.mubr.bf16.gmra.mrb[0].mxu0 %v2897
    %v3070 = vpop.f32.mrb[0].mxu0
    %v3071 = vadd.f32 0.0, %v3070
    %v3072 = vpop.f32.mrb[0].mxu0
    %v3073 = vpop.f32.mrb[0].mxu0
    %v3074 = vadd.f32 0.0, %v3073
    %v3075 = vpop.f32.mrb[0].mxu0
    %3076 = vmatprep.mubr.bf16.mxu0 0
    %3077 = vmatmul.mubr.bf16.gmra.mrb[0].mxu0 %v2898
    %v3078 = vpop.f32.mrb[0].mxu0
    %v3079 = vadd.f32 0.0, %v3078
    %v3080 = vpop.f32.mrb[0].mxu0
    %v3081 = vpop.f32.mrb[0].mxu0
    %v3082 = vadd.f32 0.0, %v3081
    %v3083 = vpop.f32.mrb[0].mxu0
    %3084 = vmatprep.mubr.bf16.mxu0 0
    %3085 = vmatmul.mubr.bf16.gmra.mrb[0].mxu0 %v2899
    %v3086 = vpop.f32.mrb[0].mxu0
    %v3087 = vadd.f32 0.0, %v3086
    %v3088 = vpop.f32.mrb[0].mxu0
    %v3089 = vpop.f32.mrb[0].mxu0
    %v3090 = vadd.f32 0.0, %v3089
    %v3091 = vpop.f32.mrb[0].mxu0
    %3092 = vmatprep.mubr.bf16.mxu0 0
    %3093 = vmatmul.mubr.bf16.gmra.mrb[0].mxu0 %v2900
    %v3094 = vpop.f32.mrb[0].mxu0
    %v3095 = vadd.f32 0.0, %v3094
    %v3096 = vpop.f32.mrb[0].mxu0
    %v3097 = vpop.f32.mrb[0].mxu0
    %v3098 = vadd.f32 0.0, %v3097
    %v3099 = vpop.f32.mrb[0].mxu0
    %3100 = vmatprep.mubr.bf16.mxu0 0
    %3101 = vmatmul.mubr.bf16.gmra.mrb[0].mxu0 %v2901
    %v3102 = vpop.f32.mrb[0].mxu0
    %v3103 = vadd.f32 0.0, %v3102
    %v3104 = vpop.f32.mrb[0].mxu0
    %v3105 = vpop.f32.mrb[0].mxu0
    %v3106 = vadd.f32 0.0, %v3105
    %v3107 = vpop.f32.mrb[0].mxu0
    %3108 = vmatprep.mubr.bf16.mxu0 0
    %3109 = vmatmul.mubr.bf16.gmra.mrb[0].mxu0 %v2902
    %v3110 = vpop.f32.mrb[0].mxu0
    %v3111 = vadd.f32 0.0, %v3110
    %v3112 = vpop.f32.mrb[0].mxu0
    %v3113 = vpop.f32.mrb[0].mxu0
    %v3114 = vadd.f32 0.0, %v3113
    %v3115 = vpop.f32.mrb[0].mxu0
    %3116 = vmatprep.mubr.bf16.mxu0 0
    %3117 = vmatmul.mubr.bf16.gmra.mrb[0].mxu0 %v2903
    %v3118 = vpop.f32.mrb[0].mxu0
    %v3119 = vadd.f32 0.0, %v3118
    %v3120 = vpop.f32.mrb[0].mxu0
    %v3121 = vpop.f32.mrb[0].mxu0
    %v3122 = vadd.f32 0.0, %v3121
    %v3123 = vpop.f32.mrb[0].mxu0
    %3124 = vmatprep.mubr.bf16.mxu0 0
    %3125 = vmatmul.mubr.bf16.gmra.mrb[0].mxu0 %v2904
    %v3126 = vpop.f32.mrb[0].mxu0
    %v3127 = vadd.f32 0.0, %v3126
    %v3128 = vpop.f32.mrb[0].mxu0
    %v3129 = vpop.f32.mrb[0].mxu0
    %v3130 = vadd.f32 0.0, %v3129
    %v3131 = vpop.f32.mrb[0].mxu0
    %3132 = vdwg.mxu0
    %v3133 = vpack.c.bf16 %v3010, %v3007
    %v3134 = vpack.c.bf16 %v3018, %v3015
    %v3135 = vpack.c.bf16 %v3026, %v3023
    %v3136 = vpack.c.bf16 %v3034, %v3031
    %v3137 = vpack.c.bf16 %v3042, %v3039
    %v3138 = vpack.c.bf16 %v3050, %v3047
    %v3139 = vpack.c.bf16 %v3058, %v3055
    %v3140 = vpack.c.bf16 %v3066, %v3063
    %v3141 = vpack.c.bf16 %v3074, %v3071
    %v3142 = vpack.c.bf16 %v3082, %v3079
    %v3143 = vpack.c.bf16 %v3090, %v3087
    %v3144 = vpack.c.bf16 %v3098, %v3095
    %v3145 = vpack.c.bf16 %v3106, %v3103
    %v3146 = vpack.c.bf16 %v3114, %v3111
    %v3147 = vpack.c.bf16 %v3122, %v3119
    %v3148 = vpack.c.bf16 %v3130, %v3127
    %v3149 = vpack.c.bf16 %v2923, %v2923
    %v3151 = vpack.i.b16 %v3149, %v3149
    %v3153 = vlaneseq
    %v3154 = vshrl.u32 %v3153, 7
    %v3155 = vsub.s32 0, %v3154
    %v3156 = vrot.slane %v3151, %v3155
    %v3157 = vadd.bf16 %v3133, %v3156
    %v3158 = vadd.bf16 %v3134, %v3156
    %v3159 = vadd.bf16 %v3135, %v3156
    %v3160 = vadd.bf16 %v3136, %v3156
    %v3161 = vadd.bf16 %v3137, %v3156
    %v3162 = vadd.bf16 %v3138, %v3156
    %v3163 = vadd.bf16 %v3139, %v3156
    %v3164 = vadd.bf16 %v3140, %v3156
    %v3165 = vadd.bf16 %v3141, %v3156
    %v3166 = vadd.bf16 %v3142, %v3156
    %v3167 = vadd.bf16 %v3143, %v3156
    %v3168 = vadd.bf16 %v3144, %v3156
    %v3169 = vadd.bf16 %v3145, %v3156
    %v3170 = vadd.bf16 %v3146, %v3156
    %v3171 = vadd.bf16 %v3147, %v3156
    %v3172 = vadd.bf16 %v3148, %v3156
    %v3173 = vtanh.bf16.pop %v3157
    %v3174 = vtanh.bf16.pop %v3158
    %v3175 = vtanh.bf16.pop %v3159
    %v3176 = vtanh.bf16.pop %v3160
    %v3177 = vtanh.bf16.pop %v3161
    %v3178 = vtanh.bf16.pop %v3162
    %v3179 = vtanh.bf16.pop %v3163
    %v3180 = vtanh.bf16.pop %v3164
    %v3181 = vtanh.bf16.pop %v3165
    %v3182 = vtanh.bf16.pop %v3166
    %v3183 = vtanh.bf16.pop %v3167
    %v3184 = vtanh.bf16.pop %v3168
    %v3185 = vtanh.bf16.pop %v3169
    %v3186 = vtanh.bf16.pop %v3170
    %v3187 = vtanh.bf16.pop %v3171
    %v3188 = vtanh.bf16.pop %v3172
    %s3189 = scalar_lea.vmem %s2, 640
    %v3190 = vld [vmem:[%s3189] sm:$0xf]
    %v3191 = vld [vmem:[%s3189 + $0x4] sm:$0xf]
    %v3192 = vld [vmem:[%s3189 + $0x8] sm:$0xf]
    %v3193 = vld [vmem:[%s3189 + $0xc] sm:$0xf]
    %v3194 = vld [vmem:[%s3189 + $0x10] sm:$0xf]
    %v3195 = vld [vmem:[%s3189 + $0x14] sm:$0xf]
    %v3196 = vld [vmem:[%s3189 + $0x18] sm:$0xf]
    %v3197 = vld [vmem:[%s3189 + $0x1c] sm:$0xf]
    %v3198 = vld [vmem:[%s3189 + $0x20] sm:$0xf]
    %v3199 = vld [vmem:[%s3189 + $0x24] sm:$0xf]
    %v3200 = vld [vmem:[%s3189 + $0x28] sm:$0xf]
    %v3201 = vld [vmem:[%s3189 + $0x2c] sm:$0xf]
    %v3202 = vld [vmem:[%s3189 + $0x30] sm:$0xf]
    %v3203 = vld [vmem:[%s3189 + $0x34] sm:$0xf]
    %v3204 = vld [vmem:[%s3189 + $0x38] sm:$0xf]
    %v3205 = vld [vmem:[%s3189 + $0x3c] sm:$0xf]
    %s3206 = scalar_lea.vmem %s3, 11
    %v3207 = vld [vmem:[%s3206] sm:$0x1]
    %v3224 = vunpack.c.l.b16 %v3190
    %v3225 = vunpack.c.l.b16 %v3191
    %v3226 = vunpack.c.l.b16 %v3192
    %v3227 = vunpack.c.l.b16 %v3193
    %v3228 = vunpack.c.l.b16 %v3194
    %v3229 = vunpack.c.l.b16 %v3195
    %v3230 = vunpack.c.l.b16 %v3196
    %v3231 = vunpack.c.l.b16 %v3197
    %v3232 = vunpack.c.l.b16 %v3198
    %v3233 = vunpack.c.l.b16 %v3199
    %v3234 = vunpack.c.l.b16 %v3200
    %v3235 = vunpack.c.l.b16 %v3201
    %v3236 = vunpack.c.l.b16 %v3202
    %v3237 = vunpack.c.l.b16 %v3203
    %v3238 = vunpack.c.l.b16 %v3204
    %v3239 = vunpack.c.l.b16 %v3205
    %v3240 = vpack.c.b16 %v3225, %v3224
    %v3241 = vpack.c.b16 %v3227, %v3226
    %v3242 = vpack.c.b16 %v3229, %v3228
    %v3243 = vpack.c.b16 %v3231, %v3230
    %v3244 = vpack.c.b16 %v3233, %v3232
    %v3245 = vpack.c.b16 %v3235, %v3234
    %v3246 = vpack.c.b16 %v3237, %v3236
    %v3247 = vpack.c.b16 %v3239, %v3238
    %3256 = vmatprep.subr.bf16.mxu0 0
    %3257 = vmatpush1.bf16.msra.mxu0 %v3240
    %3258 = vmatprep.subr.bf16.mxu0 0
    %3259 = vmatpush1.bf16.msra.mxu0 %v3241
    %3260 = vmatprep.subr.bf16.mxu0 0
    %3261 = vmatpush1.bf16.msra.mxu0 %v3242
    %3262 = vmatprep.subr.bf16.mxu0 0
    %3263 = vmatpush1.bf16.msra.mxu0 %v3243
    %3264 = vmatprep.subr.bf16.mxu0 0
    %3265 = vmatpush1.bf16.msra.mxu0 %v3244
    %3266 = vmatprep.subr.bf16.mxu0 0
    %3267 = vmatpush1.bf16.msra.mxu0 %v3245
    %3268 = vmatprep.subr.bf16.mxu0 0
    %3269 = vmatpush1.bf16.msra.mxu0 %v3246
    %3270 = vmatprep.subr.bf16.mxu0 0
    %3271 = vmatpush1.bf16.msra.mxu0 %v3247
    %3272 = vmatprep.subr.bf16.mxu0 0
    %3273 = vmatpush1.bf16.msra.mxu0 0
    %3274 = vmatprep.subr.bf16.mxu0 0
    %3275 = vmatpush1.bf16.msra.mxu0 0
    %3276 = vmatprep.subr.bf16.mxu0 0
    %3277 = vmatpush1.bf16.msra.mxu0 0
    %3278 = vmatprep.subr.bf16.mxu0 0
    %3279 = vmatpush1.bf16.msra.mxu0 0
    %3280 = vmatprep.subr.bf16.mxu0 0
    %3281 = vmatpush1.bf16.msra.mxu0 0
    %3282 = vmatprep.subr.bf16.mxu0 0
    %3283 = vmatpush1.bf16.msra.mxu0 0
    %3284 = vmatprep.subr.bf16.mxu0 0
    %3285 = vmatpush1.bf16.msra.mxu0 0
    %3286 = vmatprep.subr.bf16.mxu0 0
    %3287 = vmatpush1.bf16.msra.mxu0 0
    %3288 = vmatprep.mubr.bf16.mxu0 0
    %3289 = vmatmul.mubr.bf16.gmra.mrb[0].mxu0 %v3173
    %v3290 = vpop.f32.mrb[0].mxu0
    %v3291 = vadd.f32 0.0, %v3290
    %v3292 = vpop.f32.mrb[0].mxu0
    %v3293 = vpop.f32.mrb[0].mxu0
    %v3294 = vadd.f32 0.0, %v3293
    %v3295 = vpop.f32.mrb[0].mxu0
    %3296 = vmatprep.mubr.bf16.mxu0 0
    %3297 = vmatmul.mubr.bf16.gmra.mrb[0].mxu0 %v3174
    %v3298 = vpop.f32.mrb[0].mxu0
    %v3299 = vadd.f32 0.0, %v3298
    %v3300 = vpop.f32.mrb[0].mxu0
    %v3301 = vpop.f32.mrb[0].mxu0
    %v3302 = vadd.f32 0.0, %v3301
    %v3303 = vpop.f32.mrb[0].mxu0
    %3304 = vmatprep.mubr.bf16.mxu0 0
    %3305 = vmatmul.mubr.bf16.gmra.mrb[0].mxu0 %v3175
    %v3306 = vpop.f32.mrb[0].mxu0
    %v3307 = vadd.f32 0.0, %v3306
    %v3308 = vpop.f32.mrb[0].mxu0
    %v3309 = vpop.f32.mrb[0].mxu0
    %v3310 = vadd.f32 0.0, %v3309
    %v3311 = vpop.f32.mrb[0].mxu0
    %3312 = vmatprep.mubr.bf16.mxu0 0
    %3313 = vmatmul.mubr.bf16.gmra.mrb[0].mxu0 %v3176
    %v3314 = vpop.f32.mrb[0].mxu0
    %v3315 = vadd.f32 0.0, %v3314
    %v3316 = vpop.f32.mrb[0].mxu0
    %v3317 = vpop.f32.mrb[0].mxu0
    %v3318 = vadd.f32 0.0, %v3317
    %v3319 = vpop.f32.mrb[0].mxu0
    %3320 = vmatprep.mubr.bf16.mxu0 0
    %3321 = vmatmul.mubr.bf16.gmra.mrb[0].mxu0 %v3177
    %v3322 = vpop.f32.mrb[0].mxu0
    %v3323 = vadd.f32 0.0, %v3322
    %v3324 = vpop.f32.mrb[0].mxu0
    %v3325 = vpop.f32.mrb[0].mxu0
    %v3326 = vadd.f32 0.0, %v3325
    %v3327 = vpop.f32.mrb[0].mxu0
    %3328 = vmatprep.mubr.bf16.mxu0 0
    %3329 = vmatmul.mubr.bf16.gmra.mrb[0].mxu0 %v3178
    %v3330 = vpop.f32.mrb[0].mxu0
    %v3331 = vadd.f32 0.0, %v3330
    %v3332 = vpop.f32.mrb[0].mxu0
    %v3333 = vpop.f32.mrb[0].mxu0
    %v3334 = vadd.f32 0.0, %v3333
    %v3335 = vpop.f32.mrb[0].mxu0
    %3336 = vmatprep.mubr.bf16.mxu0 0
    %3337 = vmatmul.mubr.bf16.gmra.mrb[0].mxu0 %v3179
    %v3338 = vpop.f32.mrb[0].mxu0
    %v3339 = vadd.f32 0.0, %v3338
    %v3340 = vpop.f32.mrb[0].mxu0
    %v3341 = vpop.f32.mrb[0].mxu0
    %v3342 = vadd.f32 0.0, %v3341
    %v3343 = vpop.f32.mrb[0].mxu0
    %3344 = vmatprep.mubr.bf16.mxu0 0
    %3345 = vmatmul.mubr.bf16.gmra.mrb[0].mxu0 %v3180
    %v3346 = vpop.f32.mrb[0].mxu0
    %v3347 = vadd.f32 0.0, %v3346
    %v3348 = vpop.f32.mrb[0].mxu0
    %v3349 = vpop.f32.mrb[0].mxu0
    %v3350 = vadd.f32 0.0, %v3349
    %v3351 = vpop.f32.mrb[0].mxu0
    %3352 = vmatprep.mubr.bf16.mxu0 0
    %3353 = vmatmul.mubr.bf16.gmra.mrb[0].mxu0 %v3181
    %v3354 = vpop.f32.mrb[0].mxu0
    %v3355 = vadd.f32 0.0, %v3354
    %v3356 = vpop.f32.mrb[0].mxu0
    %v3357 = vpop.f32.mrb[0].mxu0
    %v3358 = vadd.f32 0.0, %v3357
    %v3359 = vpop.f32.mrb[0].mxu0
    %3360 = vmatprep.mubr.bf16.mxu0 0
    %3361 = vmatmul.mubr.bf16.gmra.mrb[0].mxu0 %v3182
    %v3362 = vpop.f32.mrb[0].mxu0
    %v3363 = vadd.f32 0.0, %v3362
    %v3364 = vpop.f32.mrb[0].mxu0
    %v3365 = vpop.f32.mrb[0].mxu0
    %v3366 = vadd.f32 0.0, %v3365
    %v3367 = vpop.f32.mrb[0].mxu0
    %3368 = vmatprep.mubr.bf16.mxu0 0
    %3369 = vmatmul.mubr.bf16.gmra.mrb[0].mxu0 %v3183
    %v3370 = vpop.f32.mrb[0].mxu0
    %v3371 = vadd.f32 0.0, %v3370
    %v3372 = vpop.f32.mrb[0].mxu0
    %v3373 = vpop.f32.mrb[0].mxu0
    %v3374 = vadd.f32 0.0, %v3373
    %v3375 = vpop.f32.mrb[0].mxu0
    %3376 = vmatprep.mubr.bf16.mxu0 0
    %3377 = vmatmul.mubr.bf16.gmra.mrb[0].mxu0 %v3184
    %v3378 = vpop.f32.mrb[0].mxu0
    %v3379 = vadd.f32 0.0, %v3378
    %v3380 = vpop.f32.mrb[0].mxu0
    %v3381 = vpop.f32.mrb[0].mxu0
    %v3382 = vadd.f32 0.0, %v3381
    %v3383 = vpop.f32.mrb[0].mxu0
    %3384 = vmatprep.mubr.bf16.mxu0 0
    %3385 = vmatmul.mubr.bf16.gmra.mrb[0].mxu0 %v3185
    %v3386 = vpop.f32.mrb[0].mxu0
    %v3387 = vadd.f32 0.0, %v3386
    %v3388 = vpop.f32.mrb[0].mxu0
    %v3389 = vpop.f32.mrb[0].mxu0
    %v3390 = vadd.f32 0.0, %v3389
    %v3391 = vpop.f32.mrb[0].mxu0
    %3392 = vmatprep.mubr.bf16.mxu0 0
    %3393 = vmatmul.mubr.bf16.gmra.mrb[0].mxu0 %v3186
    %v3394 = vpop.f32.mrb[0].mxu0
    %v3395 = vadd.f32 0.0, %v3394
    %v3396 = vpop.f32.mrb[0].mxu0
    %v3397 = vpop.f32.mrb[0].mxu0
    %v3398 = vadd.f32 0.0, %v3397
    %v3399 = vpop.f32.mrb[0].mxu0
    %3400 = vmatprep.mubr.bf16.mxu0 0
    %3401 = vmatmul.mubr.bf16.gmra.mrb[0].mxu0 %v3187
    %v3402 = vpop.f32.mrb[0].mxu0
    %v3403 = vadd.f32 0.0, %v3402
    %v3404 = vpop.f32.mrb[0].mxu0
    %v3405 = vpop.f32.mrb[0].mxu0
    %v3406 = vadd.f32 0.0, %v3405
    %v3407 = vpop.f32.mrb[0].mxu0
    %3408 = vmatprep.mubr.bf16.mxu0 0
    %3409 = vmatmul.mubr.bf16.gmra.mrb[0].mxu0 %v3188
    %v3410 = vpop.f32.mrb[0].mxu0
    %v3411 = vadd.f32 0.0, %v3410
    %v3412 = vpop.f32.mrb[0].mxu0
    %v3413 = vpop.f32.mrb[0].mxu0
    %v3414 = vadd.f32 0.0, %v3413
    %v3415 = vpop.f32.mrb[0].mxu0
    %3416 = vdwg.mxu0
    %v3417 = vpack.c.bf16 %v3294, %v3291
    %v3418 = vpack.c.bf16 %v3302, %v3299
    %v3419 = vpack.c.bf16 %v3310, %v3307
    %v3420 = vpack.c.bf16 %v3318, %v3315
    %v3421 = vpack.c.bf16 %v3326, %v3323
    %v3422 = vpack.c.bf16 %v3334, %v3331
    %v3423 = vpack.c.bf16 %v3342, %v3339
    %v3424 = vpack.c.bf16 %v3350, %v3347
    %v3425 = vpack.c.bf16 %v3358, %v3355
    %v3426 = vpack.c.bf16 %v3366, %v3363
    %v3427 = vpack.c.bf16 %v3374, %v3371
    %v3428 = vpack.c.bf16 %v3382, %v3379
    %v3429 = vpack.c.bf16 %v3390, %v3387
    %v3430 = vpack.c.bf16 %v3398, %v3395
    %v3431 = vpack.c.bf16 %v3406, %v3403
    %v3432 = vpack.c.bf16 %v3414, %v3411
    %v3433 = vpack.c.bf16 %v3207, %v3207
    %v3435 = vpack.i.b16 %v3433, %v3433
    %v3437 = vlaneseq
    %v3438 = vshrl.u32 %v3437, 7
    %v3439 = vsub.s32 0, %v3438
    %v3440 = vrot.slane %v3435, %v3439
    %v3441 = vadd.bf16 %v3417, %v3440
    %v3442 = vadd.bf16 %v3418, %v3440
    %v3443 = vadd.bf16 %v3419, %v3440
    %v3444 = vadd.bf16 %v3420, %v3440
    %v3445 = vadd.bf16 %v3421, %v3440
    %v3446 = vadd.bf16 %v3422, %v3440
    %v3447 = vadd.bf16 %v3423, %v3440
    %v3448 = vadd.bf16 %v3424, %v3440
    %v3449 = vadd.bf16 %v3425, %v3440
    %v3450 = vadd.bf16 %v3426, %v3440
    %v3451 = vadd.bf16 %v3427, %v3440
    %v3452 = vadd.bf16 %v3428, %v3440
    %v3453 = vadd.bf16 %v3429, %v3440
    %v3454 = vadd.bf16 %v3430, %v3440
    %v3455 = vadd.bf16 %v3431, %v3440
    %v3456 = vadd.bf16 %v3432, %v3440
    %v3457 = vtanh.bf16.pop %v3441
    %v3458 = vtanh.bf16.pop %v3442
    %v3459 = vtanh.bf16.pop %v3443
    %v3460 = vtanh.bf16.pop %v3444
    %v3461 = vtanh.bf16.pop %v3445
    %v3462 = vtanh.bf16.pop %v3446
    %v3463 = vtanh.bf16.pop %v3447
    %v3464 = vtanh.bf16.pop %v3448
    %v3465 = vtanh.bf16.pop %v3449
    %v3466 = vtanh.bf16.pop %v3450
    %v3467 = vtanh.bf16.pop %v3451
    %v3468 = vtanh.bf16.pop %v3452
    %v3469 = vtanh.bf16.pop %v3453
    %v3470 = vtanh.bf16.pop %v3454
    %v3471 = vtanh.bf16.pop %v3455
    %v3472 = vtanh.bf16.pop %v3456
    %s3473 = scalar_lea.vmem %s2, 704
    %v3474 = vld [vmem:[%s3473] sm:$0xf]
    %v3475 = vld [vmem:[%s3473 + $0x4] sm:$0xf]
    %v3476 = vld [vmem:[%s3473 + $0x8] sm:$0xf]
    %v3477 = vld [vmem:[%s3473 + $0xc] sm:$0xf]
    %v3478 = vld [vmem:[%s3473 + $0x10] sm:$0xf]
    %v3479 = vld [vmem:[%s3473 + $0x14] sm:$0xf]
    %v3480 = vld [vmem:[%s3473 + $0x18] sm:$0xf]
    %v3481 = vld [vmem:[%s3473 + $0x1c] sm:$0xf]
    %v3482 = vld [vmem:[%s3473 + $0x20] sm:$0xf]
    %v3483 = vld [vmem:[%s3473 + $0x24] sm:$0xf]
    %v3484 = vld [vmem:[%s3473 + $0x28] sm:$0xf]
    %v3485 = vld [vmem:[%s3473 + $0x2c] sm:$0xf]
    %v3486 = vld [vmem:[%s3473 + $0x30] sm:$0xf]
    %v3487 = vld [vmem:[%s3473 + $0x34] sm:$0xf]
    %v3488 = vld [vmem:[%s3473 + $0x38] sm:$0xf]
    %v3489 = vld [vmem:[%s3473 + $0x3c] sm:$0xf]
    %s3490 = scalar_lea.vmem %s3, 12
    %v3491 = vld [vmem:[%s3490] sm:$0x1]
    %v3508 = vunpack.c.l.b16 %v3474
    %v3509 = vunpack.c.l.b16 %v3475
    %v3510 = vunpack.c.l.b16 %v3476
    %v3511 = vunpack.c.l.b16 %v3477
    %v3512 = vunpack.c.l.b16 %v3478
    %v3513 = vunpack.c.l.b16 %v3479
    %v3514 = vunpack.c.l.b16 %v3480
    %v3515 = vunpack.c.l.b16 %v3481
    %v3516 = vunpack.c.l.b16 %v3482
    %v3517 = vunpack.c.l.b16 %v3483
    %v3518 = vunpack.c.l.b16 %v3484
    %v3519 = vunpack.c.l.b16 %v3485
    %v3520 = vunpack.c.l.b16 %v3486
    %v3521 = vunpack.c.l.b16 %v3487
    %v3522 = vunpack.c.l.b16 %v3488
    %v3523 = vunpack.c.l.b16 %v3489
    %v3524 = vpack.c.b16 %v3509, %v3508
    %v3525 = vpack.c.b16 %v3511, %v3510
    %v3526 = vpack.c.b16 %v3513, %v3512
    %v3527 = vpack.c.b16 %v3515, %v3514
    %v3528 = vpack.c.b16 %v3517, %v3516
    %v3529 = vpack.c.b16 %v3519, %v3518
    %v3530 = vpack.c.b16 %v3521, %v3520
    %v3531 = vpack.c.b16 %v3523, %v3522
    %3540 = vmatprep.subr.bf16.mxu0 0
    %3541 = vmatpush1.bf16.msra.mxu0 %v3524
    %3542 = vmatprep.subr.bf16.mxu0 0
    %3543 = vmatpush1.bf16.msra.mxu0 %v3525
    %3544 = vmatprep.subr.bf16.mxu0 0
    %3545 = vmatpush1.bf16.msra.mxu0 %v3526
    %3546 = vmatprep.subr.bf16.mxu0 0
    %3547 = vmatpush1.bf16.msra.mxu0 %v3527
    %3548 = vmatprep.subr.bf16.mxu0 0
    %3549 = vmatpush1.bf16.msra.mxu0 %v3528
    %3550 = vmatprep.subr.bf16.mxu0 0
    %3551 = vmatpush1.bf16.msra.mxu0 %v3529
    %3552 = vmatprep.subr.bf16.mxu0 0
    %3553 = vmatpush1.bf16.msra.mxu0 %v3530
    %3554 = vmatprep.subr.bf16.mxu0 0
    %3555 = vmatpush1.bf16.msra.mxu0 %v3531
    %3556 = vmatprep.subr.bf16.mxu0 0
    %3557 = vmatpush1.bf16.msra.mxu0 0
    %3558 = vmatprep.subr.bf16.mxu0 0
    %3559 = vmatpush1.bf16.msra.mxu0 0
    %3560 = vmatprep.subr.bf16.mxu0 0
    %3561 = vmatpush1.bf16.msra.mxu0 0
    %3562 = vmatprep.subr.bf16.mxu0 0
    %3563 = vmatpush1.bf16.msra.mxu0 0
    %3564 = vmatprep.subr.bf16.mxu0 0
    %3565 = vmatpush1.bf16.msra.mxu0 0
    %3566 = vmatprep.subr.bf16.mxu0 0
    %3567 = vmatpush1.bf16.msra.mxu0 0
    %3568 = vmatprep.subr.bf16.mxu0 0
    %3569 = vmatpush1.bf16.msra.mxu0 0
    %3570 = vmatprep.subr.bf16.mxu0 0
    %3571 = vmatpush1.bf16.msra.mxu0 0
    %3572 = vmatprep.mubr.bf16.mxu0 0
    %3573 = vmatmul.mubr.bf16.gmra.mrb[0].mxu0 %v3457
    %v3574 = vpop.f32.mrb[0].mxu0
    %v3575 = vadd.f32 0.0, %v3574
    %v3576 = vpop.f32.mrb[0].mxu0
    %v3577 = vpop.f32.mrb[0].mxu0
    %v3578 = vadd.f32 0.0, %v3577
    %v3579 = vpop.f32.mrb[0].mxu0
    %3580 = vmatprep.mubr.bf16.mxu0 0
    %3581 = vmatmul.mubr.bf16.gmra.mrb[0].mxu0 %v3458
    %v3582 = vpop.f32.mrb[0].mxu0
    %v3583 = vadd.f32 0.0, %v3582
    %v3584 = vpop.f32.mrb[0].mxu0
    %v3585 = vpop.f32.mrb[0].mxu0
    %v3586 = vadd.f32 0.0, %v3585
    %v3587 = vpop.f32.mrb[0].mxu0
    %3588 = vmatprep.mubr.bf16.mxu0 0
    %3589 = vmatmul.mubr.bf16.gmra.mrb[0].mxu0 %v3459
    %v3590 = vpop.f32.mrb[0].mxu0
    %v3591 = vadd.f32 0.0, %v3590
    %v3592 = vpop.f32.mrb[0].mxu0
    %v3593 = vpop.f32.mrb[0].mxu0
    %v3594 = vadd.f32 0.0, %v3593
    %v3595 = vpop.f32.mrb[0].mxu0
    %3596 = vmatprep.mubr.bf16.mxu0 0
    %3597 = vmatmul.mubr.bf16.gmra.mrb[0].mxu0 %v3460
    %v3598 = vpop.f32.mrb[0].mxu0
    %v3599 = vadd.f32 0.0, %v3598
    %v3600 = vpop.f32.mrb[0].mxu0
    %v3601 = vpop.f32.mrb[0].mxu0
    %v3602 = vadd.f32 0.0, %v3601
    %v3603 = vpop.f32.mrb[0].mxu0
    %3604 = vmatprep.mubr.bf16.mxu0 0
    %3605 = vmatmul.mubr.bf16.gmra.mrb[0].mxu0 %v3461
    %v3606 = vpop.f32.mrb[0].mxu0
    %v3607 = vadd.f32 0.0, %v3606
    %v3608 = vpop.f32.mrb[0].mxu0
    %v3609 = vpop.f32.mrb[0].mxu0
    %v3610 = vadd.f32 0.0, %v3609
    %v3611 = vpop.f32.mrb[0].mxu0
    %3612 = vmatprep.mubr.bf16.mxu0 0
    %3613 = vmatmul.mubr.bf16.gmra.mrb[0].mxu0 %v3462
    %v3614 = vpop.f32.mrb[0].mxu0
    %v3615 = vadd.f32 0.0, %v3614
    %v3616 = vpop.f32.mrb[0].mxu0
    %v3617 = vpop.f32.mrb[0].mxu0
    %v3618 = vadd.f32 0.0, %v3617
    %v3619 = vpop.f32.mrb[0].mxu0
    %3620 = vmatprep.mubr.bf16.mxu0 0
    %3621 = vmatmul.mubr.bf16.gmra.mrb[0].mxu0 %v3463
    %v3622 = vpop.f32.mrb[0].mxu0
    %v3623 = vadd.f32 0.0, %v3622
    %v3624 = vpop.f32.mrb[0].mxu0
    %v3625 = vpop.f32.mrb[0].mxu0
    %v3626 = vadd.f32 0.0, %v3625
    %v3627 = vpop.f32.mrb[0].mxu0
    %3628 = vmatprep.mubr.bf16.mxu0 0
    %3629 = vmatmul.mubr.bf16.gmra.mrb[0].mxu0 %v3464
    %v3630 = vpop.f32.mrb[0].mxu0
    %v3631 = vadd.f32 0.0, %v3630
    %v3632 = vpop.f32.mrb[0].mxu0
    %v3633 = vpop.f32.mrb[0].mxu0
    %v3634 = vadd.f32 0.0, %v3633
    %v3635 = vpop.f32.mrb[0].mxu0
    %3636 = vmatprep.mubr.bf16.mxu0 0
    %3637 = vmatmul.mubr.bf16.gmra.mrb[0].mxu0 %v3465
    %v3638 = vpop.f32.mrb[0].mxu0
    %v3639 = vadd.f32 0.0, %v3638
    %v3640 = vpop.f32.mrb[0].mxu0
    %v3641 = vpop.f32.mrb[0].mxu0
    %v3642 = vadd.f32 0.0, %v3641
    %v3643 = vpop.f32.mrb[0].mxu0
    %3644 = vmatprep.mubr.bf16.mxu0 0
    %3645 = vmatmul.mubr.bf16.gmra.mrb[0].mxu0 %v3466
    %v3646 = vpop.f32.mrb[0].mxu0
    %v3647 = vadd.f32 0.0, %v3646
    %v3648 = vpop.f32.mrb[0].mxu0
    %v3649 = vpop.f32.mrb[0].mxu0
    %v3650 = vadd.f32 0.0, %v3649
    %v3651 = vpop.f32.mrb[0].mxu0
    %3652 = vmatprep.mubr.bf16.mxu0 0
    %3653 = vmatmul.mubr.bf16.gmra.mrb[0].mxu0 %v3467
    %v3654 = vpop.f32.mrb[0].mxu0
    %v3655 = vadd.f32 0.0, %v3654
    %v3656 = vpop.f32.mrb[0].mxu0
    %v3657 = vpop.f32.mrb[0].mxu0
    %v3658 = vadd.f32 0.0, %v3657
    %v3659 = vpop.f32.mrb[0].mxu0
    %3660 = vmatprep.mubr.bf16.mxu0 0
    %3661 = vmatmul.mubr.bf16.gmra.mrb[0].mxu0 %v3468
    %v3662 = vpop.f32.mrb[0].mxu0
    %v3663 = vadd.f32 0.0, %v3662
    %v3664 = vpop.f32.mrb[0].mxu0
    %v3665 = vpop.f32.mrb[0].mxu0
    %v3666 = vadd.f32 0.0, %v3665
    %v3667 = vpop.f32.mrb[0].mxu0
    %3668 = vmatprep.mubr.bf16.mxu0 0
    %3669 = vmatmul.mubr.bf16.gmra.mrb[0].mxu0 %v3469
    %v3670 = vpop.f32.mrb[0].mxu0
    %v3671 = vadd.f32 0.0, %v3670
    %v3672 = vpop.f32.mrb[0].mxu0
    %v3673 = vpop.f32.mrb[0].mxu0
    %v3674 = vadd.f32 0.0, %v3673
    %v3675 = vpop.f32.mrb[0].mxu0
    %3676 = vmatprep.mubr.bf16.mxu0 0
    %3677 = vmatmul.mubr.bf16.gmra.mrb[0].mxu0 %v3470
    %v3678 = vpop.f32.mrb[0].mxu0
    %v3679 = vadd.f32 0.0, %v3678
    %v3680 = vpop.f32.mrb[0].mxu0
    %v3681 = vpop.f32.mrb[0].mxu0
    %v3682 = vadd.f32 0.0, %v3681
    %v3683 = vpop.f32.mrb[0].mxu0
    %3684 = vmatprep.mubr.bf16.mxu0 0
    %3685 = vmatmul.mubr.bf16.gmra.mrb[0].mxu0 %v3471
    %v3686 = vpop.f32.mrb[0].mxu0
    %v3687 = vadd.f32 0.0, %v3686
    %v3688 = vpop.f32.mrb[0].mxu0
    %v3689 = vpop.f32.mrb[0].mxu0
    %v3690 = vadd.f32 0.0, %v3689
    %v3691 = vpop.f32.mrb[0].mxu0
    %3692 = vmatprep.mubr.bf16.mxu0 0
    %3693 = vmatmul.mubr.bf16.gmra.mrb[0].mxu0 %v3472
    %v3694 = vpop.f32.mrb[0].mxu0
    %v3695 = vadd.f32 0.0, %v3694
    %v3696 = vpop.f32.mrb[0].mxu0
    %v3697 = vpop.f32.mrb[0].mxu0
    %v3698 = vadd.f32 0.0, %v3697
    %v3699 = vpop.f32.mrb[0].mxu0
    %3700 = vdwg.mxu0
    %v3701 = vpack.c.bf16 %v3578, %v3575
    %v3702 = vpack.c.bf16 %v3586, %v3583
    %v3703 = vpack.c.bf16 %v3594, %v3591
    %v3704 = vpack.c.bf16 %v3602, %v3599
    %v3705 = vpack.c.bf16 %v3610, %v3607
    %v3706 = vpack.c.bf16 %v3618, %v3615
    %v3707 = vpack.c.bf16 %v3626, %v3623
    %v3708 = vpack.c.bf16 %v3634, %v3631
    %v3709 = vpack.c.bf16 %v3642, %v3639
    %v3710 = vpack.c.bf16 %v3650, %v3647
    %v3711 = vpack.c.bf16 %v3658, %v3655
    %v3712 = vpack.c.bf16 %v3666, %v3663
    %v3713 = vpack.c.bf16 %v3674, %v3671
    %v3714 = vpack.c.bf16 %v3682, %v3679
    %v3715 = vpack.c.bf16 %v3690, %v3687
    %v3716 = vpack.c.bf16 %v3698, %v3695
    %v3717 = vpack.c.bf16 %v3491, %v3491
    %v3719 = vpack.i.b16 %v3717, %v3717
    %v3721 = vlaneseq
    %v3722 = vshrl.u32 %v3721, 7
    %v3723 = vsub.s32 0, %v3722
    %v3724 = vrot.slane %v3719, %v3723
    %v3725 = vadd.bf16 %v3701, %v3724
    %v3726 = vadd.bf16 %v3702, %v3724
    %v3727 = vadd.bf16 %v3703, %v3724
    %v3728 = vadd.bf16 %v3704, %v3724
    %v3729 = vadd.bf16 %v3705, %v3724
    %v3730 = vadd.bf16 %v3706, %v3724
    %v3731 = vadd.bf16 %v3707, %v3724
    %v3732 = vadd.bf16 %v3708, %v3724
    %v3733 = vadd.bf16 %v3709, %v3724
    %v3734 = vadd.bf16 %v3710, %v3724
    %v3735 = vadd.bf16 %v3711, %v3724
    %v3736 = vadd.bf16 %v3712, %v3724
    %v3737 = vadd.bf16 %v3713, %v3724
    %v3738 = vadd.bf16 %v3714, %v3724
    %v3739 = vadd.bf16 %v3715, %v3724
    %v3740 = vadd.bf16 %v3716, %v3724
    %v3741 = vtanh.bf16.pop %v3725
    %v3742 = vtanh.bf16.pop %v3726
    %v3743 = vtanh.bf16.pop %v3727
    %v3744 = vtanh.bf16.pop %v3728
    %v3745 = vtanh.bf16.pop %v3729
    %v3746 = vtanh.bf16.pop %v3730
    %v3747 = vtanh.bf16.pop %v3731
    %v3748 = vtanh.bf16.pop %v3732
    %v3749 = vtanh.bf16.pop %v3733
    %v3750 = vtanh.bf16.pop %v3734
    %v3751 = vtanh.bf16.pop %v3735
    %v3752 = vtanh.bf16.pop %v3736
    %v3753 = vtanh.bf16.pop %v3737
    %v3754 = vtanh.bf16.pop %v3738
    %v3755 = vtanh.bf16.pop %v3739
    %v3756 = vtanh.bf16.pop %v3740
    %s3757 = scalar_lea.vmem %s2, 768
    %v3758 = vld [vmem:[%s3757] sm:$0xf]
    %v3759 = vld [vmem:[%s3757 + $0x4] sm:$0xf]
    %v3760 = vld [vmem:[%s3757 + $0x8] sm:$0xf]
    %v3761 = vld [vmem:[%s3757 + $0xc] sm:$0xf]
    %v3762 = vld [vmem:[%s3757 + $0x10] sm:$0xf]
    %v3763 = vld [vmem:[%s3757 + $0x14] sm:$0xf]
    %v3764 = vld [vmem:[%s3757 + $0x18] sm:$0xf]
    %v3765 = vld [vmem:[%s3757 + $0x1c] sm:$0xf]
    %v3766 = vld [vmem:[%s3757 + $0x20] sm:$0xf]
    %v3767 = vld [vmem:[%s3757 + $0x24] sm:$0xf]
    %v3768 = vld [vmem:[%s3757 + $0x28] sm:$0xf]
    %v3769 = vld [vmem:[%s3757 + $0x2c] sm:$0xf]
    %v3770 = vld [vmem:[%s3757 + $0x30] sm:$0xf]
    %v3771 = vld [vmem:[%s3757 + $0x34] sm:$0xf]
    %v3772 = vld [vmem:[%s3757 + $0x38] sm:$0xf]
    %v3773 = vld [vmem:[%s3757 + $0x3c] sm:$0xf]
    %s3774 = scalar_lea.vmem %s3, 13
    %v3775 = vld [vmem:[%s3774] sm:$0x1]
    %v3792 = vunpack.c.l.b16 %v3758
    %v3793 = vunpack.c.l.b16 %v3759
    %v3794 = vunpack.c.l.b16 %v3760
    %v3795 = vunpack.c.l.b16 %v3761
    %v3796 = vunpack.c.l.b16 %v3762
    %v3797 = vunpack.c.l.b16 %v3763
    %v3798 = vunpack.c.l.b16 %v3764
    %v3799 = vunpack.c.l.b16 %v3765
    %v3800 = vunpack.c.l.b16 %v3766
    %v3801 = vunpack.c.l.b16 %v3767
    %v3802 = vunpack.c.l.b16 %v3768
    %v3803 = vunpack.c.l.b16 %v3769
    %v3804 = vunpack.c.l.b16 %v3770
    %v3805 = vunpack.c.l.b16 %v3771
    %v3806 = vunpack.c.l.b16 %v3772
    %v3807 = vunpack.c.l.b16 %v3773
    %v3808 = vpack.c.b16 %v3793, %v3792
    %v3809 = vpack.c.b16 %v3795, %v3794
    %v3810 = vpack.c.b16 %v3797, %v3796
    %v3811 = vpack.c.b16 %v3799, %v3798
    %v3812 = vpack.c.b16 %v3801, %v3800
    %v3813 = vpack.c.b16 %v3803, %v3802
    %v3814 = vpack.c.b16 %v3805, %v3804
    %v3815 = vpack.c.b16 %v3807, %v3806
    %3824 = vmatprep.subr.bf16.mxu0 0
    %3825 = vmatpush1.bf16.msra.mxu0 %v3808
    %3826 = vmatprep.subr.bf16.mxu0 0
    %3827 = vmatpush1.bf16.msra.mxu0 %v3809
    %3828 = vmatprep.subr.bf16.mxu0 0
    %3829 = vmatpush1.bf16.msra.mxu0 %v3810
    %3830 = vmatprep.subr.bf16.mxu0 0
    %3831 = vmatpush1.bf16.msra.mxu0 %v3811
    %3832 = vmatprep.subr.bf16.mxu0 0
    %3833 = vmatpush1.bf16.msra.mxu0 %v3812
    %3834 = vmatprep.subr.bf16.mxu0 0
    %3835 = vmatpush1.bf16.msra.mxu0 %v3813
    %3836 = vmatprep.subr.bf16.mxu0 0
    %3837 = vmatpush1.bf16.msra.mxu0 %v3814
    %3838 = vmatprep.subr.bf16.mxu0 0
    %3839 = vmatpush1.bf16.msra.mxu0 %v3815
    %3840 = vmatprep.subr.bf16.mxu0 0
    %3841 = vmatpush1.bf16.msra.mxu0 0
    %3842 = vmatprep.subr.bf16.mxu0 0
    %3843 = vmatpush1.bf16.msra.mxu0 0
    %3844 = vmatprep.subr.bf16.mxu0 0
    %3845 = vmatpush1.bf16.msra.mxu0 0
    %3846 = vmatprep.subr.bf16.mxu0 0
    %3847 = vmatpush1.bf16.msra.mxu0 0
    %3848 = vmatprep.subr.bf16.mxu0 0
    %3849 = vmatpush1.bf16.msra.mxu0 0
    %3850 = vmatprep.subr.bf16.mxu0 0
    %3851 = vmatpush1.bf16.msra.mxu0 0
    %3852 = vmatprep.subr.bf16.mxu0 0
    %3853 = vmatpush1.bf16.msra.mxu0 0
    %3854 = vmatprep.subr.bf16.mxu0 0
    %3855 = vmatpush1.bf16.msra.mxu0 0
    %3856 = vmatprep.mubr.bf16.mxu0 0
    %3857 = vmatmul.mubr.bf16.gmra.mrb[0].mxu0 %v3741
    %v3858 = vpop.f32.mrb[0].mxu0
    %v3859 = vadd.f32 0.0, %v3858
    %v3860 = vpop.f32.mrb[0].mxu0
    %v3861 = vpop.f32.mrb[0].mxu0
    %v3862 = vadd.f32 0.0, %v3861
    %v3863 = vpop.f32.mrb[0].mxu0
    %3864 = vmatprep.mubr.bf16.mxu0 0
    %3865 = vmatmul.mubr.bf16.gmra.mrb[0].mxu0 %v3742
    %v3866 = vpop.f32.mrb[0].mxu0
    %v3867 = vadd.f32 0.0, %v3866
    %v3868 = vpop.f32.mrb[0].mxu0
    %v3869 = vpop.f32.mrb[0].mxu0
    %v3870 = vadd.f32 0.0, %v3869
    %v3871 = vpop.f32.mrb[0].mxu0
    %3872 = vmatprep.mubr.bf16.mxu0 0
    %3873 = vmatmul.mubr.bf16.gmra.mrb[0].mxu0 %v3743
    %v3874 = vpop.f32.mrb[0].mxu0
    %v3875 = vadd.f32 0.0, %v3874
    %v3876 = vpop.f32.mrb[0].mxu0
    %v3877 = vpop.f32.mrb[0].mxu0
    %v3878 = vadd.f32 0.0, %v3877
    %v3879 = vpop.f32.mrb[0].mxu0
    %3880 = vmatprep.mubr.bf16.mxu0 0
    %3881 = vmatmul.mubr.bf16.gmra.mrb[0].mxu0 %v3744
    %v3882 = vpop.f32.mrb[0].mxu0
    %v3883 = vadd.f32 0.0, %v3882
    %v3884 = vpop.f32.mrb[0].mxu0
    %v3885 = vpop.f32.mrb[0].mxu0
    %v3886 = vadd.f32 0.0, %v3885
    %v3887 = vpop.f32.mrb[0].mxu0
    %3888 = vmatprep.mubr.bf16.mxu0 0
    %3889 = vmatmul.mubr.bf16.gmra.mrb[0].mxu0 %v3745
    %v3890 = vpop.f32.mrb[0].mxu0
    %v3891 = vadd.f32 0.0, %v3890
    %v3892 = vpop.f32.mrb[0].mxu0
    %v3893 = vpop.f32.mrb[0].mxu0
    %v3894 = vadd.f32 0.0, %v3893
    %v3895 = vpop.f32.mrb[0].mxu0
    %3896 = vmatprep.mubr.bf16.mxu0 0
    %3897 = vmatmul.mubr.bf16.gmra.mrb[0].mxu0 %v3746
    %v3898 = vpop.f32.mrb[0].mxu0
    %v3899 = vadd.f32 0.0, %v3898
    %v3900 = vpop.f32.mrb[0].mxu0
    %v3901 = vpop.f32.mrb[0].mxu0
    %v3902 = vadd.f32 0.0, %v3901
    %v3903 = vpop.f32.mrb[0].mxu0
    %3904 = vmatprep.mubr.bf16.mxu0 0
    %3905 = vmatmul.mubr.bf16.gmra.mrb[0].mxu0 %v3747
    %v3906 = vpop.f32.mrb[0].mxu0
    %v3907 = vadd.f32 0.0, %v3906
    %v3908 = vpop.f32.mrb[0].mxu0
    %v3909 = vpop.f32.mrb[0].mxu0
    %v3910 = vadd.f32 0.0, %v3909
    %v3911 = vpop.f32.mrb[0].mxu0
    %3912 = vmatprep.mubr.bf16.mxu0 0
    %3913 = vmatmul.mubr.bf16.gmra.mrb[0].mxu0 %v3748
    %v3914 = vpop.f32.mrb[0].mxu0
    %v3915 = vadd.f32 0.0, %v3914
    %v3916 = vpop.f32.mrb[0].mxu0
    %v3917 = vpop.f32.mrb[0].mxu0
    %v3918 = vadd.f32 0.0, %v3917
    %v3919 = vpop.f32.mrb[0].mxu0
    %3920 = vmatprep.mubr.bf16.mxu0 0
    %3921 = vmatmul.mubr.bf16.gmra.mrb[0].mxu0 %v3749
    %v3922 = vpop.f32.mrb[0].mxu0
    %v3923 = vadd.f32 0.0, %v3922
    %v3924 = vpop.f32.mrb[0].mxu0
    %v3925 = vpop.f32.mrb[0].mxu0
    %v3926 = vadd.f32 0.0, %v3925
    %v3927 = vpop.f32.mrb[0].mxu0
    %3928 = vmatprep.mubr.bf16.mxu0 0
    %3929 = vmatmul.mubr.bf16.gmra.mrb[0].mxu0 %v3750
    %v3930 = vpop.f32.mrb[0].mxu0
    %v3931 = vadd.f32 0.0, %v3930
    %v3932 = vpop.f32.mrb[0].mxu0
    %v3933 = vpop.f32.mrb[0].mxu0
    %v3934 = vadd.f32 0.0, %v3933
    %v3935 = vpop.f32.mrb[0].mxu0
    %3936 = vmatprep.mubr.bf16.mxu0 0
    %3937 = vmatmul.mubr.bf16.gmra.mrb[0].mxu0 %v3751
    %v3938 = vpop.f32.mrb[0].mxu0
    %v3939 = vadd.f32 0.0, %v3938
    %v3940 = vpop.f32.mrb[0].mxu0
    %v3941 = vpop.f32.mrb[0].mxu0
    %v3942 = vadd.f32 0.0, %v3941
    %v3943 = vpop.f32.mrb[0].mxu0
    %3944 = vmatprep.mubr.bf16.mxu0 0
    %3945 = vmatmul.mubr.bf16.gmra.mrb[0].mxu0 %v3752
    %v3946 = vpop.f32.mrb[0].mxu0
    %v3947 = vadd.f32 0.0, %v3946
    %v3948 = vpop.f32.mrb[0].mxu0
    %v3949 = vpop.f32.mrb[0].mxu0
    %v3950 = vadd.f32 0.0, %v3949
    %v3951 = vpop.f32.mrb[0].mxu0
    %3952 = vmatprep.mubr.bf16.mxu0 0
    %3953 = vmatmul.mubr.bf16.gmra.mrb[0].mxu0 %v3753
    %v3954 = vpop.f32.mrb[0].mxu0
    %v3955 = vadd.f32 0.0, %v3954
    %v3956 = vpop.f32.mrb[0].mxu0
    %v3957 = vpop.f32.mrb[0].mxu0
    %v3958 = vadd.f32 0.0, %v3957
    %v3959 = vpop.f32.mrb[0].mxu0
    %3960 = vmatprep.mubr.bf16.mxu0 0
    %3961 = vmatmul.mubr.bf16.gmra.mrb[0].mxu0 %v3754
    %v3962 = vpop.f32.mrb[0].mxu0
    %v3963 = vadd.f32 0.0, %v3962
    %v3964 = vpop.f32.mrb[0].mxu0
    %v3965 = vpop.f32.mrb[0].mxu0
    %v3966 = vadd.f32 0.0, %v3965
    %v3967 = vpop.f32.mrb[0].mxu0
    %3968 = vmatprep.mubr.bf16.mxu0 0
    %3969 = vmatmul.mubr.bf16.gmra.mrb[0].mxu0 %v3755
    %v3970 = vpop.f32.mrb[0].mxu0
    %v3971 = vadd.f32 0.0, %v3970
    %v3972 = vpop.f32.mrb[0].mxu0
    %v3973 = vpop.f32.mrb[0].mxu0
    %v3974 = vadd.f32 0.0, %v3973
    %v3975 = vpop.f32.mrb[0].mxu0
    %3976 = vmatprep.mubr.bf16.mxu0 0
    %3977 = vmatmul.mubr.bf16.gmra.mrb[0].mxu0 %v3756
    %v3978 = vpop.f32.mrb[0].mxu0
    %v3979 = vadd.f32 0.0, %v3978
    %v3980 = vpop.f32.mrb[0].mxu0
    %v3981 = vpop.f32.mrb[0].mxu0
    %v3982 = vadd.f32 0.0, %v3981
    %v3983 = vpop.f32.mrb[0].mxu0
    %3984 = vdwg.mxu0
    %v3985 = vpack.c.bf16 %v3862, %v3859
    %v3986 = vpack.c.bf16 %v3870, %v3867
    %v3987 = vpack.c.bf16 %v3878, %v3875
    %v3988 = vpack.c.bf16 %v3886, %v3883
    %v3989 = vpack.c.bf16 %v3894, %v3891
    %v3990 = vpack.c.bf16 %v3902, %v3899
    %v3991 = vpack.c.bf16 %v3910, %v3907
    %v3992 = vpack.c.bf16 %v3918, %v3915
    %v3993 = vpack.c.bf16 %v3926, %v3923
    %v3994 = vpack.c.bf16 %v3934, %v3931
    %v3995 = vpack.c.bf16 %v3942, %v3939
    %v3996 = vpack.c.bf16 %v3950, %v3947
    %v3997 = vpack.c.bf16 %v3958, %v3955
    %v3998 = vpack.c.bf16 %v3966, %v3963
    %v3999 = vpack.c.bf16 %v3974, %v3971
    %v4000 = vpack.c.bf16 %v3982, %v3979
    %v4001 = vpack.c.bf16 %v3775, %v3775
    %v4003 = vpack.i.b16 %v4001, %v4001
    %v4005 = vlaneseq
    %v4006 = vshrl.u32 %v4005, 7
    %v4007 = vsub.s32 0, %v4006
    %v4008 = vrot.slane %v4003, %v4007
    %v4009 = vadd.bf16 %v3985, %v4008
    %v4010 = vadd.bf16 %v3986, %v4008
    %v4011 = vadd.bf16 %v3987, %v4008
    %v4012 = vadd.bf16 %v3988, %v4008
    %v4013 = vadd.bf16 %v3989, %v4008
    %v4014 = vadd.bf16 %v3990, %v4008
    %v4015 = vadd.bf16 %v3991, %v4008
    %v4016 = vadd.bf16 %v3992, %v4008
    %v4017 = vadd.bf16 %v3993, %v4008
    %v4018 = vadd.bf16 %v3994, %v4008
    %v4019 = vadd.bf16 %v3995, %v4008
    %v4020 = vadd.bf16 %v3996, %v4008
    %v4021 = vadd.bf16 %v3997, %v4008
    %v4022 = vadd.bf16 %v3998, %v4008
    %v4023 = vadd.bf16 %v3999, %v4008
    %v4024 = vadd.bf16 %v4000, %v4008
    %v4025 = vtanh.bf16.pop %v4009
    %v4026 = vtanh.bf16.pop %v4010
    %v4027 = vtanh.bf16.pop %v4011
    %v4028 = vtanh.bf16.pop %v4012
    %v4029 = vtanh.bf16.pop %v4013
    %v4030 = vtanh.bf16.pop %v4014
    %v4031 = vtanh.bf16.pop %v4015
    %v4032 = vtanh.bf16.pop %v4016
    %v4033 = vtanh.bf16.pop %v4017
    %v4034 = vtanh.bf16.pop %v4018
    %v4035 = vtanh.bf16.pop %v4019
    %v4036 = vtanh.bf16.pop %v4020
    %v4037 = vtanh.bf16.pop %v4021
    %v4038 = vtanh.bf16.pop %v4022
    %v4039 = vtanh.bf16.pop %v4023
    %v4040 = vtanh.bf16.pop %v4024
    %s4041 = scalar_lea.vmem %s2, 832
    %v4042 = vld [vmem:[%s4041] sm:$0xf]
    %v4043 = vld [vmem:[%s4041 + $0x4] sm:$0xf]
    %v4044 = vld [vmem:[%s4041 + $0x8] sm:$0xf]
    %v4045 = vld [vmem:[%s4041 + $0xc] sm:$0xf]
    %v4046 = vld [vmem:[%s4041 + $0x10] sm:$0xf]
    %v4047 = vld [vmem:[%s4041 + $0x14] sm:$0xf]
    %v4048 = vld [vmem:[%s4041 + $0x18] sm:$0xf]
    %v4049 = vld [vmem:[%s4041 + $0x1c] sm:$0xf]
    %v4050 = vld [vmem:[%s4041 + $0x20] sm:$0xf]
    %v4051 = vld [vmem:[%s4041 + $0x24] sm:$0xf]
    %v4052 = vld [vmem:[%s4041 + $0x28] sm:$0xf]
    %v4053 = vld [vmem:[%s4041 + $0x2c] sm:$0xf]
    %v4054 = vld [vmem:[%s4041 + $0x30] sm:$0xf]
    %v4055 = vld [vmem:[%s4041 + $0x34] sm:$0xf]
    %v4056 = vld [vmem:[%s4041 + $0x38] sm:$0xf]
    %v4057 = vld [vmem:[%s4041 + $0x3c] sm:$0xf]
    %s4058 = scalar_lea.vmem %s3, 14
    %v4059 = vld [vmem:[%s4058] sm:$0x1]
    %v4076 = vunpack.c.l.b16 %v4042
    %v4077 = vunpack.c.l.b16 %v4043
    %v4078 = vunpack.c.l.b16 %v4044
    %v4079 = vunpack.c.l.b16 %v4045
    %v4080 = vunpack.c.l.b16 %v4046
    %v4081 = vunpack.c.l.b16 %v4047
    %v4082 = vunpack.c.l.b16 %v4048
    %v4083 = vunpack.c.l.b16 %v4049
    %v4084 = vunpack.c.l.b16 %v4050
    %v4085 = vunpack.c.l.b16 %v4051
    %v4086 = vunpack.c.l.b16 %v4052
    %v4087 = vunpack.c.l.b16 %v4053
    %v4088 = vunpack.c.l.b16 %v4054
    %v4089 = vunpack.c.l.b16 %v4055
    %v4090 = vunpack.c.l.b16 %v4056
    %v4091 = vunpack.c.l.b16 %v4057
    %v4092 = vpack.c.b16 %v4077, %v4076
    %v4093 = vpack.c.b16 %v4079, %v4078
    %v4094 = vpack.c.b16 %v4081, %v4080
    %v4095 = vpack.c.b16 %v4083, %v4082
    %v4096 = vpack.c.b16 %v4085, %v4084
    %v4097 = vpack.c.b16 %v4087, %v4086
    %v4098 = vpack.c.b16 %v4089, %v4088
    %v4099 = vpack.c.b16 %v4091, %v4090
    %4108 = vmatprep.subr.bf16.mxu0 0
    %4109 = vmatpush1.bf16.msra.mxu0 %v4092
    %4110 = vmatprep.subr.bf16.mxu0 0
    %4111 = vmatpush1.bf16.msra.mxu0 %v4093
    %4112 = vmatprep.subr.bf16.mxu0 0
    %4113 = vmatpush1.bf16.msra.mxu0 %v4094
    %4114 = vmatprep.subr.bf16.mxu0 0
    %4115 = vmatpush1.bf16.msra.mxu0 %v4095
    %4116 = vmatprep.subr.bf16.mxu0 0
    %4117 = vmatpush1.bf16.msra.mxu0 %v4096
    %4118 = vmatprep.subr.bf16.mxu0 0
    %4119 = vmatpush1.bf16.msra.mxu0 %v4097
    %4120 = vmatprep.subr.bf16.mxu0 0
    %4121 = vmatpush1.bf16.msra.mxu0 %v4098
    %4122 = vmatprep.subr.bf16.mxu0 0
    %4123 = vmatpush1.bf16.msra.mxu0 %v4099
    %4124 = vmatprep.subr.bf16.mxu0 0
    %4125 = vmatpush1.bf16.msra.mxu0 0
    %4126 = vmatprep.subr.bf16.mxu0 0
    %4127 = vmatpush1.bf16.msra.mxu0 0
    %4128 = vmatprep.subr.bf16.mxu0 0
    %4129 = vmatpush1.bf16.msra.mxu0 0
    %4130 = vmatprep.subr.bf16.mxu0 0
    %4131 = vmatpush1.bf16.msra.mxu0 0
    %4132 = vmatprep.subr.bf16.mxu0 0
    %4133 = vmatpush1.bf16.msra.mxu0 0
    %4134 = vmatprep.subr.bf16.mxu0 0
    %4135 = vmatpush1.bf16.msra.mxu0 0
    %4136 = vmatprep.subr.bf16.mxu0 0
    %4137 = vmatpush1.bf16.msra.mxu0 0
    %4138 = vmatprep.subr.bf16.mxu0 0
    %4139 = vmatpush1.bf16.msra.mxu0 0
    %4140 = vmatprep.mubr.bf16.mxu0 0
    %4141 = vmatmul.mubr.bf16.gmra.mrb[0].mxu0 %v4025
    %v4142 = vpop.f32.mrb[0].mxu0
    %v4143 = vadd.f32 0.0, %v4142
    %v4144 = vpop.f32.mrb[0].mxu0
    %v4145 = vpop.f32.mrb[0].mxu0
    %v4146 = vadd.f32 0.0, %v4145
    %v4147 = vpop.f32.mrb[0].mxu0
    %4148 = vmatprep.mubr.bf16.mxu0 0
    %4149 = vmatmul.mubr.bf16.gmra.mrb[0].mxu0 %v4026
    %v4150 = vpop.f32.mrb[0].mxu0
    %v4151 = vadd.f32 0.0, %v4150
    %v4152 = vpop.f32.mrb[0].mxu0
    %v4153 = vpop.f32.mrb[0].mxu0
    %v4154 = vadd.f32 0.0, %v4153
    %v4155 = vpop.f32.mrb[0].mxu0
    %4156 = vmatprep.mubr.bf16.mxu0 0
    %4157 = vmatmul.mubr.bf16.gmra.mrb[0].mxu0 %v4027
    %v4158 = vpop.f32.mrb[0].mxu0
    %v4159 = vadd.f32 0.0, %v4158
    %v4160 = vpop.f32.mrb[0].mxu0
    %v4161 = vpop.f32.mrb[0].mxu0
    %v4162 = vadd.f32 0.0, %v4161
    %v4163 = vpop.f32.mrb[0].mxu0
    %4164 = vmatprep.mubr.bf16.mxu0 0
    %4165 = vmatmul.mubr.bf16.gmra.mrb[0].mxu0 %v4028
    %v4166 = vpop.f32.mrb[0].mxu0
    %v4167 = vadd.f32 0.0, %v4166
    %v4168 = vpop.f32.mrb[0].mxu0
    %v4169 = vpop.f32.mrb[0].mxu0
    %v4170 = vadd.f32 0.0, %v4169
    %v4171 = vpop.f32.mrb[0].mxu0
    %4172 = vmatprep.mubr.bf16.mxu0 0
    %4173 = vmatmul.mubr.bf16.gmra.mrb[0].mxu0 %v4029
    %v4174 = vpop.f32.mrb[0].mxu0
    %v4175 = vadd.f32 0.0, %v4174
    %v4176 = vpop.f32.mrb[0].mxu0
    %v4177 = vpop.f32.mrb[0].mxu0
    %v4178 = vadd.f32 0.0, %v4177
    %v4179 = vpop.f32.mrb[0].mxu0
    %4180 = vmatprep.mubr.bf16.mxu0 0
    %4181 = vmatmul.mubr.bf16.gmra.mrb[0].mxu0 %v4030
    %v4182 = vpop.f32.mrb[0].mxu0
    %v4183 = vadd.f32 0.0, %v4182
    %v4184 = vpop.f32.mrb[0].mxu0
    %v4185 = vpop.f32.mrb[0].mxu0
    %v4186 = vadd.f32 0.0, %v4185
    %v4187 = vpop.f32.mrb[0].mxu0
    %4188 = vmatprep.mubr.bf16.mxu0 0
    %4189 = vmatmul.mubr.bf16.gmra.mrb[0].mxu0 %v4031
    %v4190 = vpop.f32.mrb[0].mxu0
    %v4191 = vadd.f32 0.0, %v4190
    %v4192 = vpop.f32.mrb[0].mxu0
    %v4193 = vpop.f32.mrb[0].mxu0
    %v4194 = vadd.f32 0.0, %v4193
    %v4195 = vpop.f32.mrb[0].mxu0
    %4196 = vmatprep.mubr.bf16.mxu0 0
    %4197 = vmatmul.mubr.bf16.gmra.mrb[0].mxu0 %v4032
    %v4198 = vpop.f32.mrb[0].mxu0
    %v4199 = vadd.f32 0.0, %v4198
    %v4200 = vpop.f32.mrb[0].mxu0
    %v4201 = vpop.f32.mrb[0].mxu0
    %v4202 = vadd.f32 0.0, %v4201
    %v4203 = vpop.f32.mrb[0].mxu0
    %4204 = vmatprep.mubr.bf16.mxu0 0
    %4205 = vmatmul.mubr.bf16.gmra.mrb[0].mxu0 %v4033
    %v4206 = vpop.f32.mrb[0].mxu0
    %v4207 = vadd.f32 0.0, %v4206
    %v4208 = vpop.f32.mrb[0].mxu0
    %v4209 = vpop.f32.mrb[0].mxu0
    %v4210 = vadd.f32 0.0, %v4209
    %v4211 = vpop.f32.mrb[0].mxu0
    %4212 = vmatprep.mubr.bf16.mxu0 0
    %4213 = vmatmul.mubr.bf16.gmra.mrb[0].mxu0 %v4034
    %v4214 = vpop.f32.mrb[0].mxu0
    %v4215 = vadd.f32 0.0, %v4214
    %v4216 = vpop.f32.mrb[0].mxu0
    %v4217 = vpop.f32.mrb[0].mxu0
    %v4218 = vadd.f32 0.0, %v4217
    %v4219 = vpop.f32.mrb[0].mxu0
    %4220 = vmatprep.mubr.bf16.mxu0 0
    %4221 = vmatmul.mubr.bf16.gmra.mrb[0].mxu0 %v4035
    %v4222 = vpop.f32.mrb[0].mxu0
    %v4223 = vadd.f32 0.0, %v4222
    %v4224 = vpop.f32.mrb[0].mxu0
    %v4225 = vpop.f32.mrb[0].mxu0
    %v4226 = vadd.f32 0.0, %v4225
    %v4227 = vpop.f32.mrb[0].mxu0
    %4228 = vmatprep.mubr.bf16.mxu0 0
    %4229 = vmatmul.mubr.bf16.gmra.mrb[0].mxu0 %v4036
    %v4230 = vpop.f32.mrb[0].mxu0
    %v4231 = vadd.f32 0.0, %v4230
    %v4232 = vpop.f32.mrb[0].mxu0
    %v4233 = vpop.f32.mrb[0].mxu0
    %v4234 = vadd.f32 0.0, %v4233
    %v4235 = vpop.f32.mrb[0].mxu0
    %4236 = vmatprep.mubr.bf16.mxu0 0
    %4237 = vmatmul.mubr.bf16.gmra.mrb[0].mxu0 %v4037
    %v4238 = vpop.f32.mrb[0].mxu0
    %v4239 = vadd.f32 0.0, %v4238
    %v4240 = vpop.f32.mrb[0].mxu0
    %v4241 = vpop.f32.mrb[0].mxu0
    %v4242 = vadd.f32 0.0, %v4241
    %v4243 = vpop.f32.mrb[0].mxu0
    %4244 = vmatprep.mubr.bf16.mxu0 0
    %4245 = vmatmul.mubr.bf16.gmra.mrb[0].mxu0 %v4038
    %v4246 = vpop.f32.mrb[0].mxu0
    %v4247 = vadd.f32 0.0, %v4246
    %v4248 = vpop.f32.mrb[0].mxu0
    %v4249 = vpop.f32.mrb[0].mxu0
    %v4250 = vadd.f32 0.0, %v4249
    %v4251 = vpop.f32.mrb[0].mxu0
    %4252 = vmatprep.mubr.bf16.mxu0 0
    %4253 = vmatmul.mubr.bf16.gmra.mrb[0].mxu0 %v4039
    %v4254 = vpop.f32.mrb[0].mxu0
    %v4255 = vadd.f32 0.0, %v4254
    %v4256 = vpop.f32.mrb[0].mxu0
    %v4257 = vpop.f32.mrb[0].mxu0
    %v4258 = vadd.f32 0.0, %v4257
    %v4259 = vpop.f32.mrb[0].mxu0
    %4260 = vmatprep.mubr.bf16.mxu0 0
    %4261 = vmatmul.mubr.bf16.gmra.mrb[0].mxu0 %v4040
    %v4262 = vpop.f32.mrb[0].mxu0
    %v4263 = vadd.f32 0.0, %v4262
    %v4264 = vpop.f32.mrb[0].mxu0
    %v4265 = vpop.f32.mrb[0].mxu0
    %v4266 = vadd.f32 0.0, %v4265
    %v4267 = vpop.f32.mrb[0].mxu0
    %4268 = vdwg.mxu0
    %v4269 = vpack.c.bf16 %v4146, %v4143
    %v4270 = vpack.c.bf16 %v4154, %v4151
    %v4271 = vpack.c.bf16 %v4162, %v4159
    %v4272 = vpack.c.bf16 %v4170, %v4167
    %v4273 = vpack.c.bf16 %v4178, %v4175
    %v4274 = vpack.c.bf16 %v4186, %v4183
    %v4275 = vpack.c.bf16 %v4194, %v4191
    %v4276 = vpack.c.bf16 %v4202, %v4199
    %v4277 = vpack.c.bf16 %v4210, %v4207
    %v4278 = vpack.c.bf16 %v4218, %v4215
    %v4279 = vpack.c.bf16 %v4226, %v4223
    %v4280 = vpack.c.bf16 %v4234, %v4231
    %v4281 = vpack.c.bf16 %v4242, %v4239
    %v4282 = vpack.c.bf16 %v4250, %v4247
    %v4283 = vpack.c.bf16 %v4258, %v4255
    %v4284 = vpack.c.bf16 %v4266, %v4263
    %v4285 = vpack.c.bf16 %v4059, %v4059
    %v4287 = vpack.i.b16 %v4285, %v4285
    %v4289 = vlaneseq
    %v4290 = vshrl.u32 %v4289, 7
    %v4291 = vsub.s32 0, %v4290
    %v4292 = vrot.slane %v4287, %v4291
    %v4293 = vadd.bf16 %v4269, %v4292
    %v4294 = vadd.bf16 %v4270, %v4292
    %v4295 = vadd.bf16 %v4271, %v4292
    %v4296 = vadd.bf16 %v4272, %v4292
    %v4297 = vadd.bf16 %v4273, %v4292
    %v4298 = vadd.bf16 %v4274, %v4292
    %v4299 = vadd.bf16 %v4275, %v4292
    %v4300 = vadd.bf16 %v4276, %v4292
    %v4301 = vadd.bf16 %v4277, %v4292
    %v4302 = vadd.bf16 %v4278, %v4292
    %v4303 = vadd.bf16 %v4279, %v4292
    %v4304 = vadd.bf16 %v4280, %v4292
    %v4305 = vadd.bf16 %v4281, %v4292
    %v4306 = vadd.bf16 %v4282, %v4292
    %v4307 = vadd.bf16 %v4283, %v4292
    %v4308 = vadd.bf16 %v4284, %v4292
    %v4309 = vtanh.bf16.pop %v4293
    %v4310 = vtanh.bf16.pop %v4294
    %v4311 = vtanh.bf16.pop %v4295
    %v4312 = vtanh.bf16.pop %v4296
    %v4313 = vtanh.bf16.pop %v4297
    %v4314 = vtanh.bf16.pop %v4298
    %v4315 = vtanh.bf16.pop %v4299
    %v4316 = vtanh.bf16.pop %v4300
    %v4317 = vtanh.bf16.pop %v4301
    %v4318 = vtanh.bf16.pop %v4302
    %v4319 = vtanh.bf16.pop %v4303
    %v4320 = vtanh.bf16.pop %v4304
    %v4321 = vtanh.bf16.pop %v4305
    %v4322 = vtanh.bf16.pop %v4306
    %v4323 = vtanh.bf16.pop %v4307
    %v4324 = vtanh.bf16.pop %v4308
    %s4325 = scalar_lea.vmem %s2, 896
    %v4326 = vld [vmem:[%s4325] sm:$0xf]
    %v4327 = vld [vmem:[%s4325 + $0x4] sm:$0xf]
    %v4328 = vld [vmem:[%s4325 + $0x8] sm:$0xf]
    %v4329 = vld [vmem:[%s4325 + $0xc] sm:$0xf]
    %v4330 = vld [vmem:[%s4325 + $0x10] sm:$0xf]
    %v4331 = vld [vmem:[%s4325 + $0x14] sm:$0xf]
    %v4332 = vld [vmem:[%s4325 + $0x18] sm:$0xf]
    %v4333 = vld [vmem:[%s4325 + $0x1c] sm:$0xf]
    %v4334 = vld [vmem:[%s4325 + $0x20] sm:$0xf]
    %v4335 = vld [vmem:[%s4325 + $0x24] sm:$0xf]
    %v4336 = vld [vmem:[%s4325 + $0x28] sm:$0xf]
    %v4337 = vld [vmem:[%s4325 + $0x2c] sm:$0xf]
    %v4338 = vld [vmem:[%s4325 + $0x30] sm:$0xf]
    %v4339 = vld [vmem:[%s4325 + $0x34] sm:$0xf]
    %v4340 = vld [vmem:[%s4325 + $0x38] sm:$0xf]
    %v4341 = vld [vmem:[%s4325 + $0x3c] sm:$0xf]
    %s4342 = scalar_lea.vmem %s3, 15
    %v4343 = vld [vmem:[%s4342] sm:$0x1]
    %v4360 = vunpack.c.l.b16 %v4326
    %v4361 = vunpack.c.l.b16 %v4327
    %v4362 = vunpack.c.l.b16 %v4328
    %v4363 = vunpack.c.l.b16 %v4329
    %v4364 = vunpack.c.l.b16 %v4330
    %v4365 = vunpack.c.l.b16 %v4331
    %v4366 = vunpack.c.l.b16 %v4332
    %v4367 = vunpack.c.l.b16 %v4333
    %v4368 = vunpack.c.l.b16 %v4334
    %v4369 = vunpack.c.l.b16 %v4335
    %v4370 = vunpack.c.l.b16 %v4336
    %v4371 = vunpack.c.l.b16 %v4337
    %v4372 = vunpack.c.l.b16 %v4338
    %v4373 = vunpack.c.l.b16 %v4339
    %v4374 = vunpack.c.l.b16 %v4340
    %v4375 = vunpack.c.l.b16 %v4341
    %v4376 = vpack.c.b16 %v4361, %v4360
    %v4377 = vpack.c.b16 %v4363, %v4362
    %v4378 = vpack.c.b16 %v4365, %v4364
    %v4379 = vpack.c.b16 %v4367, %v4366
    %v4380 = vpack.c.b16 %v4369, %v4368
    %v4381 = vpack.c.b16 %v4371, %v4370
    %v4382 = vpack.c.b16 %v4373, %v4372
    %v4383 = vpack.c.b16 %v4375, %v4374
    %4392 = vmatprep.subr.bf16.mxu0 0
    %4393 = vmatpush1.bf16.msra.mxu0 %v4376
    %4394 = vmatprep.subr.bf16.mxu0 0
    %4395 = vmatpush1.bf16.msra.mxu0 %v4377
    %4396 = vmatprep.subr.bf16.mxu0 0
    %4397 = vmatpush1.bf16.msra.mxu0 %v4378
    %4398 = vmatprep.subr.bf16.mxu0 0
    %4399 = vmatpush1.bf16.msra.mxu0 %v4379
    %4400 = vmatprep.subr.bf16.mxu0 0
    %4401 = vmatpush1.bf16.msra.mxu0 %v4380
    %4402 = vmatprep.subr.bf16.mxu0 0
    %4403 = vmatpush1.bf16.msra.mxu0 %v4381
    %4404 = vmatprep.subr.bf16.mxu0 0
    %4405 = vmatpush1.bf16.msra.mxu0 %v4382
    %4406 = vmatprep.subr.bf16.mxu0 0
    %4407 = vmatpush1.bf16.msra.mxu0 %v4383
    %4408 = vmatprep.subr.bf16.mxu0 0
    %4409 = vmatpush1.bf16.msra.mxu0 0
    %4410 = vmatprep.subr.bf16.mxu0 0
    %4411 = vmatpush1.bf16.msra.mxu0 0
    %4412 = vmatprep.subr.bf16.mxu0 0
    %4413 = vmatpush1.bf16.msra.mxu0 0
    %4414 = vmatprep.subr.bf16.mxu0 0
    %4415 = vmatpush1.bf16.msra.mxu0 0
    %4416 = vmatprep.subr.bf16.mxu0 0
    %4417 = vmatpush1.bf16.msra.mxu0 0
    %4418 = vmatprep.subr.bf16.mxu0 0
    %4419 = vmatpush1.bf16.msra.mxu0 0
    %4420 = vmatprep.subr.bf16.mxu0 0
    %4421 = vmatpush1.bf16.msra.mxu0 0
    %4422 = vmatprep.subr.bf16.mxu0 0
    %4423 = vmatpush1.bf16.msra.mxu0 0
    %4424 = vmatprep.mubr.bf16.mxu0 0
    %4425 = vmatmul.mubr.bf16.gmra.mrb[0].mxu0 %v4309
    %v4426 = vpop.f32.mrb[0].mxu0
    %v4427 = vadd.f32 0.0, %v4426
    %v4428 = vpop.f32.mrb[0].mxu0
    %v4429 = vpop.f32.mrb[0].mxu0
    %v4430 = vadd.f32 0.0, %v4429
    %v4431 = vpop.f32.mrb[0].mxu0
    %4432 = vmatprep.mubr.bf16.mxu0 0
    %4433 = vmatmul.mubr.bf16.gmra.mrb[0].mxu0 %v4310
    %v4434 = vpop.f32.mrb[0].mxu0
    %v4435 = vadd.f32 0.0, %v4434
    %v4436 = vpop.f32.mrb[0].mxu0
    %v4437 = vpop.f32.mrb[0].mxu0
    %v4438 = vadd.f32 0.0, %v4437
    %v4439 = vpop.f32.mrb[0].mxu0
    %4440 = vmatprep.mubr.bf16.mxu0 0
    %4441 = vmatmul.mubr.bf16.gmra.mrb[0].mxu0 %v4311
    %v4442 = vpop.f32.mrb[0].mxu0
    %v4443 = vadd.f32 0.0, %v4442
    %v4444 = vpop.f32.mrb[0].mxu0
    %v4445 = vpop.f32.mrb[0].mxu0
    %v4446 = vadd.f32 0.0, %v4445
    %v4447 = vpop.f32.mrb[0].mxu0
    %4448 = vmatprep.mubr.bf16.mxu0 0
    %4449 = vmatmul.mubr.bf16.gmra.mrb[0].mxu0 %v4312
    %v4450 = vpop.f32.mrb[0].mxu0
    %v4451 = vadd.f32 0.0, %v4450
    %v4452 = vpop.f32.mrb[0].mxu0
    %v4453 = vpop.f32.mrb[0].mxu0
    %v4454 = vadd.f32 0.0, %v4453
    %v4455 = vpop.f32.mrb[0].mxu0
    %4456 = vmatprep.mubr.bf16.mxu0 0
    %4457 = vmatmul.mubr.bf16.gmra.mrb[0].mxu0 %v4313
    %v4458 = vpop.f32.mrb[0].mxu0
    %v4459 = vadd.f32 0.0, %v4458
    %v4460 = vpop.f32.mrb[0].mxu0
    %v4461 = vpop.f32.mrb[0].mxu0
    %v4462 = vadd.f32 0.0, %v4461
    %v4463 = vpop.f32.mrb[0].mxu0
    %4464 = vmatprep.mubr.bf16.mxu0 0
    %4465 = vmatmul.mubr.bf16.gmra.mrb[0].mxu0 %v4314
    %v4466 = vpop.f32.mrb[0].mxu0
    %v4467 = vadd.f32 0.0, %v4466
    %v4468 = vpop.f32.mrb[0].mxu0
    %v4469 = vpop.f32.mrb[0].mxu0
    %v4470 = vadd.f32 0.0, %v4469
    %v4471 = vpop.f32.mrb[0].mxu0
    %4472 = vmatprep.mubr.bf16.mxu0 0
    %4473 = vmatmul.mubr.bf16.gmra.mrb[0].mxu0 %v4315
    %v4474 = vpop.f32.mrb[0].mxu0
    %v4475 = vadd.f32 0.0, %v4474
    %v4476 = vpop.f32.mrb[0].mxu0
    %v4477 = vpop.f32.mrb[0].mxu0
    %v4478 = vadd.f32 0.0, %v4477
    %v4479 = vpop.f32.mrb[0].mxu0
    %4480 = vmatprep.mubr.bf16.mxu0 0
    %4481 = vmatmul.mubr.bf16.gmra.mrb[0].mxu0 %v4316
    %v4482 = vpop.f32.mrb[0].mxu0
    %v4483 = vadd.f32 0.0, %v4482
    %v4484 = vpop.f32.mrb[0].mxu0
    %v4485 = vpop.f32.mrb[0].mxu0
    %v4486 = vadd.f32 0.0, %v4485
    %v4487 = vpop.f32.mrb[0].mxu0
    %4488 = vmatprep.mubr.bf16.mxu0 0
    %4489 = vmatmul.mubr.bf16.gmra.mrb[0].mxu0 %v4317
    %v4490 = vpop.f32.mrb[0].mxu0
    %v4491 = vadd.f32 0.0, %v4490
    %v4492 = vpop.f32.mrb[0].mxu0
    %v4493 = vpop.f32.mrb[0].mxu0
    %v4494 = vadd.f32 0.0, %v4493
    %v4495 = vpop.f32.mrb[0].mxu0
    %4496 = vmatprep.mubr.bf16.mxu0 0
    %4497 = vmatmul.mubr.bf16.gmra.mrb[0].mxu0 %v4318
    %v4498 = vpop.f32.mrb[0].mxu0
    %v4499 = vadd.f32 0.0, %v4498
    %v4500 = vpop.f32.mrb[0].mxu0
    %v4501 = vpop.f32.mrb[0].mxu0
    %v4502 = vadd.f32 0.0, %v4501
    %v4503 = vpop.f32.mrb[0].mxu0
    %4504 = vmatprep.mubr.bf16.mxu0 0
    %4505 = vmatmul.mubr.bf16.gmra.mrb[0].mxu0 %v4319
    %v4506 = vpop.f32.mrb[0].mxu0
    %v4507 = vadd.f32 0.0, %v4506
    %v4508 = vpop.f32.mrb[0].mxu0
    %v4509 = vpop.f32.mrb[0].mxu0
    %v4510 = vadd.f32 0.0, %v4509
    %v4511 = vpop.f32.mrb[0].mxu0
    %4512 = vmatprep.mubr.bf16.mxu0 0
    %4513 = vmatmul.mubr.bf16.gmra.mrb[0].mxu0 %v4320
    %v4514 = vpop.f32.mrb[0].mxu0
    %v4515 = vadd.f32 0.0, %v4514
    %v4516 = vpop.f32.mrb[0].mxu0
    %v4517 = vpop.f32.mrb[0].mxu0
    %v4518 = vadd.f32 0.0, %v4517
    %v4519 = vpop.f32.mrb[0].mxu0
    %4520 = vmatprep.mubr.bf16.mxu0 0
    %4521 = vmatmul.mubr.bf16.gmra.mrb[0].mxu0 %v4321
    %v4522 = vpop.f32.mrb[0].mxu0
    %v4523 = vadd.f32 0.0, %v4522
    %v4524 = vpop.f32.mrb[0].mxu0
    %v4525 = vpop.f32.mrb[0].mxu0
    %v4526 = vadd.f32 0.0, %v4525
    %v4527 = vpop.f32.mrb[0].mxu0
    %4528 = vmatprep.mubr.bf16.mxu0 0
    %4529 = vmatmul.mubr.bf16.gmra.mrb[0].mxu0 %v4322
    %v4530 = vpop.f32.mrb[0].mxu0
    %v4531 = vadd.f32 0.0, %v4530
    %v4532 = vpop.f32.mrb[0].mxu0
    %v4533 = vpop.f32.mrb[0].mxu0
    %v4534 = vadd.f32 0.0, %v4533
    %v4535 = vpop.f32.mrb[0].mxu0
    %4536 = vmatprep.mubr.bf16.mxu0 0
    %4537 = vmatmul.mubr.bf16.gmra.mrb[0].mxu0 %v4323
    %v4538 = vpop.f32.mrb[0].mxu0
    %v4539 = vadd.f32 0.0, %v4538
    %v4540 = vpop.f32.mrb[0].mxu0
    %v4541 = vpop.f32.mrb[0].mxu0
    %v4542 = vadd.f32 0.0, %v4541
    %v4543 = vpop.f32.mrb[0].mxu0
    %4544 = vmatprep.mubr.bf16.mxu0 0
    %4545 = vmatmul.mubr.bf16.gmra.mrb[0].mxu0 %v4324
    %v4546 = vpop.f32.mrb[0].mxu0
    %v4547 = vadd.f32 0.0, %v4546
    %v4548 = vpop.f32.mrb[0].mxu0
    %v4549 = vpop.f32.mrb[0].mxu0
    %v4550 = vadd.f32 0.0, %v4549
    %v4551 = vpop.f32.mrb[0].mxu0
    %4552 = vdwg.mxu0
    %v4553 = vpack.c.bf16 %v4430, %v4427
    %v4554 = vpack.c.bf16 %v4438, %v4435
    %v4555 = vpack.c.bf16 %v4446, %v4443
    %v4556 = vpack.c.bf16 %v4454, %v4451
    %v4557 = vpack.c.bf16 %v4462, %v4459
    %v4558 = vpack.c.bf16 %v4470, %v4467
    %v4559 = vpack.c.bf16 %v4478, %v4475
    %v4560 = vpack.c.bf16 %v4486, %v4483
    %v4561 = vpack.c.bf16 %v4494, %v4491
    %v4562 = vpack.c.bf16 %v4502, %v4499
    %v4563 = vpack.c.bf16 %v4510, %v4507
    %v4564 = vpack.c.bf16 %v4518, %v4515
    %v4565 = vpack.c.bf16 %v4526, %v4523
    %v4566 = vpack.c.bf16 %v4534, %v4531
    %v4567 = vpack.c.bf16 %v4542, %v4539
    %v4568 = vpack.c.bf16 %v4550, %v4547
    %v4569 = vpack.c.bf16 %v4343, %v4343
    %v4571 = vpack.i.b16 %v4569, %v4569
    %v4573 = vlaneseq
    %v4574 = vshrl.u32 %v4573, 7
    %v4575 = vsub.s32 0, %v4574
    %v4576 = vrot.slane %v4571, %v4575
    %v4577 = vadd.bf16 %v4553, %v4576
    %v4578 = vadd.bf16 %v4554, %v4576
    %v4579 = vadd.bf16 %v4555, %v4576
    %v4580 = vadd.bf16 %v4556, %v4576
    %v4581 = vadd.bf16 %v4557, %v4576
    %v4582 = vadd.bf16 %v4558, %v4576
    %v4583 = vadd.bf16 %v4559, %v4576
    %v4584 = vadd.bf16 %v4560, %v4576
    %v4585 = vadd.bf16 %v4561, %v4576
    %v4586 = vadd.bf16 %v4562, %v4576
    %v4587 = vadd.bf16 %v4563, %v4576
    %v4588 = vadd.bf16 %v4564, %v4576
    %v4589 = vadd.bf16 %v4565, %v4576
    %v4590 = vadd.bf16 %v4566, %v4576
    %v4591 = vadd.bf16 %v4567, %v4576
    %v4592 = vadd.bf16 %v4568, %v4576
    %v4593 = vtanh.bf16.pop %v4577
    %v4594 = vtanh.bf16.pop %v4578
    %v4595 = vtanh.bf16.pop %v4579
    %v4596 = vtanh.bf16.pop %v4580
    %v4597 = vtanh.bf16.pop %v4581
    %v4598 = vtanh.bf16.pop %v4582
    %v4599 = vtanh.bf16.pop %v4583
    %v4600 = vtanh.bf16.pop %v4584
    %v4601 = vtanh.bf16.pop %v4585
    %v4602 = vtanh.bf16.pop %v4586
    %v4603 = vtanh.bf16.pop %v4587
    %v4604 = vtanh.bf16.pop %v4588
    %v4605 = vtanh.bf16.pop %v4589
    %v4606 = vtanh.bf16.pop %v4590
    %v4607 = vtanh.bf16.pop %v4591
    %v4608 = vtanh.bf16.pop %v4592
    %s4609 = scalar_lea.vmem %s2, 960
    %v4610 = vld [vmem:[%s4609] sm:$0xf]
    %v4611 = vld [vmem:[%s4609 + $0x4] sm:$0xf]
    %v4612 = vld [vmem:[%s4609 + $0x8] sm:$0xf]
    %v4613 = vld [vmem:[%s4609 + $0xc] sm:$0xf]
    %v4614 = vld [vmem:[%s4609 + $0x10] sm:$0xf]
    %v4615 = vld [vmem:[%s4609 + $0x14] sm:$0xf]
    %v4616 = vld [vmem:[%s4609 + $0x18] sm:$0xf]
    %v4617 = vld [vmem:[%s4609 + $0x1c] sm:$0xf]
    %v4618 = vld [vmem:[%s4609 + $0x20] sm:$0xf]
    %v4619 = vld [vmem:[%s4609 + $0x24] sm:$0xf]
    %v4620 = vld [vmem:[%s4609 + $0x28] sm:$0xf]
    %v4621 = vld [vmem:[%s4609 + $0x2c] sm:$0xf]
    %v4622 = vld [vmem:[%s4609 + $0x30] sm:$0xf]
    %v4623 = vld [vmem:[%s4609 + $0x34] sm:$0xf]
    %v4624 = vld [vmem:[%s4609 + $0x38] sm:$0xf]
    %v4625 = vld [vmem:[%s4609 + $0x3c] sm:$0xf]
    %s4626 = scalar_lea.vmem %s3, 16
    %v4627 = vld [vmem:[%s4626] sm:$0x1]
    %v4644 = vunpack.c.l.b16 %v4610
    %v4645 = vunpack.c.l.b16 %v4611
    %v4646 = vunpack.c.l.b16 %v4612
    %v4647 = vunpack.c.l.b16 %v4613
    %v4648 = vunpack.c.l.b16 %v4614
    %v4649 = vunpack.c.l.b16 %v4615
    %v4650 = vunpack.c.l.b16 %v4616
    %v4651 = vunpack.c.l.b16 %v4617
    %v4652 = vunpack.c.l.b16 %v4618
    %v4653 = vunpack.c.l.b16 %v4619
    %v4654 = vunpack.c.l.b16 %v4620
    %v4655 = vunpack.c.l.b16 %v4621
    %v4656 = vunpack.c.l.b16 %v4622
    %v4657 = vunpack.c.l.b16 %v4623
    %v4658 = vunpack.c.l.b16 %v4624
    %v4659 = vunpack.c.l.b16 %v4625
    %v4660 = vpack.c.b16 %v4645, %v4644
    %v4661 = vpack.c.b16 %v4647, %v4646
    %v4662 = vpack.c.b16 %v4649, %v4648
    %v4663 = vpack.c.b16 %v4651, %v4650
    %v4664 = vpack.c.b16 %v4653, %v4652
    %v4665 = vpack.c.b16 %v4655, %v4654
    %v4666 = vpack.c.b16 %v4657, %v4656
    %v4667 = vpack.c.b16 %v4659, %v4658
    %4676 = vmatprep.subr.bf16.mxu0 0
    %4677 = vmatpush1.bf16.msra.mxu0 %v4660
    %4678 = vmatprep.subr.bf16.mxu0 0
    %4679 = vmatpush1.bf16.msra.mxu0 %v4661
    %4680 = vmatprep.subr.bf16.mxu0 0
    %4681 = vmatpush1.bf16.msra.mxu0 %v4662
    %4682 = vmatprep.subr.bf16.mxu0 0
    %4683 = vmatpush1.bf16.msra.mxu0 %v4663
    %4684 = vmatprep.subr.bf16.mxu0 0
    %4685 = vmatpush1.bf16.msra.mxu0 %v4664
    %4686 = vmatprep.subr.bf16.mxu0 0
    %4687 = vmatpush1.bf16.msra.mxu0 %v4665
    %4688 = vmatprep.subr.bf16.mxu0 0
    %4689 = vmatpush1.bf16.msra.mxu0 %v4666
    %4690 = vmatprep.subr.bf16.mxu0 0
    %4691 = vmatpush1.bf16.msra.mxu0 %v4667
    %4692 = vmatprep.subr.bf16.mxu0 0
    %4693 = vmatpush1.bf16.msra.mxu0 0
    %4694 = vmatprep.subr.bf16.mxu0 0
    %4695 = vmatpush1.bf16.msra.mxu0 0
    %4696 = vmatprep.subr.bf16.mxu0 0
    %4697 = vmatpush1.bf16.msra.mxu0 0
    %4698 = vmatprep.subr.bf16.mxu0 0
    %4699 = vmatpush1.bf16.msra.mxu0 0
    %4700 = vmatprep.subr.bf16.mxu0 0
    %4701 = vmatpush1.bf16.msra.mxu0 0
    %4702 = vmatprep.subr.bf16.mxu0 0
    %4703 = vmatpush1.bf16.msra.mxu0 0
    %4704 = vmatprep.subr.bf16.mxu0 0
    %4705 = vmatpush1.bf16.msra.mxu0 0
    %4706 = vmatprep.subr.bf16.mxu0 0
    %4707 = vmatpush1.bf16.msra.mxu0 0
    %4708 = vmatprep.mubr.bf16.mxu0 0
    %4709 = vmatmul.mubr.bf16.gmra.mrb[0].mxu0 %v4593
    %v4710 = vpop.f32.mrb[0].mxu0
    %v4711 = vadd.f32 0.0, %v4710
    %v4712 = vpop.f32.mrb[0].mxu0
    %v4713 = vpop.f32.mrb[0].mxu0
    %v4714 = vadd.f32 0.0, %v4713
    %v4715 = vpop.f32.mrb[0].mxu0
    %4716 = vmatprep.mubr.bf16.mxu0 0
    %4717 = vmatmul.mubr.bf16.gmra.mrb[0].mxu0 %v4594
    %v4718 = vpop.f32.mrb[0].mxu0
    %v4719 = vadd.f32 0.0, %v4718
    %v4720 = vpop.f32.mrb[0].mxu0
    %v4721 = vpop.f32.mrb[0].mxu0
    %v4722 = vadd.f32 0.0, %v4721
    %v4723 = vpop.f32.mrb[0].mxu0
    %4724 = vmatprep.mubr.bf16.mxu0 0
    %4725 = vmatmul.mubr.bf16.gmra.mrb[0].mxu0 %v4595
    %v4726 = vpop.f32.mrb[0].mxu0
    %v4727 = vadd.f32 0.0, %v4726
    %v4728 = vpop.f32.mrb[0].mxu0
    %v4729 = vpop.f32.mrb[0].mxu0
    %v4730 = vadd.f32 0.0, %v4729
    %v4731 = vpop.f32.mrb[0].mxu0
    %4732 = vmatprep.mubr.bf16.mxu0 0
    %4733 = vmatmul.mubr.bf16.gmra.mrb[0].mxu0 %v4596
    %v4734 = vpop.f32.mrb[0].mxu0
    %v4735 = vadd.f32 0.0, %v4734
    %v4736 = vpop.f32.mrb[0].mxu0
    %v4737 = vpop.f32.mrb[0].mxu0
    %v4738 = vadd.f32 0.0, %v4737
    %v4739 = vpop.f32.mrb[0].mxu0
    %4740 = vmatprep.mubr.bf16.mxu0 0
    %4741 = vmatmul.mubr.bf16.gmra.mrb[0].mxu0 %v4597
    %v4742 = vpop.f32.mrb[0].mxu0
    %v4743 = vadd.f32 0.0, %v4742
    %v4744 = vpop.f32.mrb[0].mxu0
    %v4745 = vpop.f32.mrb[0].mxu0
    %v4746 = vadd.f32 0.0, %v4745
    %v4747 = vpop.f32.mrb[0].mxu0
    %4748 = vmatprep.mubr.bf16.mxu0 0
    %4749 = vmatmul.mubr.bf16.gmra.mrb[0].mxu0 %v4598
    %v4750 = vpop.f32.mrb[0].mxu0
    %v4751 = vadd.f32 0.0, %v4750
    %v4752 = vpop.f32.mrb[0].mxu0
    %v4753 = vpop.f32.mrb[0].mxu0
    %v4754 = vadd.f32 0.0, %v4753
    %v4755 = vpop.f32.mrb[0].mxu0
    %4756 = vmatprep.mubr.bf16.mxu0 0
    %4757 = vmatmul.mubr.bf16.gmra.mrb[0].mxu0 %v4599
    %v4758 = vpop.f32.mrb[0].mxu0
    %v4759 = vadd.f32 0.0, %v4758
    %v4760 = vpop.f32.mrb[0].mxu0
    %v4761 = vpop.f32.mrb[0].mxu0
    %v4762 = vadd.f32 0.0, %v4761
    %v4763 = vpop.f32.mrb[0].mxu0
    %4764 = vmatprep.mubr.bf16.mxu0 0
    %4765 = vmatmul.mubr.bf16.gmra.mrb[0].mxu0 %v4600
    %v4766 = vpop.f32.mrb[0].mxu0
    %v4767 = vadd.f32 0.0, %v4766
    %v4768 = vpop.f32.mrb[0].mxu0
    %v4769 = vpop.f32.mrb[0].mxu0
    %v4770 = vadd.f32 0.0, %v4769
    %v4771 = vpop.f32.mrb[0].mxu0
    %4772 = vmatprep.mubr.bf16.mxu0 0
    %4773 = vmatmul.mubr.bf16.gmra.mrb[0].mxu0 %v4601
    %v4774 = vpop.f32.mrb[0].mxu0
    %v4775 = vadd.f32 0.0, %v4774
    %v4776 = vpop.f32.mrb[0].mxu0
    %v4777 = vpop.f32.mrb[0].mxu0
    %v4778 = vadd.f32 0.0, %v4777
    %v4779 = vpop.f32.mrb[0].mxu0
    %4780 = vmatprep.mubr.bf16.mxu0 0
    %4781 = vmatmul.mubr.bf16.gmra.mrb[0].mxu0 %v4602
    %v4782 = vpop.f32.mrb[0].mxu0
    %v4783 = vadd.f32 0.0, %v4782
    %v4784 = vpop.f32.mrb[0].mxu0
    %v4785 = vpop.f32.mrb[0].mxu0
    %v4786 = vadd.f32 0.0, %v4785
    %v4787 = vpop.f32.mrb[0].mxu0
    %4788 = vmatprep.mubr.bf16.mxu0 0
    %4789 = vmatmul.mubr.bf16.gmra.mrb[0].mxu0 %v4603
    %v4790 = vpop.f32.mrb[0].mxu0
    %v4791 = vadd.f32 0.0, %v4790
    %v4792 = vpop.f32.mrb[0].mxu0
    %v4793 = vpop.f32.mrb[0].mxu0
    %v4794 = vadd.f32 0.0, %v4793
    %v4795 = vpop.f32.mrb[0].mxu0
    %4796 = vmatprep.mubr.bf16.mxu0 0
    %4797 = vmatmul.mubr.bf16.gmra.mrb[0].mxu0 %v4604
    %v4798 = vpop.f32.mrb[0].mxu0
    %v4799 = vadd.f32 0.0, %v4798
    %v4800 = vpop.f32.mrb[0].mxu0
    %v4801 = vpop.f32.mrb[0].mxu0
    %v4802 = vadd.f32 0.0, %v4801
    %v4803 = vpop.f32.mrb[0].mxu0
    %4804 = vmatprep.mubr.bf16.mxu0 0
    %4805 = vmatmul.mubr.bf16.gmra.mrb[0].mxu0 %v4605
    %v4806 = vpop.f32.mrb[0].mxu0
    %v4807 = vadd.f32 0.0, %v4806
    %v4808 = vpop.f32.mrb[0].mxu0
    %v4809 = vpop.f32.mrb[0].mxu0
    %v4810 = vadd.f32 0.0, %v4809
    %v4811 = vpop.f32.mrb[0].mxu0
    %4812 = vmatprep.mubr.bf16.mxu0 0
    %4813 = vmatmul.mubr.bf16.gmra.mrb[0].mxu0 %v4606
    %v4814 = vpop.f32.mrb[0].mxu0
    %v4815 = vadd.f32 0.0, %v4814
    %v4816 = vpop.f32.mrb[0].mxu0
    %v4817 = vpop.f32.mrb[0].mxu0
    %v4818 = vadd.f32 0.0, %v4817
    %v4819 = vpop.f32.mrb[0].mxu0
    %4820 = vmatprep.mubr.bf16.mxu0 0
    %4821 = vmatmul.mubr.bf16.gmra.mrb[0].mxu0 %v4607
    %v4822 = vpop.f32.mrb[0].mxu0
    %v4823 = vadd.f32 0.0, %v4822
    %v4824 = vpop.f32.mrb[0].mxu0
    %v4825 = vpop.f32.mrb[0].mxu0
    %v4826 = vadd.f32 0.0, %v4825
    %v4827 = vpop.f32.mrb[0].mxu0
    %4828 = vmatprep.mubr.bf16.mxu0 0
    %4829 = vmatmul.mubr.bf16.gmra.mrb[0].mxu0 %v4608
    %v4830 = vpop.f32.mrb[0].mxu0
    %v4831 = vadd.f32 0.0, %v4830
    %v4832 = vpop.f32.mrb[0].mxu0
    %v4833 = vpop.f32.mrb[0].mxu0
    %v4834 = vadd.f32 0.0, %v4833
    %v4835 = vpop.f32.mrb[0].mxu0
    %4836 = vdwg.mxu0
    %v4837 = vpack.c.bf16 %v4714, %v4711
    %v4838 = vpack.c.bf16 %v4722, %v4719
    %v4839 = vpack.c.bf16 %v4730, %v4727
    %v4840 = vpack.c.bf16 %v4738, %v4735
    %v4841 = vpack.c.bf16 %v4746, %v4743
    %v4842 = vpack.c.bf16 %v4754, %v4751
    %v4843 = vpack.c.bf16 %v4762, %v4759
    %v4844 = vpack.c.bf16 %v4770, %v4767
    %v4845 = vpack.c.bf16 %v4778, %v4775
    %v4846 = vpack.c.bf16 %v4786, %v4783
    %v4847 = vpack.c.bf16 %v4794, %v4791
    %v4848 = vpack.c.bf16 %v4802, %v4799
    %v4849 = vpack.c.bf16 %v4810, %v4807
    %v4850 = vpack.c.bf16 %v4818, %v4815
    %v4851 = vpack.c.bf16 %v4826, %v4823
    %v4852 = vpack.c.bf16 %v4834, %v4831
    %v4853 = vpack.c.bf16 %v4627, %v4627
    %v4855 = vpack.i.b16 %v4853, %v4853
    %v4857 = vlaneseq
    %v4858 = vshrl.u32 %v4857, 7
    %v4859 = vsub.s32 0, %v4858
    %v4860 = vrot.slane %v4855, %v4859
    %v4861 = vadd.bf16 %v4837, %v4860
    %v4862 = vadd.bf16 %v4838, %v4860
    %v4863 = vadd.bf16 %v4839, %v4860
    %v4864 = vadd.bf16 %v4840, %v4860
    %v4865 = vadd.bf16 %v4841, %v4860
    %v4866 = vadd.bf16 %v4842, %v4860
    %v4867 = vadd.bf16 %v4843, %v4860
    %v4868 = vadd.bf16 %v4844, %v4860
    %v4869 = vadd.bf16 %v4845, %v4860
    %v4870 = vadd.bf16 %v4846, %v4860
    %v4871 = vadd.bf16 %v4847, %v4860
    %v4872 = vadd.bf16 %v4848, %v4860
    %v4873 = vadd.bf16 %v4849, %v4860
    %v4874 = vadd.bf16 %v4850, %v4860
    %v4875 = vadd.bf16 %v4851, %v4860
    %v4876 = vadd.bf16 %v4852, %v4860
    %v4877 = vtanh.bf16.pop %v4861
    %v4878 = vtanh.bf16.pop %v4862
    %v4879 = vtanh.bf16.pop %v4863
    %v4880 = vtanh.bf16.pop %v4864
    %v4881 = vtanh.bf16.pop %v4865
    %v4882 = vtanh.bf16.pop %v4866
    %v4883 = vtanh.bf16.pop %v4867
    %v4884 = vtanh.bf16.pop %v4868
    %v4885 = vtanh.bf16.pop %v4869
    %v4886 = vtanh.bf16.pop %v4870
    %v4887 = vtanh.bf16.pop %v4871
    %v4888 = vtanh.bf16.pop %v4872
    %v4889 = vtanh.bf16.pop %v4873
    %v4890 = vtanh.bf16.pop %v4874
    %v4891 = vtanh.bf16.pop %v4875
    %v4892 = vtanh.bf16.pop %v4876
    %s4893 = scalar_lea.vmem %s2, 1024
    %v4894 = vld [vmem:[%s4893] sm:$0xf]
    %v4895 = vld [vmem:[%s4893 + $0x4] sm:$0xf]
    %v4896 = vld [vmem:[%s4893 + $0x8] sm:$0xf]
    %v4897 = vld [vmem:[%s4893 + $0xc] sm:$0xf]
    %v4898 = vld [vmem:[%s4893 + $0x10] sm:$0xf]
    %v4899 = vld [vmem:[%s4893 + $0x14] sm:$0xf]
    %v4900 = vld [vmem:[%s4893 + $0x18] sm:$0xf]
    %v4901 = vld [vmem:[%s4893 + $0x1c] sm:$0xf]
    %v4902 = vld [vmem:[%s4893 + $0x20] sm:$0xf]
    %v4903 = vld [vmem:[%s4893 + $0x24] sm:$0xf]
    %v4904 = vld [vmem:[%s4893 + $0x28] sm:$0xf]
    %v4905 = vld [vmem:[%s4893 + $0x2c] sm:$0xf]
    %v4906 = vld [vmem:[%s4893 + $0x30] sm:$0xf]
    %v4907 = vld [vmem:[%s4893 + $0x34] sm:$0xf]
    %v4908 = vld [vmem:[%s4893 + $0x38] sm:$0xf]
    %v4909 = vld [vmem:[%s4893 + $0x3c] sm:$0xf]
    %s4910 = scalar_lea.vmem %s3, 17
    %v4911 = vld [vmem:[%s4910] sm:$0x1]
    %v4928 = vunpack.c.l.b16 %v4894
    %v4929 = vunpack.c.l.b16 %v4895
    %v4930 = vunpack.c.l.b16 %v4896
    %v4931 = vunpack.c.l.b16 %v4897
    %v4932 = vunpack.c.l.b16 %v4898
    %v4933 = vunpack.c.l.b16 %v4899
    %v4934 = vunpack.c.l.b16 %v4900
    %v4935 = vunpack.c.l.b16 %v4901
    %v4936 = vunpack.c.l.b16 %v4902
    %v4937 = vunpack.c.l.b16 %v4903
    %v4938 = vunpack.c.l.b16 %v4904
    %v4939 = vunpack.c.l.b16 %v4905
    %v4940 = vunpack.c.l.b16 %v4906
    %v4941 = vunpack.c.l.b16 %v4907
    %v4942 = vunpack.c.l.b16 %v4908
    %v4943 = vunpack.c.l.b16 %v4909
    %v4944 = vpack.c.b16 %v4929, %v4928
    %v4945 = vpack.c.b16 %v4931, %v4930
    %v4946 = vpack.c.b16 %v4933, %v4932
    %v4947 = vpack.c.b16 %v4935, %v4934
    %v4948 = vpack.c.b16 %v4937, %v4936
    %v4949 = vpack.c.b16 %v4939, %v4938
    %v4950 = vpack.c.b16 %v4941, %v4940
    %v4951 = vpack.c.b16 %v4943, %v4942
    %4960 = vmatprep.subr.bf16.mxu0 0
    %4961 = vmatpush1.bf16.msra.mxu0 %v4944
    %4962 = vmatprep.subr.bf16.mxu0 0
    %4963 = vmatpush1.bf16.msra.mxu0 %v4945
    %4964 = vmatprep.subr.bf16.mxu0 0
    %4965 = vmatpush1.bf16.msra.mxu0 %v4946
    %4966 = vmatprep.subr.bf16.mxu0 0
    %4967 = vmatpush1.bf16.msra.mxu0 %v4947
    %4968 = vmatprep.subr.bf16.mxu0 0
    %4969 = vmatpush1.bf16.msra.mxu0 %v4948
    %4970 = vmatprep.subr.bf16.mxu0 0
    %4971 = vmatpush1.bf16.msra.mxu0 %v4949
    %4972 = vmatprep.subr.bf16.mxu0 0
    %4973 = vmatpush1.bf16.msra.mxu0 %v4950
    %4974 = vmatprep.subr.bf16.mxu0 0
    %4975 = vmatpush1.bf16.msra.mxu0 %v4951
    %4976 = vmatprep.subr.bf16.mxu0 0
    %4977 = vmatpush1.bf16.msra.mxu0 0
    %4978 = vmatprep.subr.bf16.mxu0 0
    %4979 = vmatpush1.bf16.msra.mxu0 0
    %4980 = vmatprep.subr.bf16.mxu0 0
    %4981 = vmatpush1.bf16.msra.mxu0 0
    %4982 = vmatprep.subr.bf16.mxu0 0
    %4983 = vmatpush1.bf16.msra.mxu0 0
    %4984 = vmatprep.subr.bf16.mxu0 0
    %4985 = vmatpush1.bf16.msra.mxu0 0
    %4986 = vmatprep.subr.bf16.mxu0 0
    %4987 = vmatpush1.bf16.msra.mxu0 0
    %4988 = vmatprep.subr.bf16.mxu0 0
    %4989 = vmatpush1.bf16.msra.mxu0 0
    %4990 = vmatprep.subr.bf16.mxu0 0
    %4991 = vmatpush1.bf16.msra.mxu0 0
    %4992 = vmatprep.mubr.bf16.mxu0 0
    %4993 = vmatmul.mubr.bf16.gmra.mrb[0].mxu0 %v4877
    %v4994 = vpop.f32.mrb[0].mxu0
    %v4995 = vadd.f32 0.0, %v4994
    %v4996 = vpop.f32.mrb[0].mxu0
    %v4997 = vpop.f32.mrb[0].mxu0
    %v4998 = vadd.f32 0.0, %v4997
    %v4999 = vpop.f32.mrb[0].mxu0
    %5000 = vmatprep.mubr.bf16.mxu0 0
    %5001 = vmatmul.mubr.bf16.gmra.mrb[0].mxu0 %v4878
    %v5002 = vpop.f32.mrb[0].mxu0
    %v5003 = vadd.f32 0.0, %v5002
    %v5004 = vpop.f32.mrb[0].mxu0
    %v5005 = vpop.f32.mrb[0].mxu0
    %v5006 = vadd.f32 0.0, %v5005
    %v5007 = vpop.f32.mrb[0].mxu0
    %5008 = vmatprep.mubr.bf16.mxu0 0
    %5009 = vmatmul.mubr.bf16.gmra.mrb[0].mxu0 %v4879
    %v5010 = vpop.f32.mrb[0].mxu0
    %v5011 = vadd.f32 0.0, %v5010
    %v5012 = vpop.f32.mrb[0].mxu0
    %v5013 = vpop.f32.mrb[0].mxu0
    %v5014 = vadd.f32 0.0, %v5013
    %v5015 = vpop.f32.mrb[0].mxu0
    %5016 = vmatprep.mubr.bf16.mxu0 0
    %5017 = vmatmul.mubr.bf16.gmra.mrb[0].mxu0 %v4880
    %v5018 = vpop.f32.mrb[0].mxu0
    %v5019 = vadd.f32 0.0, %v5018
    %v5020 = vpop.f32.mrb[0].mxu0
    %v5021 = vpop.f32.mrb[0].mxu0
    %v5022 = vadd.f32 0.0, %v5021
    %v5023 = vpop.f32.mrb[0].mxu0
    %5024 = vmatprep.mubr.bf16.mxu0 0
    %5025 = vmatmul.mubr.bf16.gmra.mrb[0].mxu0 %v4881
    %v5026 = vpop.f32.mrb[0].mxu0
    %v5027 = vadd.f32 0.0, %v5026
    %v5028 = vpop.f32.mrb[0].mxu0
    %v5029 = vpop.f32.mrb[0].mxu0
    %v5030 = vadd.f32 0.0, %v5029
    %v5031 = vpop.f32.mrb[0].mxu0
    %5032 = vmatprep.mubr.bf16.mxu0 0
    %5033 = vmatmul.mubr.bf16.gmra.mrb[0].mxu0 %v4882
    %v5034 = vpop.f32.mrb[0].mxu0
    %v5035 = vadd.f32 0.0, %v5034
    %v5036 = vpop.f32.mrb[0].mxu0
    %v5037 = vpop.f32.mrb[0].mxu0
    %v5038 = vadd.f32 0.0, %v5037
    %v5039 = vpop.f32.mrb[0].mxu0
    %5040 = vmatprep.mubr.bf16.mxu0 0
    %5041 = vmatmul.mubr.bf16.gmra.mrb[0].mxu0 %v4883
    %v5042 = vpop.f32.mrb[0].mxu0
    %v5043 = vadd.f32 0.0, %v5042
    %v5044 = vpop.f32.mrb[0].mxu0
    %v5045 = vpop.f32.mrb[0].mxu0
    %v5046 = vadd.f32 0.0, %v5045
    %v5047 = vpop.f32.mrb[0].mxu0
    %5048 = vmatprep.mubr.bf16.mxu0 0
    %5049 = vmatmul.mubr.bf16.gmra.mrb[0].mxu0 %v4884
    %v5050 = vpop.f32.mrb[0].mxu0
    %v5051 = vadd.f32 0.0, %v5050
    %v5052 = vpop.f32.mrb[0].mxu0
    %v5053 = vpop.f32.mrb[0].mxu0
    %v5054 = vadd.f32 0.0, %v5053
    %v5055 = vpop.f32.mrb[0].mxu0
    %5056 = vmatprep.mubr.bf16.mxu0 0
    %5057 = vmatmul.mubr.bf16.gmra.mrb[0].mxu0 %v4885
    %v5058 = vpop.f32.mrb[0].mxu0
    %v5059 = vadd.f32 0.0, %v5058
    %v5060 = vpop.f32.mrb[0].mxu0
    %v5061 = vpop.f32.mrb[0].mxu0
    %v5062 = vadd.f32 0.0, %v5061
    %v5063 = vpop.f32.mrb[0].mxu0
    %5064 = vmatprep.mubr.bf16.mxu0 0
    %5065 = vmatmul.mubr.bf16.gmra.mrb[0].mxu0 %v4886
    %v5066 = vpop.f32.mrb[0].mxu0
    %v5067 = vadd.f32 0.0, %v5066
    %v5068 = vpop.f32.mrb[0].mxu0
    %v5069 = vpop.f32.mrb[0].mxu0
    %v5070 = vadd.f32 0.0, %v5069
    %v5071 = vpop.f32.mrb[0].mxu0
    %5072 = vmatprep.mubr.bf16.mxu0 0
    %5073 = vmatmul.mubr.bf16.gmra.mrb[0].mxu0 %v4887
    %v5074 = vpop.f32.mrb[0].mxu0
    %v5075 = vadd.f32 0.0, %v5074
    %v5076 = vpop.f32.mrb[0].mxu0
    %v5077 = vpop.f32.mrb[0].mxu0
    %v5078 = vadd.f32 0.0, %v5077
    %v5079 = vpop.f32.mrb[0].mxu0
    %5080 = vmatprep.mubr.bf16.mxu0 0
    %5081 = vmatmul.mubr.bf16.gmra.mrb[0].mxu0 %v4888
    %v5082 = vpop.f32.mrb[0].mxu0
    %v5083 = vadd.f32 0.0, %v5082
    %v5084 = vpop.f32.mrb[0].mxu0
    %v5085 = vpop.f32.mrb[0].mxu0
    %v5086 = vadd.f32 0.0, %v5085
    %v5087 = vpop.f32.mrb[0].mxu0
    %5088 = vmatprep.mubr.bf16.mxu0 0
    %5089 = vmatmul.mubr.bf16.gmra.mrb[0].mxu0 %v4889
    %v5090 = vpop.f32.mrb[0].mxu0
    %v5091 = vadd.f32 0.0, %v5090
    %v5092 = vpop.f32.mrb[0].mxu0
    %v5093 = vpop.f32.mrb[0].mxu0
    %v5094 = vadd.f32 0.0, %v5093
    %v5095 = vpop.f32.mrb[0].mxu0
    %5096 = vmatprep.mubr.bf16.mxu0 0
    %5097 = vmatmul.mubr.bf16.gmra.mrb[0].mxu0 %v4890
    %v5098 = vpop.f32.mrb[0].mxu0
    %v5099 = vadd.f32 0.0, %v5098
    %v5100 = vpop.f32.mrb[0].mxu0
    %v5101 = vpop.f32.mrb[0].mxu0
    %v5102 = vadd.f32 0.0, %v5101
    %v5103 = vpop.f32.mrb[0].mxu0
    %5104 = vmatprep.mubr.bf16.mxu0 0
    %5105 = vmatmul.mubr.bf16.gmra.mrb[0].mxu0 %v4891
    %v5106 = vpop.f32.mrb[0].mxu0
    %v5107 = vadd.f32 0.0, %v5106
    %v5108 = vpop.f32.mrb[0].mxu0
    %v5109 = vpop.f32.mrb[0].mxu0
    %v5110 = vadd.f32 0.0, %v5109
    %v5111 = vpop.f32.mrb[0].mxu0
    %5112 = vmatprep.mubr.bf16.mxu0 0
    %5113 = vmatmul.mubr.bf16.gmra.mrb[0].mxu0 %v4892
    %v5114 = vpop.f32.mrb[0].mxu0
    %v5115 = vadd.f32 0.0, %v5114
    %v5116 = vpop.f32.mrb[0].mxu0
    %v5117 = vpop.f32.mrb[0].mxu0
    %v5118 = vadd.f32 0.0, %v5117
    %v5119 = vpop.f32.mrb[0].mxu0
    %5120 = vdwg.mxu0
    %v5121 = vpack.c.bf16 %v4998, %v4995
    %v5122 = vpack.c.bf16 %v5006, %v5003
    %v5123 = vpack.c.bf16 %v5014, %v5011
    %v5124 = vpack.c.bf16 %v5022, %v5019
    %v5125 = vpack.c.bf16 %v5030, %v5027
    %v5126 = vpack.c.bf16 %v5038, %v5035
    %v5127 = vpack.c.bf16 %v5046, %v5043
    %v5128 = vpack.c.bf16 %v5054, %v5051
    %v5129 = vpack.c.bf16 %v5062, %v5059
    %v5130 = vpack.c.bf16 %v5070, %v5067
    %v5131 = vpack.c.bf16 %v5078, %v5075
    %v5132 = vpack.c.bf16 %v5086, %v5083
    %v5133 = vpack.c.bf16 %v5094, %v5091
    %v5134 = vpack.c.bf16 %v5102, %v5099
    %v5135 = vpack.c.bf16 %v5110, %v5107
    %v5136 = vpack.c.bf16 %v5118, %v5115
    %v5137 = vpack.c.bf16 %v4911, %v4911
    %v5139 = vpack.i.b16 %v5137, %v5137
    %v5141 = vlaneseq
    %v5142 = vshrl.u32 %v5141, 7
    %v5143 = vsub.s32 0, %v5142
    %v5144 = vrot.slane %v5139, %v5143
    %v5145 = vadd.bf16 %v5121, %v5144
    %v5146 = vadd.bf16 %v5122, %v5144
    %v5147 = vadd.bf16 %v5123, %v5144
    %v5148 = vadd.bf16 %v5124, %v5144
    %v5149 = vadd.bf16 %v5125, %v5144
    %v5150 = vadd.bf16 %v5126, %v5144
    %v5151 = vadd.bf16 %v5127, %v5144
    %v5152 = vadd.bf16 %v5128, %v5144
    %v5153 = vadd.bf16 %v5129, %v5144
    %v5154 = vadd.bf16 %v5130, %v5144
    %v5155 = vadd.bf16 %v5131, %v5144
    %v5156 = vadd.bf16 %v5132, %v5144
    %v5157 = vadd.bf16 %v5133, %v5144
    %v5158 = vadd.bf16 %v5134, %v5144
    %v5159 = vadd.bf16 %v5135, %v5144
    %v5160 = vadd.bf16 %v5136, %v5144
    %v5161 = vtanh.bf16.pop %v5145
    %v5162 = vtanh.bf16.pop %v5146
    %v5163 = vtanh.bf16.pop %v5147
    %v5164 = vtanh.bf16.pop %v5148
    %v5165 = vtanh.bf16.pop %v5149
    %v5166 = vtanh.bf16.pop %v5150
    %v5167 = vtanh.bf16.pop %v5151
    %v5168 = vtanh.bf16.pop %v5152
    %v5169 = vtanh.bf16.pop %v5153
    %v5170 = vtanh.bf16.pop %v5154
    %v5171 = vtanh.bf16.pop %v5155
    %v5172 = vtanh.bf16.pop %v5156
    %v5173 = vtanh.bf16.pop %v5157
    %v5174 = vtanh.bf16.pop %v5158
    %v5175 = vtanh.bf16.pop %v5159
    %v5176 = vtanh.bf16.pop %v5160
    %s5177 = scalar_lea.vmem %s2, 1088
    %v5178 = vld [vmem:[%s5177] sm:$0xf]
    %v5179 = vld [vmem:[%s5177 + $0x4] sm:$0xf]
    %v5180 = vld [vmem:[%s5177 + $0x8] sm:$0xf]
    %v5181 = vld [vmem:[%s5177 + $0xc] sm:$0xf]
    %v5182 = vld [vmem:[%s5177 + $0x10] sm:$0xf]
    %v5183 = vld [vmem:[%s5177 + $0x14] sm:$0xf]
    %v5184 = vld [vmem:[%s5177 + $0x18] sm:$0xf]
    %v5185 = vld [vmem:[%s5177 + $0x1c] sm:$0xf]
    %v5186 = vld [vmem:[%s5177 + $0x20] sm:$0xf]
    %v5187 = vld [vmem:[%s5177 + $0x24] sm:$0xf]
    %v5188 = vld [vmem:[%s5177 + $0x28] sm:$0xf]
    %v5189 = vld [vmem:[%s5177 + $0x2c] sm:$0xf]
    %v5190 = vld [vmem:[%s5177 + $0x30] sm:$0xf]
    %v5191 = vld [vmem:[%s5177 + $0x34] sm:$0xf]
    %v5192 = vld [vmem:[%s5177 + $0x38] sm:$0xf]
    %v5193 = vld [vmem:[%s5177 + $0x3c] sm:$0xf]
    %s5194 = scalar_lea.vmem %s3, 18
    %v5195 = vld [vmem:[%s5194] sm:$0x1]
    %v5212 = vunpack.c.l.b16 %v5178
    %v5213 = vunpack.c.l.b16 %v5179
    %v5214 = vunpack.c.l.b16 %v5180
    %v5215 = vunpack.c.l.b16 %v5181
    %v5216 = vunpack.c.l.b16 %v5182
    %v5217 = vunpack.c.l.b16 %v5183
    %v5218 = vunpack.c.l.b16 %v5184
    %v5219 = vunpack.c.l.b16 %v5185
    %v5220 = vunpack.c.l.b16 %v5186
    %v5221 = vunpack.c.l.b16 %v5187
    %v5222 = vunpack.c.l.b16 %v5188
    %v5223 = vunpack.c.l.b16 %v5189
    %v5224 = vunpack.c.l.b16 %v5190
    %v5225 = vunpack.c.l.b16 %v5191
    %v5226 = vunpack.c.l.b16 %v5192
    %v5227 = vunpack.c.l.b16 %v5193
    %v5228 = vpack.c.b16 %v5213, %v5212
    %v5229 = vpack.c.b16 %v5215, %v5214
    %v5230 = vpack.c.b16 %v5217, %v5216
    %v5231 = vpack.c.b16 %v5219, %v5218
    %v5232 = vpack.c.b16 %v5221, %v5220
    %v5233 = vpack.c.b16 %v5223, %v5222
    %v5234 = vpack.c.b16 %v5225, %v5224
    %v5235 = vpack.c.b16 %v5227, %v5226
    %5244 = vmatprep.subr.bf16.mxu0 0
    %5245 = vmatpush1.bf16.msra.mxu0 %v5228
    %5246 = vmatprep.subr.bf16.mxu0 0
    %5247 = vmatpush1.bf16.msra.mxu0 %v5229
    %5248 = vmatprep.subr.bf16.mxu0 0
    %5249 = vmatpush1.bf16.msra.mxu0 %v5230
    %5250 = vmatprep.subr.bf16.mxu0 0
    %5251 = vmatpush1.bf16.msra.mxu0 %v5231
    %5252 = vmatprep.subr.bf16.mxu0 0
    %5253 = vmatpush1.bf16.msra.mxu0 %v5232
    %5254 = vmatprep.subr.bf16.mxu0 0
    %5255 = vmatpush1.bf16.msra.mxu0 %v5233
    %5256 = vmatprep.subr.bf16.mxu0 0
    %5257 = vmatpush1.bf16.msra.mxu0 %v5234
    %5258 = vmatprep.subr.bf16.mxu0 0
    %5259 = vmatpush1.bf16.msra.mxu0 %v5235
    %5260 = vmatprep.subr.bf16.mxu0 0
    %5261 = vmatpush1.bf16.msra.mxu0 0
    %5262 = vmatprep.subr.bf16.mxu0 0
    %5263 = vmatpush1.bf16.msra.mxu0 0
    %5264 = vmatprep.subr.bf16.mxu0 0
    %5265 = vmatpush1.bf16.msra.mxu0 0
    %5266 = vmatprep.subr.bf16.mxu0 0
    %5267 = vmatpush1.bf16.msra.mxu0 0
    %5268 = vmatprep.subr.bf16.mxu0 0
    %5269 = vmatpush1.bf16.msra.mxu0 0
    %5270 = vmatprep.subr.bf16.mxu0 0
    %5271 = vmatpush1.bf16.msra.mxu0 0
    %5272 = vmatprep.subr.bf16.mxu0 0
    %5273 = vmatpush1.bf16.msra.mxu0 0
    %5274 = vmatprep.subr.bf16.mxu0 0
    %5275 = vmatpush1.bf16.msra.mxu0 0
    %5276 = vmatprep.mubr.bf16.mxu0 0
    %5277 = vmatmul.mubr.bf16.gmra.mrb[0].mxu0 %v5161
    %v5278 = vpop.f32.mrb[0].mxu0
    %v5279 = vadd.f32 0.0, %v5278
    %v5280 = vpop.f32.mrb[0].mxu0
    %v5281 = vpop.f32.mrb[0].mxu0
    %v5282 = vadd.f32 0.0, %v5281
    %v5283 = vpop.f32.mrb[0].mxu0
    %5284 = vmatprep.mubr.bf16.mxu0 0
    %5285 = vmatmul.mubr.bf16.gmra.mrb[0].mxu0 %v5162
    %v5286 = vpop.f32.mrb[0].mxu0
    %v5287 = vadd.f32 0.0, %v5286
    %v5288 = vpop.f32.mrb[0].mxu0
    %v5289 = vpop.f32.mrb[0].mxu0
    %v5290 = vadd.f32 0.0, %v5289
    %v5291 = vpop.f32.mrb[0].mxu0
    %5292 = vmatprep.mubr.bf16.mxu0 0
    %5293 = vmatmul.mubr.bf16.gmra.mrb[0].mxu0 %v5163
    %v5294 = vpop.f32.mrb[0].mxu0
    %v5295 = vadd.f32 0.0, %v5294
    %v5296 = vpop.f32.mrb[0].mxu0
    %v5297 = vpop.f32.mrb[0].mxu0
    %v5298 = vadd.f32 0.0, %v5297
    %v5299 = vpop.f32.mrb[0].mxu0
    %5300 = vmatprep.mubr.bf16.mxu0 0
    %5301 = vmatmul.mubr.bf16.gmra.mrb[0].mxu0 %v5164
    %v5302 = vpop.f32.mrb[0].mxu0
    %v5303 = vadd.f32 0.0, %v5302
    %v5304 = vpop.f32.mrb[0].mxu0
    %v5305 = vpop.f32.mrb[0].mxu0
    %v5306 = vadd.f32 0.0, %v5305
    %v5307 = vpop.f32.mrb[0].mxu0
    %5308 = vmatprep.mubr.bf16.mxu0 0
    %5309 = vmatmul.mubr.bf16.gmra.mrb[0].mxu0 %v5165
    %v5310 = vpop.f32.mrb[0].mxu0
    %v5311 = vadd.f32 0.0, %v5310
    %v5312 = vpop.f32.mrb[0].mxu0
    %v5313 = vpop.f32.mrb[0].mxu0
    %v5314 = vadd.f32 0.0, %v5313
    %v5315 = vpop.f32.mrb[0].mxu0
    %5316 = vmatprep.mubr.bf16.mxu0 0
    %5317 = vmatmul.mubr.bf16.gmra.mrb[0].mxu0 %v5166
    %v5318 = vpop.f32.mrb[0].mxu0
    %v5319 = vadd.f32 0.0, %v5318
    %v5320 = vpop.f32.mrb[0].mxu0
    %v5321 = vpop.f32.mrb[0].mxu0
    %v5322 = vadd.f32 0.0, %v5321
    %v5323 = vpop.f32.mrb[0].mxu0
    %5324 = vmatprep.mubr.bf16.mxu0 0
    %5325 = vmatmul.mubr.bf16.gmra.mrb[0].mxu0 %v5167
    %v5326 = vpop.f32.mrb[0].mxu0
    %v5327 = vadd.f32 0.0, %v5326
    %v5328 = vpop.f32.mrb[0].mxu0
    %v5329 = vpop.f32.mrb[0].mxu0
    %v5330 = vadd.f32 0.0, %v5329
    %v5331 = vpop.f32.mrb[0].mxu0
    %5332 = vmatprep.mubr.bf16.mxu0 0
    %5333 = vmatmul.mubr.bf16.gmra.mrb[0].mxu0 %v5168
    %v5334 = vpop.f32.mrb[0].mxu0
    %v5335 = vadd.f32 0.0, %v5334
    %v5336 = vpop.f32.mrb[0].mxu0
    %v5337 = vpop.f32.mrb[0].mxu0
    %v5338 = vadd.f32 0.0, %v5337
    %v5339 = vpop.f32.mrb[0].mxu0
    %5340 = vmatprep.mubr.bf16.mxu0 0
    %5341 = vmatmul.mubr.bf16.gmra.mrb[0].mxu0 %v5169
    %v5342 = vpop.f32.mrb[0].mxu0
    %v5343 = vadd.f32 0.0, %v5342
    %v5344 = vpop.f32.mrb[0].mxu0
    %v5345 = vpop.f32.mrb[0].mxu0
    %v5346 = vadd.f32 0.0, %v5345
    %v5347 = vpop.f32.mrb[0].mxu0
    %5348 = vmatprep.mubr.bf16.mxu0 0
    %5349 = vmatmul.mubr.bf16.gmra.mrb[0].mxu0 %v5170
    %v5350 = vpop.f32.mrb[0].mxu0
    %v5351 = vadd.f32 0.0, %v5350
    %v5352 = vpop.f32.mrb[0].mxu0
    %v5353 = vpop.f32.mrb[0].mxu0
    %v5354 = vadd.f32 0.0, %v5353
    %v5355 = vpop.f32.mrb[0].mxu0
    %5356 = vmatprep.mubr.bf16.mxu0 0
    %5357 = vmatmul.mubr.bf16.gmra.mrb[0].mxu0 %v5171
    %v5358 = vpop.f32.mrb[0].mxu0
    %v5359 = vadd.f32 0.0, %v5358
    %v5360 = vpop.f32.mrb[0].mxu0
    %v5361 = vpop.f32.mrb[0].mxu0
    %v5362 = vadd.f32 0.0, %v5361
    %v5363 = vpop.f32.mrb[0].mxu0
    %5364 = vmatprep.mubr.bf16.mxu0 0
    %5365 = vmatmul.mubr.bf16.gmra.mrb[0].mxu0 %v5172
    %v5366 = vpop.f32.mrb[0].mxu0
    %v5367 = vadd.f32 0.0, %v5366
    %v5368 = vpop.f32.mrb[0].mxu0
    %v5369 = vpop.f32.mrb[0].mxu0
    %v5370 = vadd.f32 0.0, %v5369
    %v5371 = vpop.f32.mrb[0].mxu0
    %5372 = vmatprep.mubr.bf16.mxu0 0
    %5373 = vmatmul.mubr.bf16.gmra.mrb[0].mxu0 %v5173
    %v5374 = vpop.f32.mrb[0].mxu0
    %v5375 = vadd.f32 0.0, %v5374
    %v5376 = vpop.f32.mrb[0].mxu0
    %v5377 = vpop.f32.mrb[0].mxu0
    %v5378 = vadd.f32 0.0, %v5377
    %v5379 = vpop.f32.mrb[0].mxu0
    %5380 = vmatprep.mubr.bf16.mxu0 0
    %5381 = vmatmul.mubr.bf16.gmra.mrb[0].mxu0 %v5174
    %v5382 = vpop.f32.mrb[0].mxu0
    %v5383 = vadd.f32 0.0, %v5382
    %v5384 = vpop.f32.mrb[0].mxu0
    %v5385 = vpop.f32.mrb[0].mxu0
    %v5386 = vadd.f32 0.0, %v5385
    %v5387 = vpop.f32.mrb[0].mxu0
    %5388 = vmatprep.mubr.bf16.mxu0 0
    %5389 = vmatmul.mubr.bf16.gmra.mrb[0].mxu0 %v5175
    %v5390 = vpop.f32.mrb[0].mxu0
    %v5391 = vadd.f32 0.0, %v5390
    %v5392 = vpop.f32.mrb[0].mxu0
    %v5393 = vpop.f32.mrb[0].mxu0
    %v5394 = vadd.f32 0.0, %v5393
    %v5395 = vpop.f32.mrb[0].mxu0
    %5396 = vmatprep.mubr.bf16.mxu0 0
    %5397 = vmatmul.mubr.bf16.gmra.mrb[0].mxu0 %v5176
    %v5398 = vpop.f32.mrb[0].mxu0
    %v5399 = vadd.f32 0.0, %v5398
    %v5400 = vpop.f32.mrb[0].mxu0
    %v5401 = vpop.f32.mrb[0].mxu0
    %v5402 = vadd.f32 0.0, %v5401
    %v5403 = vpop.f32.mrb[0].mxu0
    %5404 = vdwg.mxu0
    %v5405 = vpack.c.bf16 %v5282, %v5279
    %v5406 = vpack.c.bf16 %v5290, %v5287
    %v5407 = vpack.c.bf16 %v5298, %v5295
    %v5408 = vpack.c.bf16 %v5306, %v5303
    %v5409 = vpack.c.bf16 %v5314, %v5311
    %v5410 = vpack.c.bf16 %v5322, %v5319
    %v5411 = vpack.c.bf16 %v5330, %v5327
    %v5412 = vpack.c.bf16 %v5338, %v5335
    %v5413 = vpack.c.bf16 %v5346, %v5343
    %v5414 = vpack.c.bf16 %v5354, %v5351
    %v5415 = vpack.c.bf16 %v5362, %v5359
    %v5416 = vpack.c.bf16 %v5370, %v5367
    %v5417 = vpack.c.bf16 %v5378, %v5375
    %v5418 = vpack.c.bf16 %v5386, %v5383
    %v5419 = vpack.c.bf16 %v5394, %v5391
    %v5420 = vpack.c.bf16 %v5402, %v5399
    %v5421 = vpack.c.bf16 %v5195, %v5195
    %v5423 = vpack.i.b16 %v5421, %v5421
    %v5425 = vlaneseq
    %v5426 = vshrl.u32 %v5425, 7
    %v5427 = vsub.s32 0, %v5426
    %v5428 = vrot.slane %v5423, %v5427
    %v5429 = vadd.bf16 %v5405, %v5428
    %v5430 = vadd.bf16 %v5406, %v5428
    %v5431 = vadd.bf16 %v5407, %v5428
    %v5432 = vadd.bf16 %v5408, %v5428
    %v5433 = vadd.bf16 %v5409, %v5428
    %v5434 = vadd.bf16 %v5410, %v5428
    %v5435 = vadd.bf16 %v5411, %v5428
    %v5436 = vadd.bf16 %v5412, %v5428
    %v5437 = vadd.bf16 %v5413, %v5428
    %v5438 = vadd.bf16 %v5414, %v5428
    %v5439 = vadd.bf16 %v5415, %v5428
    %v5440 = vadd.bf16 %v5416, %v5428
    %v5441 = vadd.bf16 %v5417, %v5428
    %v5442 = vadd.bf16 %v5418, %v5428
    %v5443 = vadd.bf16 %v5419, %v5428
    %v5444 = vadd.bf16 %v5420, %v5428
    %v5445 = vtanh.bf16.pop %v5429
    %v5446 = vtanh.bf16.pop %v5430
    %v5447 = vtanh.bf16.pop %v5431
    %v5448 = vtanh.bf16.pop %v5432
    %v5449 = vtanh.bf16.pop %v5433
    %v5450 = vtanh.bf16.pop %v5434
    %v5451 = vtanh.bf16.pop %v5435
    %v5452 = vtanh.bf16.pop %v5436
    %v5453 = vtanh.bf16.pop %v5437
    %v5454 = vtanh.bf16.pop %v5438
    %v5455 = vtanh.bf16.pop %v5439
    %v5456 = vtanh.bf16.pop %v5440
    %v5457 = vtanh.bf16.pop %v5441
    %v5458 = vtanh.bf16.pop %v5442
    %v5459 = vtanh.bf16.pop %v5443
    %v5460 = vtanh.bf16.pop %v5444
    %s5461 = scalar_lea.vmem %s2, 1152
    %v5462 = vld [vmem:[%s5461] sm:$0xf]
    %v5463 = vld [vmem:[%s5461 + $0x4] sm:$0xf]
    %v5464 = vld [vmem:[%s5461 + $0x8] sm:$0xf]
    %v5465 = vld [vmem:[%s5461 + $0xc] sm:$0xf]
    %v5466 = vld [vmem:[%s5461 + $0x10] sm:$0xf]
    %v5467 = vld [vmem:[%s5461 + $0x14] sm:$0xf]
    %v5468 = vld [vmem:[%s5461 + $0x18] sm:$0xf]
    %v5469 = vld [vmem:[%s5461 + $0x1c] sm:$0xf]
    %v5470 = vld [vmem:[%s5461 + $0x20] sm:$0xf]
    %v5471 = vld [vmem:[%s5461 + $0x24] sm:$0xf]
    %v5472 = vld [vmem:[%s5461 + $0x28] sm:$0xf]
    %v5473 = vld [vmem:[%s5461 + $0x2c] sm:$0xf]
    %v5474 = vld [vmem:[%s5461 + $0x30] sm:$0xf]
    %v5475 = vld [vmem:[%s5461 + $0x34] sm:$0xf]
    %v5476 = vld [vmem:[%s5461 + $0x38] sm:$0xf]
    %v5477 = vld [vmem:[%s5461 + $0x3c] sm:$0xf]
    %s5478 = scalar_lea.vmem %s3, 19
    %v5479 = vld [vmem:[%s5478] sm:$0x1]
    %v5496 = vunpack.c.l.b16 %v5462
    %v5497 = vunpack.c.l.b16 %v5463
    %v5498 = vunpack.c.l.b16 %v5464
    %v5499 = vunpack.c.l.b16 %v5465
    %v5500 = vunpack.c.l.b16 %v5466
    %v5501 = vunpack.c.l.b16 %v5467
    %v5502 = vunpack.c.l.b16 %v5468
    %v5503 = vunpack.c.l.b16 %v5469
    %v5504 = vunpack.c.l.b16 %v5470
    %v5505 = vunpack.c.l.b16 %v5471
    %v5506 = vunpack.c.l.b16 %v5472
    %v5507 = vunpack.c.l.b16 %v5473
    %v5508 = vunpack.c.l.b16 %v5474
    %v5509 = vunpack.c.l.b16 %v5475
    %v5510 = vunpack.c.l.b16 %v5476
    %v5511 = vunpack.c.l.b16 %v5477
    %v5512 = vpack.c.b16 %v5497, %v5496
    %v5513 = vpack.c.b16 %v5499, %v5498
    %v5514 = vpack.c.b16 %v5501, %v5500
    %v5515 = vpack.c.b16 %v5503, %v5502
    %v5516 = vpack.c.b16 %v5505, %v5504
    %v5517 = vpack.c.b16 %v5507, %v5506
    %v5518 = vpack.c.b16 %v5509, %v5508
    %v5519 = vpack.c.b16 %v5511, %v5510
    %5528 = vmatprep.subr.bf16.mxu0 0
    %5529 = vmatpush1.bf16.msra.mxu0 %v5512
    %5530 = vmatprep.subr.bf16.mxu0 0
    %5531 = vmatpush1.bf16.msra.mxu0 %v5513
    %5532 = vmatprep.subr.bf16.mxu0 0
    %5533 = vmatpush1.bf16.msra.mxu0 %v5514
    %5534 = vmatprep.subr.bf16.mxu0 0
    %5535 = vmatpush1.bf16.msra.mxu0 %v5515
    %5536 = vmatprep.subr.bf16.mxu0 0
    %5537 = vmatpush1.bf16.msra.mxu0 %v5516
    %5538 = vmatprep.subr.bf16.mxu0 0
    %5539 = vmatpush1.bf16.msra.mxu0 %v5517
    %5540 = vmatprep.subr.bf16.mxu0 0
    %5541 = vmatpush1.bf16.msra.mxu0 %v5518
    %5542 = vmatprep.subr.bf16.mxu0 0
    %5543 = vmatpush1.bf16.msra.mxu0 %v5519
    %5544 = vmatprep.subr.bf16.mxu0 0
    %5545 = vmatpush1.bf16.msra.mxu0 0
    %5546 = vmatprep.subr.bf16.mxu0 0
    %5547 = vmatpush1.bf16.msra.mxu0 0
    %5548 = vmatprep.subr.bf16.mxu0 0
    %5549 = vmatpush1.bf16.msra.mxu0 0
    %5550 = vmatprep.subr.bf16.mxu0 0
    %5551 = vmatpush1.bf16.msra.mxu0 0
    %5552 = vmatprep.subr.bf16.mxu0 0
    %5553 = vmatpush1.bf16.msra.mxu0 0
    %5554 = vmatprep.subr.bf16.mxu0 0
    %5555 = vmatpush1.bf16.msra.mxu0 0
    %5556 = vmatprep.subr.bf16.mxu0 0
    %5557 = vmatpush1.bf16.msra.mxu0 0
    %5558 = vmatprep.subr.bf16.mxu0 0
    %5559 = vmatpush1.bf16.msra.mxu0 0
    %5560 = vmatprep.mubr.bf16.mxu0 0
    %5561 = vmatmul.mubr.bf16.gmra.mrb[0].mxu0 %v5445
    %v5562 = vpop.f32.mrb[0].mxu0
    %v5563 = vadd.f32 0.0, %v5562
    %v5564 = vpop.f32.mrb[0].mxu0
    %v5565 = vpop.f32.mrb[0].mxu0
    %v5566 = vadd.f32 0.0, %v5565
    %v5567 = vpop.f32.mrb[0].mxu0
    %5568 = vmatprep.mubr.bf16.mxu0 0
    %5569 = vmatmul.mubr.bf16.gmra.mrb[0].mxu0 %v5446
    %v5570 = vpop.f32.mrb[0].mxu0
    %v5571 = vadd.f32 0.0, %v5570
    %v5572 = vpop.f32.mrb[0].mxu0
    %v5573 = vpop.f32.mrb[0].mxu0
    %v5574 = vadd.f32 0.0, %v5573
    %v5575 = vpop.f32.mrb[0].mxu0
    %5576 = vmatprep.mubr.bf16.mxu0 0
    %5577 = vmatmul.mubr.bf16.gmra.mrb[0].mxu0 %v5447
    %v5578 = vpop.f32.mrb[0].mxu0
    %v5579 = vadd.f32 0.0, %v5578
    %v5580 = vpop.f32.mrb[0].mxu0
    %v5581 = vpop.f32.mrb[0].mxu0
    %v5582 = vadd.f32 0.0, %v5581
    %v5583 = vpop.f32.mrb[0].mxu0
    %5584 = vmatprep.mubr.bf16.mxu0 0
    %5585 = vmatmul.mubr.bf16.gmra.mrb[0].mxu0 %v5448
    %v5586 = vpop.f32.mrb[0].mxu0
    %v5587 = vadd.f32 0.0, %v5586
    %v5588 = vpop.f32.mrb[0].mxu0
    %v5589 = vpop.f32.mrb[0].mxu0
    %v5590 = vadd.f32 0.0, %v5589
    %v5591 = vpop.f32.mrb[0].mxu0
    %5592 = vmatprep.mubr.bf16.mxu0 0
    %5593 = vmatmul.mubr.bf16.gmra.mrb[0].mxu0 %v5449
    %v5594 = vpop.f32.mrb[0].mxu0
    %v5595 = vadd.f32 0.0, %v5594
    %v5596 = vpop.f32.mrb[0].mxu0
    %v5597 = vpop.f32.mrb[0].mxu0
    %v5598 = vadd.f32 0.0, %v5597
    %v5599 = vpop.f32.mrb[0].mxu0
    %5600 = vmatprep.mubr.bf16.mxu0 0
    %5601 = vmatmul.mubr.bf16.gmra.mrb[0].mxu0 %v5450
    %v5602 = vpop.f32.mrb[0].mxu0
    %v5603 = vadd.f32 0.0, %v5602
    %v5604 = vpop.f32.mrb[0].mxu0
    %v5605 = vpop.f32.mrb[0].mxu0
    %v5606 = vadd.f32 0.0, %v5605
    %v5607 = vpop.f32.mrb[0].mxu0
    %5608 = vmatprep.mubr.bf16.mxu0 0
    %5609 = vmatmul.mubr.bf16.gmra.mrb[0].mxu0 %v5451
    %v5610 = vpop.f32.mrb[0].mxu0
    %v5611 = vadd.f32 0.0, %v5610
    %v5612 = vpop.f32.mrb[0].mxu0
    %v5613 = vpop.f32.mrb[0].mxu0
    %v5614 = vadd.f32 0.0, %v5613
    %v5615 = vpop.f32.mrb[0].mxu0
    %5616 = vmatprep.mubr.bf16.mxu0 0
    %5617 = vmatmul.mubr.bf16.gmra.mrb[0].mxu0 %v5452
    %v5618 = vpop.f32.mrb[0].mxu0
    %v5619 = vadd.f32 0.0, %v5618
    %v5620 = vpop.f32.mrb[0].mxu0
    %v5621 = vpop.f32.mrb[0].mxu0
    %v5622 = vadd.f32 0.0, %v5621
    %v5623 = vpop.f32.mrb[0].mxu0
    %5624 = vmatprep.mubr.bf16.mxu0 0
    %5625 = vmatmul.mubr.bf16.gmra.mrb[0].mxu0 %v5453
    %v5626 = vpop.f32.mrb[0].mxu0
    %v5627 = vadd.f32 0.0, %v5626
    %v5628 = vpop.f32.mrb[0].mxu0
    %v5629 = vpop.f32.mrb[0].mxu0
    %v5630 = vadd.f32 0.0, %v5629
    %v5631 = vpop.f32.mrb[0].mxu0
    %5632 = vmatprep.mubr.bf16.mxu0 0
    %5633 = vmatmul.mubr.bf16.gmra.mrb[0].mxu0 %v5454
    %v5634 = vpop.f32.mrb[0].mxu0
    %v5635 = vadd.f32 0.0, %v5634
    %v5636 = vpop.f32.mrb[0].mxu0
    %v5637 = vpop.f32.mrb[0].mxu0
    %v5638 = vadd.f32 0.0, %v5637
    %v5639 = vpop.f32.mrb[0].mxu0
    %5640 = vmatprep.mubr.bf16.mxu0 0
    %5641 = vmatmul.mubr.bf16.gmra.mrb[0].mxu0 %v5455
    %v5642 = vpop.f32.mrb[0].mxu0
    %v5643 = vadd.f32 0.0, %v5642
    %v5644 = vpop.f32.mrb[0].mxu0
    %v5645 = vpop.f32.mrb[0].mxu0
    %v5646 = vadd.f32 0.0, %v5645
    %v5647 = vpop.f32.mrb[0].mxu0
    %5648 = vmatprep.mubr.bf16.mxu0 0
    %5649 = vmatmul.mubr.bf16.gmra.mrb[0].mxu0 %v5456
    %v5650 = vpop.f32.mrb[0].mxu0
    %v5651 = vadd.f32 0.0, %v5650
    %v5652 = vpop.f32.mrb[0].mxu0
    %v5653 = vpop.f32.mrb[0].mxu0
    %v5654 = vadd.f32 0.0, %v5653
    %v5655 = vpop.f32.mrb[0].mxu0
    %5656 = vmatprep.mubr.bf16.mxu0 0
    %5657 = vmatmul.mubr.bf16.gmra.mrb[0].mxu0 %v5457
    %v5658 = vpop.f32.mrb[0].mxu0
    %v5659 = vadd.f32 0.0, %v5658
    %v5660 = vpop.f32.mrb[0].mxu0
    %v5661 = vpop.f32.mrb[0].mxu0
    %v5662 = vadd.f32 0.0, %v5661
    %v5663 = vpop.f32.mrb[0].mxu0
    %5664 = vmatprep.mubr.bf16.mxu0 0
    %5665 = vmatmul.mubr.bf16.gmra.mrb[0].mxu0 %v5458
    %v5666 = vpop.f32.mrb[0].mxu0
    %v5667 = vadd.f32 0.0, %v5666
    %v5668 = vpop.f32.mrb[0].mxu0
    %v5669 = vpop.f32.mrb[0].mxu0
    %v5670 = vadd.f32 0.0, %v5669
    %v5671 = vpop.f32.mrb[0].mxu0
    %5672 = vmatprep.mubr.bf16.mxu0 0
    %5673 = vmatmul.mubr.bf16.gmra.mrb[0].mxu0 %v5459
    %v5674 = vpop.f32.mrb[0].mxu0
    %v5675 = vadd.f32 0.0, %v5674
    %v5676 = vpop.f32.mrb[0].mxu0
    %v5677 = vpop.f32.mrb[0].mxu0
    %v5678 = vadd.f32 0.0, %v5677
    %v5679 = vpop.f32.mrb[0].mxu0
    %5680 = vmatprep.mubr.bf16.mxu0 0
    %5681 = vmatmul.mubr.bf16.gmra.mrb[0].mxu0 %v5460
    %v5682 = vpop.f32.mrb[0].mxu0
    %v5683 = vadd.f32 0.0, %v5682
    %v5684 = vpop.f32.mrb[0].mxu0
    %v5685 = vpop.f32.mrb[0].mxu0
    %v5686 = vadd.f32 0.0, %v5685
    %v5687 = vpop.f32.mrb[0].mxu0
    %5688 = vdwg.mxu0
    %v5689 = vpack.c.bf16 %v5566, %v5563
    %v5690 = vpack.c.bf16 %v5574, %v5571
    %v5691 = vpack.c.bf16 %v5582, %v5579
    %v5692 = vpack.c.bf16 %v5590, %v5587
    %v5693 = vpack.c.bf16 %v5598, %v5595
    %v5694 = vpack.c.bf16 %v5606, %v5603
    %v5695 = vpack.c.bf16 %v5614, %v5611
    %v5696 = vpack.c.bf16 %v5622, %v5619
    %v5697 = vpack.c.bf16 %v5630, %v5627
    %v5698 = vpack.c.bf16 %v5638, %v5635
    %v5699 = vpack.c.bf16 %v5646, %v5643
    %v5700 = vpack.c.bf16 %v5654, %v5651
    %v5701 = vpack.c.bf16 %v5662, %v5659
    %v5702 = vpack.c.bf16 %v5670, %v5667
    %v5703 = vpack.c.bf16 %v5678, %v5675
    %v5704 = vpack.c.bf16 %v5686, %v5683
    %v5705 = vpack.c.bf16 %v5479, %v5479
    %v5707 = vpack.i.b16 %v5705, %v5705
    %v5709 = vlaneseq
    %v5710 = vshrl.u32 %v5709, 7
    %v5711 = vsub.s32 0, %v5710
    %v5712 = vrot.slane %v5707, %v5711
    %v5713 = vadd.bf16 %v5689, %v5712
    %v5714 = vadd.bf16 %v5690, %v5712
    %v5715 = vadd.bf16 %v5691, %v5712
    %v5716 = vadd.bf16 %v5692, %v5712
    %v5717 = vadd.bf16 %v5693, %v5712
    %v5718 = vadd.bf16 %v5694, %v5712
    %v5719 = vadd.bf16 %v5695, %v5712
    %v5720 = vadd.bf16 %v5696, %v5712
    %v5721 = vadd.bf16 %v5697, %v5712
    %v5722 = vadd.bf16 %v5698, %v5712
    %v5723 = vadd.bf16 %v5699, %v5712
    %v5724 = vadd.bf16 %v5700, %v5712
    %v5725 = vadd.bf16 %v5701, %v5712
    %v5726 = vadd.bf16 %v5702, %v5712
    %v5727 = vadd.bf16 %v5703, %v5712
    %v5728 = vadd.bf16 %v5704, %v5712
    %v5729 = vtanh.bf16.pop %v5713
    %v5730 = vtanh.bf16.pop %v5714
    %v5731 = vtanh.bf16.pop %v5715
    %v5732 = vtanh.bf16.pop %v5716
    %v5733 = vtanh.bf16.pop %v5717
    %v5734 = vtanh.bf16.pop %v5718
    %v5735 = vtanh.bf16.pop %v5719
    %v5736 = vtanh.bf16.pop %v5720
    %v5737 = vtanh.bf16.pop %v5721
    %v5738 = vtanh.bf16.pop %v5722
    %v5739 = vtanh.bf16.pop %v5723
    %v5740 = vtanh.bf16.pop %v5724
    %v5741 = vtanh.bf16.pop %v5725
    %v5742 = vtanh.bf16.pop %v5726
    %v5743 = vtanh.bf16.pop %v5727
    %v5744 = vtanh.bf16.pop %v5728
    %s5745 = scalar_lea.vmem %s2, 1216
    %v5746 = vld [vmem:[%s5745] sm:$0xf]
    %v5747 = vld [vmem:[%s5745 + $0x4] sm:$0xf]
    %v5748 = vld [vmem:[%s5745 + $0x8] sm:$0xf]
    %v5749 = vld [vmem:[%s5745 + $0xc] sm:$0xf]
    %v5750 = vld [vmem:[%s5745 + $0x10] sm:$0xf]
    %v5751 = vld [vmem:[%s5745 + $0x14] sm:$0xf]
    %v5752 = vld [vmem:[%s5745 + $0x18] sm:$0xf]
    %v5753 = vld [vmem:[%s5745 + $0x1c] sm:$0xf]
    %v5754 = vld [vmem:[%s5745 + $0x20] sm:$0xf]
    %v5755 = vld [vmem:[%s5745 + $0x24] sm:$0xf]
    %v5756 = vld [vmem:[%s5745 + $0x28] sm:$0xf]
    %v5757 = vld [vmem:[%s5745 + $0x2c] sm:$0xf]
    %v5758 = vld [vmem:[%s5745 + $0x30] sm:$0xf]
    %v5759 = vld [vmem:[%s5745 + $0x34] sm:$0xf]
    %v5760 = vld [vmem:[%s5745 + $0x38] sm:$0xf]
    %v5761 = vld [vmem:[%s5745 + $0x3c] sm:$0xf]
    %s5762 = scalar_lea.vmem %s3, 20
    %v5763 = vld [vmem:[%s5762] sm:$0x1]
    %v5765 = vlaneseq
    %v5766 = vshrl.u32 %v5765, 7
    %v5767 = vsub.s32 0, %v5766
    %v5768 = vrot.slane %v5763, %v5767
    %v5786 = vunpack.c.l.b16 %v5746
    %v5787 = vunpack.c.l.b16 %v5747
    %v5788 = vunpack.c.l.b16 %v5748
    %v5789 = vunpack.c.l.b16 %v5749
    %v5790 = vunpack.c.l.b16 %v5750
    %v5791 = vunpack.c.l.b16 %v5751
    %v5792 = vunpack.c.l.b16 %v5752
    %v5793 = vunpack.c.l.b16 %v5753
    %v5794 = vunpack.c.l.b16 %v5754
    %v5795 = vunpack.c.l.b16 %v5755
    %v5796 = vunpack.c.l.b16 %v5756
    %v5797 = vunpack.c.l.b16 %v5757
    %v5798 = vunpack.c.l.b16 %v5758
    %v5799 = vunpack.c.l.b16 %v5759
    %v5800 = vunpack.c.l.b16 %v5760
    %v5801 = vunpack.c.l.b16 %v5761
    %v5802 = vpack.c.b16 %v5787, %v5786
    %v5803 = vpack.c.b16 %v5789, %v5788
    %v5804 = vpack.c.b16 %v5791, %v5790
    %v5805 = vpack.c.b16 %v5793, %v5792
    %v5806 = vpack.c.b16 %v5795, %v5794
    %v5807 = vpack.c.b16 %v5797, %v5796
    %v5808 = vpack.c.b16 %v5799, %v5798
    %v5809 = vpack.c.b16 %v5801, %v5800
    %5818 = vmatprep.subr.bf16.mxu0 0
    %5819 = vmatpush1.bf16.msra.mxu0 %v5802
    %5820 = vmatprep.subr.bf16.mxu0 0
    %5821 = vmatpush1.bf16.msra.mxu0 %v5803
    %5822 = vmatprep.subr.bf16.mxu0 0
    %5823 = vmatpush1.bf16.msra.mxu0 %v5804
    %5824 = vmatprep.subr.bf16.mxu0 0
    %5825 = vmatpush1.bf16.msra.mxu0 %v5805
    %5826 = vmatprep.subr.bf16.mxu0 0
    %5827 = vmatpush1.bf16.msra.mxu0 %v5806
    %5828 = vmatprep.subr.bf16.mxu0 0
    %5829 = vmatpush1.bf16.msra.mxu0 %v5807
    %5830 = vmatprep.subr.bf16.mxu0 0
    %5831 = vmatpush1.bf16.msra.mxu0 %v5808
    %5832 = vmatprep.subr.bf16.mxu0 0
    %5833 = vmatpush1.bf16.msra.mxu0 %v5809
    %5834 = vmatprep.subr.bf16.mxu0 0
    %5835 = vmatpush1.bf16.msra.mxu0 0
    %5836 = vmatprep.subr.bf16.mxu0 0
    %5837 = vmatpush1.bf16.msra.mxu0 0
    %5838 = vmatprep.subr.bf16.mxu0 0
    %5839 = vmatpush1.bf16.msra.mxu0 0
    %5840 = vmatprep.subr.bf16.mxu0 0
    %5841 = vmatpush1.bf16.msra.mxu0 0
    %5842 = vmatprep.subr.bf16.mxu0 0
    %5843 = vmatpush1.bf16.msra.mxu0 0
    %5844 = vmatprep.subr.bf16.mxu0 0
    %5845 = vmatpush1.bf16.msra.mxu0 0
    %5846 = vmatprep.subr.bf16.mxu0 0
    %5847 = vmatpush1.bf16.msra.mxu0 0
    %5848 = vmatprep.subr.bf16.mxu0 0
    %5849 = vmatpush1.bf16.msra.mxu0 0
    %5850 = vmatprep.mubr.bf16.mxu0 0
    %5851 = vmatmul.mubr.bf16.gmra.mrb[0].mxu0 %v5729
    %v5852 = vpop.f32.mrb[0].mxu0
    %v5853 = vadd.f32 %v5768, %v5852
    %v5854 = vpop.f32.mrb[0].mxu0
    %v5855 = vpop.f32.mrb[0].mxu0
    %v5856 = vadd.f32 %v5768, %v5855
    %v5857 = vpop.f32.mrb[0].mxu0
    %5858 = vmatprep.mubr.bf16.mxu0 0
    %5859 = vmatmul.mubr.bf16.gmra.mrb[0].mxu0 %v5730
    %v5860 = vpop.f32.mrb[0].mxu0
    %v5861 = vadd.f32 %v5768, %v5860
    %v5862 = vpop.f32.mrb[0].mxu0
    %v5863 = vpop.f32.mrb[0].mxu0
    %v5864 = vadd.f32 %v5768, %v5863
    %v5865 = vpop.f32.mrb[0].mxu0
    %5866 = vmatprep.mubr.bf16.mxu0 0
    %5867 = vmatmul.mubr.bf16.gmra.mrb[0].mxu0 %v5731
    %v5868 = vpop.f32.mrb[0].mxu0
    %v5869 = vadd.f32 %v5768, %v5868
    %v5870 = vpop.f32.mrb[0].mxu0
    %v5871 = vpop.f32.mrb[0].mxu0
    %v5872 = vadd.f32 %v5768, %v5871
    %v5873 = vpop.f32.mrb[0].mxu0
    %5874 = vmatprep.mubr.bf16.mxu0 0
    %5875 = vmatmul.mubr.bf16.gmra.mrb[0].mxu0 %v5732
    %v5876 = vpop.f32.mrb[0].mxu0
    %v5877 = vadd.f32 %v5768, %v5876
    %v5878 = vpop.f32.mrb[0].mxu0
    %v5879 = vpop.f32.mrb[0].mxu0
    %v5880 = vadd.f32 %v5768, %v5879
    %v5881 = vpop.f32.mrb[0].mxu0
    %5882 = vmatprep.mubr.bf16.mxu0 0
    %5883 = vmatmul.mubr.bf16.gmra.mrb[0].mxu0 %v5733
    %v5884 = vpop.f32.mrb[0].mxu0
    %v5885 = vadd.f32 %v5768, %v5884
    %v5886 = vpop.f32.mrb[0].mxu0
    %v5887 = vpop.f32.mrb[0].mxu0
    %v5888 = vadd.f32 %v5768, %v5887
    %v5889 = vpop.f32.mrb[0].mxu0
    %5890 = vmatprep.mubr.bf16.mxu0 0
    %5891 = vmatmul.mubr.bf16.gmra.mrb[0].mxu0 %v5734
    %v5892 = vpop.f32.mrb[0].mxu0
    %v5893 = vadd.f32 %v5768, %v5892
    %v5894 = vpop.f32.mrb[0].mxu0
    %v5895 = vpop.f32.mrb[0].mxu0
    %v5896 = vadd.f32 %v5768, %v5895
    %v5897 = vpop.f32.mrb[0].mxu0
    %5898 = vmatprep.mubr.bf16.mxu0 0
    %5899 = vmatmul.mubr.bf16.gmra.mrb[0].mxu0 %v5735
    %v5900 = vpop.f32.mrb[0].mxu0
    %v5901 = vadd.f32 %v5768, %v5900
    %v5902 = vpop.f32.mrb[0].mxu0
    %v5903 = vpop.f32.mrb[0].mxu0
    %v5904 = vadd.f32 %v5768, %v5903
    %v5905 = vpop.f32.mrb[0].mxu0
    %5906 = vmatprep.mubr.bf16.mxu0 0
    %5907 = vmatmul.mubr.bf16.gmra.mrb[0].mxu0 %v5736
    %v5908 = vpop.f32.mrb[0].mxu0
    %v5909 = vadd.f32 %v5768, %v5908
    %v5910 = vpop.f32.mrb[0].mxu0
    %v5911 = vpop.f32.mrb[0].mxu0
    %v5912 = vadd.f32 %v5768, %v5911
    %v5913 = vpop.f32.mrb[0].mxu0
    %5914 = vmatprep.mubr.bf16.mxu0 0
    %5915 = vmatmul.mubr.bf16.gmra.mrb[0].mxu0 %v5737
    %v5916 = vpop.f32.mrb[0].mxu0
    %v5917 = vadd.f32 %v5768, %v5916
    %v5918 = vpop.f32.mrb[0].mxu0
    %v5919 = vpop.f32.mrb[0].mxu0
    %v5920 = vadd.f32 %v5768, %v5919
    %v5921 = vpop.f32.mrb[0].mxu0
    %5922 = vmatprep.mubr.bf16.mxu0 0
    %5923 = vmatmul.mubr.bf16.gmra.mrb[0].mxu0 %v5738
    %v5924 = vpop.f32.mrb[0].mxu0
    %v5925 = vadd.f32 %v5768, %v5924
    %v5926 = vpop.f32.mrb[0].mxu0
    %v5927 = vpop.f32.mrb[0].mxu0
    %v5928 = vadd.f32 %v5768, %v5927
    %v5929 = vpop.f32.mrb[0].mxu0
    %5930 = vmatprep.mubr.bf16.mxu0 0
    %5931 = vmatmul.mubr.bf16.gmra.mrb[0].mxu0 %v5739
    %v5932 = vpop.f32.mrb[0].mxu0
    %v5933 = vadd.f32 %v5768, %v5932
    %v5934 = vpop.f32.mrb[0].mxu0
    %v5935 = vpop.f32.mrb[0].mxu0
    %v5936 = vadd.f32 %v5768, %v5935
    %v5937 = vpop.f32.mrb[0].mxu0
    %5938 = vmatprep.mubr.bf16.mxu0 0
    %5939 = vmatmul.mubr.bf16.gmra.mrb[0].mxu0 %v5740
    %v5940 = vpop.f32.mrb[0].mxu0
    %v5941 = vadd.f32 %v5768, %v5940
    %v5942 = vpop.f32.mrb[0].mxu0
    %v5943 = vpop.f32.mrb[0].mxu0
    %v5944 = vadd.f32 %v5768, %v5943
    %v5945 = vpop.f32.mrb[0].mxu0
    %5946 = vmatprep.mubr.bf16.mxu0 0
    %5947 = vmatmul.mubr.bf16.gmra.mrb[0].mxu0 %v5741
    %v5948 = vpop.f32.mrb[0].mxu0
    %v5949 = vadd.f32 %v5768, %v5948
    %v5950 = vpop.f32.mrb[0].mxu0
    %v5951 = vpop.f32.mrb[0].mxu0
    %v5952 = vadd.f32 %v5768, %v5951
    %v5953 = vpop.f32.mrb[0].mxu0
    %5954 = vmatprep.mubr.bf16.mxu0 0
    %5955 = vmatmul.mubr.bf16.gmra.mrb[0].mxu0 %v5742
    %v5956 = vpop.f32.mrb[0].mxu0
    %v5957 = vadd.f32 %v5768, %v5956
    %v5958 = vpop.f32.mrb[0].mxu0
    %v5959 = vpop.f32.mrb[0].mxu0
    %v5960 = vadd.f32 %v5768, %v5959
    %v5961 = vpop.f32.mrb[0].mxu0
    %5962 = vmatprep.mubr.bf16.mxu0 0
    %5963 = vmatmul.mubr.bf16.gmra.mrb[0].mxu0 %v5743
    %v5964 = vpop.f32.mrb[0].mxu0
    %v5965 = vadd.f32 %v5768, %v5964
    %v5966 = vpop.f32.mrb[0].mxu0
    %v5967 = vpop.f32.mrb[0].mxu0
    %v5968 = vadd.f32 %v5768, %v5967
    %v5969 = vpop.f32.mrb[0].mxu0
    %5970 = vmatprep.mubr.bf16.mxu0 0
    %5971 = vmatmul.mubr.bf16.gmra.mrb[0].mxu0 %v5744
    %v5972 = vpop.f32.mrb[0].mxu0
    %v5973 = vadd.f32 %v5768, %v5972
    %v5974 = vpop.f32.mrb[0].mxu0
    %v5975 = vpop.f32.mrb[0].mxu0
    %v5976 = vadd.f32 %v5768, %v5975
    %v5977 = vpop.f32.mrb[0].mxu0
    %5978 = vdwg.mxu0
    %vm5979 = vcmask 7168
    %5980 = vst.msk [vmem:[%s4] sm:$0xff] %vm5979, %v5853
    %5981 = vst.msk [vmem:[%s4 + $0x8] sm:$0xff] %vm5979, %v5856
    %5982 = vst.msk [vmem:[%s4 + $0x10] sm:$0xff] %vm5979, %v5861
    %5983 = vst.msk [vmem:[%s4 + $0x18] sm:$0xff] %vm5979, %v5864
    %5984 = vst.msk [vmem:[%s4 + $0x20] sm:$0xff] %vm5979, %v5869
    %5985 = vst.msk [vmem:[%s4 + $0x28] sm:$0xff] %vm5979, %v5872
    %5986 = vst.msk [vmem:[%s4 + $0x30] sm:$0xff] %vm5979, %v5877
    %5987 = vst.msk [vmem:[%s4 + $0x38] sm:$0xff] %vm5979, %v5880
    %5988 = vst.msk [vmem:[%s4 + $0x40] sm:$0xff] %vm5979, %v5885
    %5989 = vst.msk [vmem:[%s4 + $0x48] sm:$0xff] %vm5979, %v5888
    %5990 = vst.msk [vmem:[%s4 + $0x50] sm:$0xff] %vm5979, %v5893
    %5991 = vst.msk [vmem:[%s4 + $0x58] sm:$0xff] %vm5979, %v5896
    %5992 = vst.msk [vmem:[%s4 + $0x60] sm:$0xff] %vm5979, %v5901
    %5993 = vst.msk [vmem:[%s4 + $0x68] sm:$0xff] %vm5979, %v5904
    %5994 = vst.msk [vmem:[%s4 + $0x70] sm:$0xff] %vm5979, %v5909
    %5995 = vst.msk [vmem:[%s4 + $0x78] sm:$0xff] %vm5979, %v5912
    %5996 = vst.msk [vmem:[%s4 + $0x80] sm:$0xff] %vm5979, %v5917
    %5997 = vst.msk [vmem:[%s4 + $0x88] sm:$0xff] %vm5979, %v5920
    %5998 = vst.msk [vmem:[%s4 + $0x90] sm:$0xff] %vm5979, %v5925
    %5999 = vst.msk [vmem:[%s4 + $0x98] sm:$0xff] %vm5979, %v5928
    %6000 = vst.msk [vmem:[%s4 + $0xa0] sm:$0xff] %vm5979, %v5933
    %6001 = vst.msk [vmem:[%s4 + $0xa8] sm:$0xff] %vm5979, %v5936
    %6002 = vst.msk [vmem:[%s4 + $0xb0] sm:$0xff] %vm5979, %v5941
    %6003 = vst.msk [vmem:[%s4 + $0xb8] sm:$0xff] %vm5979, %v5944
    %6004 = vst.msk [vmem:[%s4 + $0xc0] sm:$0xff] %vm5979, %v5949
    %6005 = vst.msk [vmem:[%s4 + $0xc8] sm:$0xff] %vm5979, %v5952
    %6006 = vst.msk [vmem:[%s4 + $0xd0] sm:$0xff] %vm5979, %v5957
    %6007 = vst.msk [vmem:[%s4 + $0xd8] sm:$0xff] %vm5979, %v5960
    %6008 = vst.msk [vmem:[%s4 + $0xe0] sm:$0xff] %vm5979, %v5965
    %6009 = vst.msk [vmem:[%s4 + $0xe8] sm:$0xff] %vm5979, %v5968
    %6010 = vst.msk [vmem:[%s4 + $0xf0] sm:$0xff] %vm5979, %v5973
    %6011 = vst.msk [vmem:[%s4 + $0xf8] sm:$0xff] %vm5979, %v5976
    // Predicated region
    $region22: #{fcn_forward.1} parent=1 // pred_check
      _
    $region23: #{fcn_forward.1} parent=1 // pred_check_branch
      %6013 = sbr.rel (0) target = $region25
    $region24: #{fcn_forward.1} parent=1 // pred_region
      _
    $region25: #{fcn_forward.1} parent=1 // pred_fallthru
      _
    // Predicated region
    $region26: #{fcn_forward.1} parent=1 // pred_check
      _
    $region27: #{fcn_forward.1} parent=1 // pred_check_branch
      %6015 = sbr.rel (0) target = $region29
    $region28: #{fcn_forward.1} parent=1 // pred_region
      _
    $region29: #{fcn_forward.1} parent=1 // pred_fallthru
      _
    %6016 = vsyncpa [#allocation3], 1

</llo_original>
